<compile_context>
chip_gen: v6e
topology: v6e:2x2x1
jax: 0.10.0
libtpu: 0.0.40
codegen_flags: <defaults>
</compile_context>

<pallas_src>
import math
import functools

import jax
import jax.numpy as jnp
from jax import lax
from jax.experimental import pallas as pl
from jax.experimental.pallas import tpu as pltpu

EPS = 1e-5                      # layer_norm_eps of the PyTorch module
NEG = -1e30                     # stands in for float('-inf') in attention masks
COMPUTE_DTYPE = jnp.bfloat16    # MXU input dtype (f32 accumulation)


def _round_up(x, m):
    return (x + m - 1) // m * m


# ----------------------------------------------------------------------------
# shared math helpers
# ----------------------------------------------------------------------------
def _layernorm(x, g, b):
    # x: (N, E), g/b: (1, E).  PyTorch LayerNorm (biased variance).
    mu = jnp.mean(x, axis=-1, keepdims=True)
    var = jnp.mean((x - mu) ** 2, axis=-1, keepdims=True)
    return (x - mu) * lax.rsqrt(var + EPS) * g + b


# ----------------------------------------------------------------------------
# fused decoder-stack kernel
#   grid = (BC, L): BC batch chunks ("parallel"), L layers ("arbitrary").
#   The activation is resident in the revisited output VMEM block across L.
# ----------------------------------------------------------------------------
def decoder_stack_kernel(nhead, Bc, Tp, Sp, S_true,
                         tgt_ref, mem_ref,
                         sa_w_ref, sa_b_ref, sa_wo_ref, sa_bo_ref,
                         ca_w_ref, ca_b_ref, ca_wo_ref, ca_bo_ref,
                         ln_ref,
                         out_ref):
    l = pl.program_id(1)
    E = out_ref.shape[-1]
    H = nhead
    hd = E // H
    cdt = sa_w_ref.dtype                     # MXU input dtype (bf16)

    # layer 0: load this chunk's embedded tokens into the resident output block
    @pl.when(l == 0)
    def _():
        out_ref[...] = tgt_ref[...]

    x = out_ref[...]                          # (Bc*Tp, E) f32
    mem = mem_ref[...]                        # (Bc*Sp, E) f32
    ln = ln_ref[0]                            # (4, E)     f32

    # causal mask built in-kernel (also masks padded target key rows)
    row = lax.broadcasted_iota(jnp.int32, (Tp, Tp), 0)
    col = lax.broadcasted_iota(jnp.int32, (Tp, Tp), 1)
    causal = jnp.where(col <= row, 0.0, NEG).astype(jnp.float32)

    # mask for zero-padded encoder-memory key rows (only if S was padded)
    if Sp != S_true:
        kv_pos = lax.broadcasted_iota(jnp.int32, (1, Sp), 1)
        kv_mask = jnp.where(kv_pos < S_true, 0.0, NEG).astype(jnp.float32)
    else:
        kv_mask = None

    def attention(q2d, k2d, v2d, n_q, n_kv, mask):
        # q2d: (Bc*n_q, E), k2d/v2d: (Bc*n_kv, E), all f32.
        # Per-head work only for the score / PV stage (small-K, review-approved).
        qb = q2d.reshape(Bc, n_q, E).astype(cdt)
        kb = k2d.reshape(Bc, n_kv, E).astype(cdt)
        vb = v2d.reshape(Bc, n_kv, E).astype(cdt)
        ctx_heads = []
        for h in range(H):
            sl = slice(h * hd, (h + 1) * hd)
            s = jnp.einsum('bqd,bkd->bqk', qb[:, :, sl], kb[:, :, sl],
                           preferred_element_type=jnp.float32)
            if mask is not None:
                s = s + mask
            s = s - jnp.max(s, axis=-1, keepdims=True)
            p = jnp.exp(s)
            p = p * pl.reciprocal(jnp.sum(p, axis=-1, keepdims=True), approx=True)
            ctx_heads.append(jnp.einsum('bqk,bkd->bqd', p.astype(cdt),
                                        vb[:, :, sl],
                                        preferred_element_type=jnp.float32))
        ctx = jnp.concatenate(ctx_heads, axis=-1)         # (Bc, n_q, E) f32
        return ctx.reshape(Bc * n_q, E)

    def self_attn(x_in):
        # fused QKV: one (Bc*Tp, E) x (E, 3E) matmul (scale pre-folded into Q)
        qkv = jnp.dot(x_in.astype(cdt), sa_w_ref[0],
                      preferred_element_type=jnp.float32) + sa_b_ref[0]
        ctx = attention(qkv[:, :E], qkv[:, E:2 * E], qkv[:, 2 * E:],
                        Tp, Tp, causal)
        return jnp.dot(ctx.astype(cdt), sa_wo_ref[0],
                       preferred_element_type=jnp.float32) + sa_bo_ref[0]

    def cross_attn(x_in, m_in):
        w3 = ca_w_ref[0]                                   # (E, 3E)
        b3 = ca_b_ref[0]                                   # (1, 3E)
        q = jnp.dot(x_in.astype(cdt), w3[:, :E],
                    preferred_element_type=jnp.float32) + b3[:, :E]
        kv = jnp.dot(m_in.astype(cdt), w3[:, E:],
                     preferred_element_type=jnp.float32) + b3[:, E:]
        ctx = attention(q, kv[:, :E], kv[:, E:], Tp, Sp, kv_mask)
        return jnp.dot(ctx.astype(cdt), ca_wo_ref[0],
                       preferred_element_type=jnp.float32) + ca_bo_ref[0]

    # h1 = norm1(x + self_attn(x));  x' = norm2(h1 + cross_attn(h1, mem))
    sa = self_attn(x)
    h1 = _layernorm(x + sa, ln[0:1], ln[1:2])
    ca = cross_attn(h1, mem)
    x_new = _layernorm(h1 + ca, ln[2:3], ln[3:4])

    out_ref[...] = x_new                      # resident state; final layer = output


def decoder_stack_pallas(x, mem, packed, nhead, batch_chunks=1):
    B, T, E = x.shape
    S = mem.shape[1]
    L = packed['sa_w'].shape[0]

    # pad sequence dims to multiples of 8 so in-kernel reshapes are tile aligned.
    Tp = _round_up(T, 8)
    Sp = _round_up(S, 8)
    if Tp != T:
        x = jnp.pad(x, ((0, 0), (0, Tp - T), (0, 0)))
    if Sp != S:
        mem = jnp.pad(mem, ((0, 0), (0, Sp - S), (0, 0)))

    # batch chunking (>=2 gives megacore work split on v7x at the cost of
    # re-fetching weights per chunk; default 1 minimizes weight HBM traffic).
    BC = batch_chunks if (batch_chunks > 0 and B % batch_chunks == 0) else 1
    Bc = B // BC

    x2 = x.reshape(B * Tp, E)
    mem2 = mem.reshape(B * Sp, E)

    def wspec(arr):
        nd = arr.ndim
        return pl.BlockSpec((1,) + tuple(arr.shape[1:]),
                            lambda bc, l: (l,) + (0,) * (nd - 1))

    # explicit VMEM budget (per-layer weights are double-buffered); cap at
    # 64 MiB so the request is valid on v7x as well as v5e/v6e.
    wb = jnp.dtype(COMPUTE_DTYPE).itemsize
    per_layer_w = 8 * E * E * wb                       # sa + ca, in-proj + out-proj
    act_bytes = (2 * Bc * Tp * E + Bc * Sp * E) * 4    # tgt + out + mem blocks (f32)
    est = 2 * per_layer_w + 2 * act_bytes + (8 << 20)
    vmem_limit = int(min(max(est, 32 << 20), 64 << 20))

    out = pl.pallas_call(
        functools.partial(decoder_stack_kernel, nhead, Bc, Tp, Sp, S),
        out_shape=jax.ShapeDtypeStruct((B * Tp, E), jnp.float32),
        grid=(BC, L),
        in_specs=[
            pl.BlockSpec((Bc * Tp, E), lambda bc, l: (bc, 0)),   # embedded tokens
            pl.BlockSpec((Bc * Sp, E), lambda bc, l: (bc, 0)),   # encoder memory
            wspec(packed['sa_w']), wspec(packed['sa_b']),
            wspec(packed['sa_wo']), wspec(packed['sa_bo']),
            wspec(packed['ca_w']), wspec(packed['ca_b']),
            wspec(packed['ca_wo']), wspec(packed['ca_bo']),
            wspec(packed['ln']),
        ],
        out_specs=pl.BlockSpec((Bc * Tp, E), lambda bc, l: (bc, 0)),
        compiler_params=pltpu.CompilerParams(
            dimension_semantics=("parallel", "arbitrary"),
            vmem_limit_bytes=vmem_limit),
    )(x2, mem2,
      packed['sa_w'], packed['sa_b'], packed['sa_wo'], packed['sa_bo'],
      packed['ca_w'], packed['ca_b'], packed['ca_wo'], packed['ca_bo'],
      packed['ln'])

    return out.reshape(B, Tp, E)[:, :T, :]


# ----------------------------------------------------------------------------
# tiled vocabulary projection (lane-dense, 512-wide output blocks)
# ----------------------------------------------------------------------------
def wdc_kernel(x_ref, w_ref, b_ref, o_ref):
    o_ref[...] = jnp.dot(x_ref[...], w_ref[...],
                         preferred_element_type=jnp.float32) + b_ref[...]


def wdc_pallas(x2d, w_p, b_p, vocab_size):
    # x2d: (N, E) f32; w_p: (E, Vp) compute-dtype (pre-padded); b_p: (1, Vp) f32
    N, E = x2d.shape
    Vp = w_p.shape[1]
    tn = 512 if Vp % 512 == 0 else 128
    if N >= 256:
        tm = 256
        Np = _round_up(N, tm)
    else:
        Np = _round_up(N, 8)
        tm = Np

    xp = x2d.astype(w_p.dtype)                 # single cast in the wrapper
    if Np != N:
        xp = jnp.pad(xp, ((0, Np - N), (0, 0)))

    out = pl.pallas_call(
        wdc_kernel,
        out_shape=jax.ShapeDtypeStruct((Np, Vp), jnp.float32),
        grid=(Np // tm, Vp // tn),
        in_specs=[pl.BlockSpec((tm, E), lambda i, j: (i, 0)),
                  pl.BlockSpec((E, tn), lambda i, j: (0, j)),
                  pl.BlockSpec((1, tn), lambda i, j: (0, j))],
        out_specs=pl.BlockSpec((tm, tn), lambda i, j: (i, j)),
        compiler_params=pltpu.CompilerParams(
            dimension_semantics=("parallel", "parallel")),
    )(xp, w_p, b_p)
    return out[:N, :vocab_size]


# ----------------------------------------------------------------------------
# one-time weight packing (hoisted out of the forward pass)
# ----------------------------------------------------------------------------
def pack_caption_decoder(params, nhead):
    # NOTE: 'sa_win'/'ca_win' are stored pre-transposed as (E, 3E); a real
    # PyTorch checkpoint stores in_proj_weight as (3E, E) and must be transposed.
    E = params['layers'][0]['sa_win'].shape[0]
    assert E % nhead == 0
    hd = E // nhead
    scale = 1.0 / math.sqrt(hd)
    cdt = COMPUTE_DTYPE

    def pack_qkv_w(w_in):                     # (E, 3E); fold 1/sqrt(hd) into Q cols
        w = w_in.astype(jnp.float32)
        w = w.at[:, :E].multiply(scale)
        return w.astype(cdt)

    def pack_qkv_b(b_in):                     # (3E,) -> (1, 3E); fold scale into Q
        b = b_in.astype(jnp.float32)
        b = b.at[:E].multiply(scale)
        return b[None, :]

    keys = ['sa_w', 'sa_b', 'sa_wo', 'sa_bo',
            'ca_w', 'ca_b', 'ca_wo', 'ca_bo', 'ln']
    stacks = {k: [] for k in keys}
    for lp in params['layers']:
        stacks['sa_w'].append(pack_qkv_w(lp['sa_win']))
        stacks['sa_b'].append(pack_qkv_b(lp['sa_bin']))
        stacks['sa_wo'].append(lp['sa_wo'].astype(cdt))
        stacks['sa_bo'].append(lp['sa_bo'])
        stacks['ca_w'].append(pack_qkv_w(lp['ca_win']))
        stacks['ca_b'].append(pack_qkv_b(lp['ca_bin']))
        stacks['ca_wo'].append(lp['ca_wo'].astype(cdt))
        stacks['ca_bo'].append(lp['ca_bo'])
        stacks['ln'].append(jnp.concatenate(
            [lp['n1_g'], lp['n1_b'], lp['n2_g'], lp['n2_b']], axis=0))
    packed = {k: jnp.stack(v, axis=0) for k, v in stacks.items()}

    # vocabulary projection weights: cast + pad V to a multiple of 512 once.
    V = params['wdc_w'].shape[1]
    Vp = _round_up(V, 512)
    packed['wdc_w'] = jnp.pad(params['wdc_w'].astype(cdt), ((0, 0), (0, Vp - V)))
    packed['wdc_b'] = jnp.pad(params['wdc_b'], ((0, 0), (0, Vp - V)))
    packed['vocab_size'] = V
    return packed


# ----------------------------------------------------------------------------
# plain-JAX reference (standard per-head MHA, same bf16 matmul casts)
# ----------------------------------------------------------------------------
def _mha_ref(q_in, kv_in, w_in, b_in, w_o, b_o, nhead, attn_mask=None):
    E = q_in.shape[-1]
    hd = E // nhead
    scale = 1.0 / math.sqrt(hd)
    cdt = COMPUTE_DTYPE

    def proj(a, w, b):
        return jnp.dot(a.astype(cdt), w.astype(cdt),
                       preferred_element_type=jnp.float32) + b

    q = proj(q_in, w_in[:, :E], b_in[:E])
    k = proj(kv_in, w_in[:, E:2 * E], b_in[E:2 * E])
    v = proj(kv_in, w_in[:, 2 * E:], b_in[2 * E:])

    heads = []
    for h in range(nhead):
        qh = q[:, h * hd:(h + 1) * hd]
        kh = k[:, h * hd:(h + 1) * hd]
        vh = v[:, h * hd:(h + 1) * hd]
        s = jnp.dot(qh.astype(cdt), kh.astype(cdt).T,
                    preferred_element_type=jnp.float32) * scale
        if attn_mask is not None:
            s = s + attn_mask
        s = s - jnp.max(s, axis=-1, keepdims=True)
        p = jnp.exp(s)
        p = p / jnp.sum(p, axis=-1, keepdims=True)
        heads.append(jnp.dot(p.astype(cdt), vh.astype(cdt),
                             preferred_element_type=jnp.float32))
    o = jnp.concatenate(heads, axis=-1)
    return jnp.dot(o.astype(cdt), w_o.astype(cdt),
                   preferred_element_type=jnp.float32) + b_o


def decoder_layer_ref(x, mem, mask, p, nhead):
    def per_b(xb, mb):
        sa = _mha_ref(xb, xb, p['sa_win'], p['sa_bin'], p['sa_wo'], p['sa_bo'],
                      nhead, attn_mask=mask)
        h1 = _layernorm(xb + sa, p['n1_g'], p['n1_b'])
        ca = _mha_ref(h1, mb, p['ca_win'], p['ca_bin'], p['ca_wo'], p['ca_bo'],
                      nhead, attn_mask=None)
        return _layernorm(h1 + ca, p['n2_g'], p['n2_b'])
    return jax.vmap(per_b)(x, mem)


# ----------------------------------------------------------------------------
# CaptionDecoder forward (glue around the kernels)
# ----------------------------------------------------------------------------
def caption_decoder_forward(params, packed, memory_sbe, encoded_captions,
                            caption_lengths, nhead, use_pallas=True,
                            batch_chunks=1):
    B, T = encoded_captions.shape

    # embedding lookup + positional encoding (glue, plain JAX)
    emb = jnp.take(params['vocab_embedding'], encoded_captions, axis=0)  # (B,T,E)
    x = emb + params['pe'][:T][None, :, :]
    mem = jnp.transpose(memory_sbe, (1, 0, 2))                           # (B,S,E)

    if use_pallas:
        x = decoder_stack_pallas(x, mem, packed, nhead, batch_chunks)
        x2d = x.reshape(B * T, -1)
        logits = wdc_pallas(x2d, packed['wdc_w'], packed['wdc_b'],
                            packed['vocab_size'])
    else:
        i = jnp.arange(T)[:, None]
        j = jnp.arange(T)[None, :]
        mask = jnp.where(j <= i, 0.0, NEG).astype(jnp.float32)
        for lp in params['layers']:
            x = decoder_layer_ref(x, mem, mask, lp, nhead)
        x2d = x.reshape(B * T, -1)
        logits = (jnp.dot(x2d.astype(COMPUTE_DTYPE),
                          params['wdc_w'].astype(COMPUTE_DTYPE),
                          preferred_element_type=jnp.float32)
                  + params['wdc_b'])
    pred = logits.reshape(B, T, -1)                                      # (B,T,V)

    # sort by caption length, descending
    # TODO(synk): jnp.argsort tie-breaking may differ from torch.sort(descending=True)
    lengths = caption_lengths[:, 0]
    sort_ind = jnp.argsort(-lengths)
    sorted_lengths = lengths[sort_ind]
    pred = pred[sort_ind]
    sorted_captions = encoded_captions[sort_ind]
    decode_lengths = sorted_lengths - 1
    return pred, sorted_captions, decode_lengths, sort_ind


# ----------------------------------------------------------------------------
# deterministic parameter init (shapes follow the PyTorch __init__)
# ----------------------------------------------------------------------------
def init_params(key, vocab_size, E, n_layer, max_len=64):
    keys = jax.random.split(key, 2 + 4 * n_layer)
    ki = iter(keys)

    params = {}
    params['vocab_embedding'] = jax.random.uniform(
        next(ki), (vocab_size, E), jnp.float32, -0.1, 0.1)
    params['wdc_w'] = jax.random.uniform(
        next(ki), (E, vocab_size), jnp.float32, -0.1, 0.1)
    params['wdc_b'] = jnp.zeros((1, vocab_size), jnp.float32)

    # sinusoidal positional encoding (PositionalEncoding)
    position = jnp.arange(max_len, dtype=jnp.float32)[:, None]
    div_term = jnp.exp(jnp.arange(0, E, 2, dtype=jnp.float32)
                       * (-math.log(10000.0) / E))
    pe = jnp.zeros((max_len, E), jnp.float32)
    pe = pe.at[:, 0::2].set(jnp.sin(position * div_term))
    pe = pe.at[:, 1::2].set(jnp.cos(position * div_term))
    params['pe'] = pe

    def xavier(k, fan_in, fan_out, shape):
        bound = math.sqrt(6.0 / (fan_in + fan_out))
        return jax.random.uniform(k, shape, jnp.float32, -bound, bound)

    layers = []
    for _ in range(n_layer):
        k_sa, k_sao, k_ca, k_cao = next(ki), next(ki), next(ki), next(ki)
        layers.append({
            # self-attention (in_proj pre-transposed to (E, 3E))
            'sa_win': xavier(k_sa, E, 3 * E, (E, 3 * E)),
            'sa_bin': jnp.zeros((3 * E,), jnp.float32),
            'sa_wo': xavier(k_sao, E, E, (E, E)),
            'sa_bo': jnp.zeros((1, E), jnp.float32),
            # cross-attention (multihead_attn2)
            'ca_win': xavier(k_ca, E, 3 * E, (E, 3 * E)),
            'ca_bin': jnp.zeros((3 * E,), jnp.float32),
            'ca_wo': xavier(k_cao, E, E, (E, E)),
            'ca_bo': jnp.zeros((1, E), jnp.float32),
            # layer norms (PyTorch default init)
            'n1_g': jnp.ones((1, E), jnp.float32),
            'n1_b': jnp.zeros((1, E), jnp.float32),
            'n2_g': jnp.ones((1, E), jnp.float32),
            'n2_b': jnp.zeros((1, E), jnp.float32),
        })
    params['layers'] = layers
    return params


# ----------------------------------------------------------------------------
if __name__ == "__main__":
    B, T, S, E, NHEAD, N_LAYER, VOCAB = 2, 8, 10, 32, 4, 2, 50

    key = jax.random.PRNGKey(0)
    k_param, k_mem, k_cap = jax.random.split(key, 3)

    params = init_params(k_param, VOCAB, E, N_LAYER)
    packed = pack_caption_decoder(params, NHEAD)   # one-time packing (hoisted)

    # memory follows the PyTorch seq-first convention: (S, B, E)
    memory = jax.random.normal(k_mem, (S, B, E), jnp.float32)
    encoded_captions = jax.random.randint(k_cap, (B, T), 0, VOCAB, dtype=jnp.int32)
    caption_lengths = jnp.array([[6], [8]], dtype=jnp.int32)

    pred, sorted_caps, decode_lengths, sort_ind = caption_decoder_forward(
        params, packed, memory, encoded_captions, caption_lengths, NHEAD,
        use_pallas=True)
    jax.block_until_ready(pred)

    # verify against the plain-JAX reference (same bf16 matmul casts; residual
    # diff from scale folding, MXU accumulation order and approx reciprocal)
    pred_ref, caps_ref, dl_ref, si_ref = caption_decoder_forward(
        params, None, memory, encoded_captions, caption_lengths, NHEAD,
        use_pallas=False)

    assert pred.shape == (B, T, VOCAB)
    err = float(jnp.max(jnp.abs(pred - pred_ref)))
    assert err < 5e-2, f"pred mismatch vs reference, max abs err = {err}"
    assert jnp.array_equal(sorted_caps, caps_ref)
    assert jnp.array_equal(sort_ind, si_ref)
    assert jnp.array_equal(decode_lengths, dl_ref)
    _ = decode_lengths.tolist()   # mirrors (caption_lengths - 1).tolist()

    print("KERNEL_OK")
</pallas_src>

<mosaic_0001>
module attributes {stable_mosaic.version = 11 : i64} {
  func.func @decoder_stack_kernel(%arg0: i32, %arg1: i32, %arg2: memref<16x32xf32, #tpu.memory_space<vmem>>, %arg3: memref<32x32xf32, #tpu.memory_space<vmem>>, %arg4: memref<1x32x96xbf16, #tpu.memory_space<vmem>>, %arg5: memref<1x1x96xf32, #tpu.memory_space<vmem>>, %arg6: memref<1x32x32xbf16, #tpu.memory_space<vmem>>, %arg7: memref<1x1x32xf32, #tpu.memory_space<vmem>>, %arg8: memref<1x32x96xbf16, #tpu.memory_space<vmem>>, %arg9: memref<1x1x96xf32, #tpu.memory_space<vmem>>, %arg10: memref<1x32x32xbf16, #tpu.memory_space<vmem>>, %arg11: memref<1x1x32xf32, #tpu.memory_space<vmem>>, %arg12: memref<1x4x32xf32, #tpu.memory_space<vmem>>, %arg13: memref<16x32xf32, #tpu.memory_space<vmem>>) attributes {dimension_semantics = [#tpu.dimension_semantics<parallel>, #tpu.dimension_semantics<arbitrary>], iteration_bounds = array<i64: 1, 2>, scalar_prefetch = 0 : i64, scratch_operands = 0 : i64, tpu.core_type = #tpu.core_type<tc>, window_params = [{transform_indices = @transform_0, window_bounds = array<i64: 16, 32>}, {transform_indices = @transform_1, window_bounds = array<i64: 32, 32>}, {transform_indices = @transform_2, window_bounds = array<i64: 1, 32, 96>}, {transform_indices = @transform_3, window_bounds = array<i64: 1, 1, 96>}, {transform_indices = @transform_4, window_bounds = array<i64: 1, 32, 32>}, {transform_indices = @transform_5, window_bounds = array<i64: 1, 1, 32>}, {transform_indices = @transform_6, window_bounds = array<i64: 1, 32, 96>}, {transform_indices = @transform_7, window_bounds = array<i64: 1, 1, 96>}, {transform_indices = @transform_8, window_bounds = array<i64: 1, 32, 32>}, {transform_indices = @transform_9, window_bounds = array<i64: 1, 1, 32>}, {transform_indices = @transform_10, window_bounds = array<i64: 1, 4, 32>}, {transform_indices = @transform_11, window_bounds = array<i64: 16, 32>}]} {
    %c0_i32 = arith.constant 0 : i32
    %0 = arith.cmpi eq, %arg1, %c0_i32 : i32
    %1 = arith.extui %0 : i1 to i32
    %c0_i32_0 = arith.constant 0 : i32
    %2 = arith.cmpi ne, %1, %c0_i32_0 : i32
    scf.if %2 {
      %c0_83 = arith.constant 0 : index
      %c0_84 = arith.constant 0 : index
      %283 = vector.load %arg2[%c0_83, %c0_84] : memref<16x32xf32, #tpu.memory_space<vmem>>, vector<16x32xf32>
      %c0_85 = arith.constant 0 : index
      %c0_86 = arith.constant 0 : index
      %284 = vector.load %arg13[%c0_85, %c0_86] : memref<16x32xf32, #tpu.memory_space<vmem>>, vector<16x32xf32>
      tpu.vector_store %arg13[%c0_85, %c0_86], %283 {strides = array<i32>} : memref<16x32xf32, #tpu.memory_space<vmem>>, vector<16x32xf32>,
    } else {
    }
    %c0 = arith.constant 0 : index
    %c0_1 = arith.constant 0 : index
    %3 = vector.load %arg13[%c0, %c0_1] : memref<16x32xf32, #tpu.memory_space<vmem>>, vector<16x32xf32>
    %c0_2 = arith.constant 0 : index
    %c0_3 = arith.constant 0 : index
    %4 = vector.load %arg3[%c0_2, %c0_3] : memref<32x32xf32, #tpu.memory_space<vmem>>, vector<32x32xf32>
    %c0_4 = arith.constant 0 : index
    %c0_5 = arith.constant 0 : index
    %c0_6 = arith.constant 0 : index
    %5 = vector.load %arg12[%c0_4, %c0_5, %c0_6] : memref<1x4x32xf32, #tpu.memory_space<vmem>>, vector<1x4x32xf32>
    %6 = vector.shape_cast %5 : vector<1x4x32xf32> to vector<4x32xf32>
    %7 = tpu.iota {dimensions = array<i32: 0>} : vector<8x8xi32>
    %8 = tpu.iota {dimensions = array<i32: 1>} : vector<8x8xi32>
    %9 = arith.cmpi sle, %8, %7 : vector<8x8xi32>
    %cst = arith.constant 0.000000e+00 : f32
    %cst_7 = arith.constant -1.000000e+30 : f32
    %10 = vector.broadcast %cst : f32 to vector<8x8xf32>
    %11 = vector.broadcast %cst_7 : f32 to vector<8x8xf32>
    %12 = arith.select %9, %10, %11 : vector<8x8xi1>, vector<8x8xf32>
    %13 = tpu.iota {dimensions = array<i32: 1>} : vector<1x16xi32>
    %c10_i32 = arith.constant 10 : i32
    %14 = vector.broadcast %c10_i32 : i32 to vector<1x16xi32>
    %15 = arith.cmpi slt, %13, %14 : vector<1x16xi32>
    %cst_8 = arith.constant 0.000000e+00 : f32
    %cst_9 = arith.constant -1.000000e+30 : f32
    %16 = vector.broadcast %cst_8 : f32 to vector<1x16xf32>
    %17 = vector.broadcast %cst_9 : f32 to vector<1x16xf32>
    %18 = arith.select %15, %16, %17 : vector<1x16xi1>, vector<1x16xf32>
    %19 = arith.truncf %3 : vector<16x32xf32> to vector<16x32xbf16>
    %c0_10 = arith.constant 0 : index
    %c0_11 = arith.constant 0 : index
    %c0_12 = arith.constant 0 : index
    %20 = vector.load %arg4[%c0_10, %c0_11, %c0_12] : memref<1x32x96xbf16, #tpu.memory_space<vmem>>, vector<1x32x96xbf16>
    %21 = vector.shape_cast %20 : vector<1x32x96xbf16> to vector<32x96xbf16>
    %cst_13 = arith.constant dense<0.000000e+00> : vector<16x96xf32>
    %22 = tpu.matmul %19, %21, %cst_13 {dimension_numbers = #tpu.dot_dimension_numbers<[1], [0], [0], [1], [0, 0, 1, 1], [], []>} : vector<16x32xbf16>, vector<32x96xbf16>, vector<16x96xf32> -> vector<16x96xf32>
    %c0_14 = arith.constant 0 : index
    %c0_15 = arith.constant 0 : index
    %c0_16 = arith.constant 0 : index
    %23 = vector.load %arg5[%c0_14, %c0_15, %c0_16] : memref<1x1x96xf32, #tpu.memory_space<vmem>>, vector<1x1x96xf32>
    %24 = vector.shape_cast %23 : vector<1x1x96xf32> to vector<1x96xf32>
    %25 = vector.broadcast %24 : vector<1x96xf32> to vector<16x96xf32>
    %26 = arith.addf %22, %25 : vector<16x96xf32>
    %27 = vector.extract_strided_slice %26 {offsets = [0, 0], sizes = [16, 32], strides = [1, 1]} : vector<16x96xf32> to vector<16x32xf32>
    %28 = vector.extract_strided_slice %26 {offsets = [0, 32], sizes = [16, 32], strides = [1, 1]} : vector<16x96xf32> to vector<16x32xf32>
    %29 = vector.extract_strided_slice %26 {offsets = [0, 64], sizes = [16, 32], strides = [1, 1]} : vector<16x96xf32> to vector<16x32xf32>
    %30 = vector.shape_cast %27 : vector<16x32xf32> to vector<2x8x32xf32>
    %31 = arith.truncf %30 : vector<2x8x32xf32> to vector<2x8x32xbf16>
    %32 = vector.shape_cast %28 : vector<16x32xf32> to vector<2x8x32xf32>
    %33 = arith.truncf %32 : vector<2x8x32xf32> to vector<2x8x32xbf16>
    %34 = vector.shape_cast %29 : vector<16x32xf32> to vector<2x8x32xf32>
    %35 = arith.truncf %34 : vector<2x8x32xf32> to vector<2x8x32xbf16>
    %36 = vector.extract_strided_slice %31 {offsets = [0, 0, 0], sizes = [2, 8, 8], strides = [1, 1, 1]} : vector<2x8x32xbf16> to vector<2x8x8xbf16>
    %37 = vector.extract_strided_slice %33 {offsets = [0, 0, 0], sizes = [2, 8, 8], strides = [1, 1, 1]} : vector<2x8x32xbf16> to vector<2x8x8xbf16>
    "tpu.trace_start"() <{level = 10 : i32, message = "bqd,bkd->bqk"}> : () -> ()
    %cst_17 = arith.constant dense<0.000000e+00> : vector<2x8x8xf32>
    %38 = tpu.matmul %36, %37, %cst_17 {dimension_numbers = #tpu.dot_dimension_numbers<[2], [2], [1], [1], [0, 0, 0, 1, 1, 1], [0], [0]>} : vector<2x8x8xbf16>, vector<2x8x8xbf16>, vector<2x8x8xf32> -> vector<2x8x8xf32>
    "tpu.trace_stop"() : () -> ()
    %39 = vector.shape_cast %12 : vector<8x8xf32> to vector<1x8x8xf32>
    %40 = vector.broadcast %39 : vector<1x8x8xf32> to vector<2x8x8xf32>
    %41 = arith.addf %38, %40 : vector<2x8x8xf32>
    %cst_18 = arith.constant dense<0xFF800000> : vector<2x8xf32>
    %42 = vector.multi_reduction <maximumf>, %41, %cst_18 [2] : vector<2x8x8xf32> to vector<2x8xf32>
    %43 = vector.shape_cast %42 : vector<2x8xf32> to vector<2x8x1xf32>
    %44 = vector.broadcast %43 : vector<2x8x1xf32> to vector<2x8x8xf32>
    %45 = arith.subf %41, %44 : vector<2x8x8xf32>
    %46 = math.exp %45 : vector<2x8x8xf32>
    %cst_19 = arith.constant dense<0.000000e+00> : vector<2x8xf32>
    %47 = vector.multi_reduction <add>, %46, %cst_19 [2] : vector<2x8x8xf32> to vector<2x8xf32>
    %48 = vector.shape_cast %47 : vector<2x8xf32> to vector<2x8x1xf32>
    %49 = tpu.reciprocal %48 {approx = true} : vector<2x8x1xf32> -> vector<2x8x1xf32>
    %50 = vector.broadcast %49 : vector<2x8x1xf32> to vector<2x8x8xf32>
    %51 = arith.mulf %46, %50 : vector<2x8x8xf32>
    %52 = arith.truncf %51 : vector<2x8x8xf32> to vector<2x8x8xbf16>
    %53 = vector.extract_strided_slice %35 {offsets = [0, 0, 0], sizes = [2, 8, 8], strides = [1, 1, 1]} : vector<2x8x32xbf16> to vector<2x8x8xbf16>
    "tpu.trace_start"() <{level = 10 : i32, message = "bqk,bkd->bqd"}> : () -> ()
    %cst_20 = arith.constant dense<0.000000e+00> : vector<2x8x8xf32>
    %54 = tpu.matmul %52, %53, %cst_20 {dimension_numbers = #tpu.dot_dimension_numbers<[2], [1], [1], [2], [0, 0, 0, 1, 1, 2], [0], [0]>} : vector<2x8x8xbf16>, vector<2x8x8xbf16>, vector<2x8x8xf32> -> vector<2x8x8xf32>
    "tpu.trace_stop"() : () -> ()
    %55 = vector.extract_strided_slice %31 {offsets = [0, 0, 8], sizes = [2, 8, 8], strides = [1, 1, 1]} : vector<2x8x32xbf16> to vector<2x8x8xbf16>
    %56 = vector.extract_strided_slice %33 {offsets = [0, 0, 8], sizes = [2, 8, 8], strides = [1, 1, 1]} : vector<2x8x32xbf16> to vector<2x8x8xbf16>
    "tpu.trace_start"() <{level = 10 : i32, message = "bqd,bkd->bqk"}> : () -> ()
    %cst_21 = arith.constant dense<0.000000e+00> : vector<2x8x8xf32>
    %57 = tpu.matmul %55, %56, %cst_21 {dimension_numbers = #tpu.dot_dimension_numbers<[2], [2], [1], [1], [0, 0, 0, 1, 1, 1], [0], [0]>} : vector<2x8x8xbf16>, vector<2x8x8xbf16>, vector<2x8x8xf32> -> vector<2x8x8xf32>
    "tpu.trace_stop"() : () -> ()
    %58 = vector.shape_cast %12 : vector<8x8xf32> to vector<1x8x8xf32>
    %59 = vector.broadcast %58 : vector<1x8x8xf32> to vector<2x8x8xf32>
    %60 = arith.addf %57, %59 : vector<2x8x8xf32>
    %cst_22 = arith.constant dense<0xFF800000> : vector<2x8xf32>
    %61 = vector.multi_reduction <maximumf>, %60, %cst_22 [2] : vector<2x8x8xf32> to vector<2x8xf32>
    %62 = vector.shape_cast %61 : vector<2x8xf32> to vector<2x8x1xf32>
    %63 = vector.broadcast %62 : vector<2x8x1xf32> to vector<2x8x8xf32>
    %64 = arith.subf %60, %63 : vector<2x8x8xf32>
    %65 = math.exp %64 : vector<2x8x8xf32>
    %cst_23 = arith.constant dense<0.000000e+00> : vector<2x8xf32>
    %66 = vector.multi_reduction <add>, %65, %cst_23 [2] : vector<2x8x8xf32> to vector<2x8xf32>
    %67 = vector.shape_cast %66 : vector<2x8xf32> to vector<2x8x1xf32>
    %68 = tpu.reciprocal %67 {approx = true} : vector<2x8x1xf32> -> vector<2x8x1xf32>
    %69 = vector.broadcast %68 : vector<2x8x1xf32> to vector<2x8x8xf32>
    %70 = arith.mulf %65, %69 : vector<2x8x8xf32>
    %71 = arith.truncf %70 : vector<2x8x8xf32> to vector<2x8x8xbf16>
    %72 = vector.extract_strided_slice %35 {offsets = [0, 0, 8], sizes = [2, 8, 8], strides = [1, 1, 1]} : vector<2x8x32xbf16> to vector<2x8x8xbf16>
    "tpu.trace_start"() <{level = 10 : i32, message = "bqk,bkd->bqd"}> : () -> ()
    %cst_24 = arith.constant dense<0.000000e+00> : vector<2x8x8xf32>
    %73 = tpu.matmul %71, %72, %cst_24 {dimension_numbers = #tpu.dot_dimension_numbers<[2], [1], [1], [2], [0, 0, 0, 1, 1, 2], [0], [0]>} : vector<2x8x8xbf16>, vector<2x8x8xbf16>, vector<2x8x8xf32> -> vector<2x8x8xf32>
    "tpu.trace_stop"() : () -> ()
    %74 = vector.extract_strided_slice %31 {offsets = [0, 0, 16], sizes = [2, 8, 8], strides = [1, 1, 1]} : vector<2x8x32xbf16> to vector<2x8x8xbf16>
    %75 = vector.extract_strided_slice %33 {offsets = [0, 0, 16], sizes = [2, 8, 8], strides = [1, 1, 1]} : vector<2x8x32xbf16> to vector<2x8x8xbf16>
    "tpu.trace_start"() <{level = 10 : i32, message = "bqd,bkd->bqk"}> : () -> ()
    %cst_25 = arith.constant dense<0.000000e+00> : vector<2x8x8xf32>
    %76 = tpu.matmul %74, %75, %cst_25 {dimension_numbers = #tpu.dot_dimension_numbers<[2], [2], [1], [1], [0, 0, 0, 1, 1, 1], [0], [0]>} : vector<2x8x8xbf16>, vector<2x8x8xbf16>, vector<2x8x8xf32> -> vector<2x8x8xf32>
    "tpu.trace_stop"() : () -> ()
    %77 = vector.shape_cast %12 : vector<8x8xf32> to vector<1x8x8xf32>
    %78 = vector.broadcast %77 : vector<1x8x8xf32> to vector<2x8x8xf32>
    %79 = arith.addf %76, %78 : vector<2x8x8xf32>
    %cst_26 = arith.constant dense<0xFF800000> : vector<2x8xf32>
    %80 = vector.multi_reduction <maximumf>, %79, %cst_26 [2] : vector<2x8x8xf32> to vector<2x8xf32>
    %81 = vector.shape_cast %80 : vector<2x8xf32> to vector<2x8x1xf32>
    %82 = vector.broadcast %81 : vector<2x8x1xf32> to vector<2x8x8xf32>
    %83 = arith.subf %79, %82 : vector<2x8x8xf32>
    %84 = math.exp %83 : vector<2x8x8xf32>
    %cst_27 = arith.constant dense<0.000000e+00> : vector<2x8xf32>
    %85 = vector.multi_reduction <add>, %84, %cst_27 [2] : vector<2x8x8xf32> to vector<2x8xf32>
    %86 = vector.shape_cast %85 : vector<2x8xf32> to vector<2x8x1xf32>
    %87 = tpu.reciprocal %86 {approx = true} : vector<2x8x1xf32> -> vector<2x8x1xf32>
    %88 = vector.broadcast %87 : vector<2x8x1xf32> to vector<2x8x8xf32>
    %89 = arith.mulf %84, %88 : vector<2x8x8xf32>
    %90 = arith.truncf %89 : vector<2x8x8xf32> to vector<2x8x8xbf16>
    %91 = vector.extract_strided_slice %35 {offsets = [0, 0, 16], sizes = [2, 8, 8], strides = [1, 1, 1]} : vector<2x8x32xbf16> to vector<2x8x8xbf16>
    "tpu.trace_start"() <{level = 10 : i32, message = "bqk,bkd->bqd"}> : () -> ()
    %cst_28 = arith.constant dense<0.000000e+00> : vector<2x8x8xf32>
    %92 = tpu.matmul %90, %91, %cst_28 {dimension_numbers = #tpu.dot_dimension_numbers<[2], [1], [1], [2], [0, 0, 0, 1, 1, 2], [0], [0]>} : vector<2x8x8xbf16>, vector<2x8x8xbf16>, vector<2x8x8xf32> -> vector<2x8x8xf32>
    "tpu.trace_stop"() : () -> ()
    %93 = vector.extract_strided_slice %31 {offsets = [0, 0, 24], sizes = [2, 8, 8], strides = [1, 1, 1]} : vector<2x8x32xbf16> to vector<2x8x8xbf16>
    %94 = vector.extract_strided_slice %33 {offsets = [0, 0, 24], sizes = [2, 8, 8], strides = [1, 1, 1]} : vector<2x8x32xbf16> to vector<2x8x8xbf16>
    "tpu.trace_start"() <{level = 10 : i32, message = "bqd,bkd->bqk"}> : () -> ()
    %cst_29 = arith.constant dense<0.000000e+00> : vector<2x8x8xf32>
    %95 = tpu.matmul %93, %94, %cst_29 {dimension_numbers = #tpu.dot_dimension_numbers<[2], [2], [1], [1], [0, 0, 0, 1, 1, 1], [0], [0]>} : vector<2x8x8xbf16>, vector<2x8x8xbf16>, vector<2x8x8xf32> -> vector<2x8x8xf32>
    "tpu.trace_stop"() : () -> ()
    %96 = vector.shape_cast %12 : vector<8x8xf32> to vector<1x8x8xf32>
    %97 = vector.broadcast %96 : vector<1x8x8xf32> to vector<2x8x8xf32>
    %98 = arith.addf %95, %97 : vector<2x8x8xf32>
    %cst_30 = arith.constant dense<0xFF800000> : vector<2x8xf32>
    %99 = vector.multi_reduction <maximumf>, %98, %cst_30 [2] : vector<2x8x8xf32> to vector<2x8xf32>
    %100 = vector.shape_cast %99 : vector<2x8xf32> to vector<2x8x1xf32>
    %101 = vector.broadcast %100 : vector<2x8x1xf32> to vector<2x8x8xf32>
    %102 = arith.subf %98, %101 : vector<2x8x8xf32>
    %103 = math.exp %102 : vector<2x8x8xf32>
    %cst_31 = arith.constant dense<0.000000e+00> : vector<2x8xf32>
    %104 = vector.multi_reduction <add>, %103, %cst_31 [2] : vector<2x8x8xf32> to vector<2x8xf32>
    %105 = vector.shape_cast %104 : vector<2x8xf32> to vector<2x8x1xf32>
    %106 = tpu.reciprocal %105 {approx = true} : vector<2x8x1xf32> -> vector<2x8x1xf32>
    %107 = vector.broadcast %106 : vector<2x8x1xf32> to vector<2x8x8xf32>
    %108 = arith.mulf %103, %107 : vector<2x8x8xf32>
    %109 = arith.truncf %108 : vector<2x8x8xf32> to vector<2x8x8xbf16>
    %110 = vector.extract_strided_slice %35 {offsets = [0, 0, 24], sizes = [2, 8, 8], strides = [1, 1, 1]} : vector<2x8x32xbf16> to vector<2x8x8xbf16>
    "tpu.trace_start"() <{level = 10 : i32, message = "bqk,bkd->bqd"}> : () -> ()
    %cst_32 = arith.constant dense<0.000000e+00> : vector<2x8x8xf32>
    %111 = tpu.matmul %109, %110, %cst_32 {dimension_numbers = #tpu.dot_dimension_numbers<[2], [1], [1], [2], [0, 0, 0, 1, 1, 2], [0], [0]>} : vector<2x8x8xbf16>, vector<2x8x8xbf16>, vector<2x8x8xf32> -> vector<2x8x8xf32>
    "tpu.trace_stop"() : () -> ()
    %112 = tpu.concatenate %54, %73, %92, %111 in 2 : vector<2x8x8xf32>, vector<2x8x8xf32>, vector<2x8x8xf32>, vector<2x8x8xf32> -> vector<2x8x32xf32>
    %113 = vector.shape_cast %112 : vector<2x8x32xf32> to vector<16x32xf32>
    %114 = arith.truncf %113 : vector<16x32xf32> to vector<16x32xbf16>
    %c0_33 = arith.constant 0 : index
    %c0_34 = arith.constant 0 : index
    %c0_35 = arith.constant 0 : index
    %115 = vector.load %arg6[%c0_33, %c0_34, %c0_35] : memref<1x32x32xbf16, #tpu.memory_space<vmem>>, vector<1x32x32xbf16>
    %116 = vector.shape_cast %115 : vector<1x32x32xbf16> to vector<32x32xbf16>
    %cst_36 = arith.constant dense<0.000000e+00> : vector<16x32xf32>
    %117 = tpu.matmul %114, %116, %cst_36 {dimension_numbers = #tpu.dot_dimension_numbers<[1], [0], [0], [1], [0, 0, 1, 1], [], []>} : vector<16x32xbf16>, vector<32x32xbf16>, vector<16x32xf32> -> vector<16x32xf32>
    %c0_37 = arith.constant 0 : index
    %c0_38 = arith.constant 0 : index
    %c0_39 = arith.constant 0 : index
    %118 = vector.load %arg7[%c0_37, %c0_38, %c0_39] : memref<1x1x32xf32, #tpu.memory_space<vmem>>, vector<1x1x32xf32>
    %119 = vector.shape_cast %118 : vector<1x1x32xf32> to vector<1x32xf32>
    %120 = vector.broadcast %119 : vector<1x32xf32> to vector<16x32xf32>
    %121 = arith.addf %117, %120 : vector<16x32xf32>
    %122 = arith.addf %3, %121 : vector<16x32xf32>
    %123 = vector.extract_strided_slice %6 {offsets = [0, 0], sizes = [1, 32], strides = [1, 1]} : vector<4x32xf32> to vector<1x32xf32>
    %124 = vector.extract_strided_slice %6 {offsets = [1, 0], sizes = [1, 32], strides = [1, 1]} : vector<4x32xf32> to vector<1x32xf32>
    %cst_40 = arith.constant dense<0.000000e+00> : vector<16xf32>
    %125 = vector.multi_reduction <add>, %122, %cst_40 [1] : vector<16x32xf32> to vector<16xf32>
    %126 = vector.shape_cast %125 : vector<16xf32> to vector<16x1xf32>
    %cst_41 = arith.constant 3.200000e+01 : f32
    %127 = vector.broadcast %cst_41 : f32 to vector<16x1xf32>
    %128 = arith.divf %126, %127 : vector<16x1xf32>
    %129 = vector.broadcast %128 : vector<16x1xf32> to vector<16x32xf32>
    %130 = arith.subf %122, %129 : vector<16x32xf32>
    %131 = arith.mulf %130, %130 : vector<16x32xf32>
    %cst_42 = arith.constant dense<0.000000e+00> : vector<16xf32>
    %132 = vector.multi_reduction <add>, %131, %cst_42 [1] : vector<16x32xf32> to vector<16xf32>
    %133 = vector.shape_cast %132 : vector<16xf32> to vector<16x1xf32>
    %cst_43 = arith.constant 3.200000e+01 : f32
    %134 = vector.broadcast %cst_43 : f32 to vector<16x1xf32>
    %135 = arith.divf %133, %134 : vector<16x1xf32>
    %136 = vector.broadcast %128 : vector<16x1xf32> to vector<16x32xf32>
    %137 = arith.subf %122, %136 : vector<16x32xf32>
    %cst_44 = arith.constant 9.99999974E-6 : f32
    %138 = vector.broadcast %cst_44 : f32 to vector<16x1xf32>
    %139 = arith.addf %135, %138 : vector<16x1xf32>
    %140 = math.rsqrt %139 : vector<16x1xf32>
    %141 = vector.broadcast %140 : vector<16x1xf32> to vector<16x32xf32>
    %142 = arith.mulf %137, %141 : vector<16x32xf32>
    %143 = vector.broadcast %123 : vector<1x32xf32> to vector<16x32xf32>
    %144 = arith.mulf %142, %143 : vector<16x32xf32>
    %145 = vector.broadcast %124 : vector<1x32xf32> to vector<16x32xf32>
    %146 = arith.addf %144, %145 : vector<16x32xf32>
    %c0_45 = arith.constant 0 : index
    %c0_46 = arith.constant 0 : index
    %c0_47 = arith.constant 0 : index
    %147 = vector.load %arg8[%c0_45, %c0_46, %c0_47] : memref<1x32x96xbf16, #tpu.memory_space<vmem>>, vector<1x32x96xbf16>
    %148 = vector.shape_cast %147 : vector<1x32x96xbf16> to vector<32x96xbf16>
    %c0_48 = arith.constant 0 : index
    %c0_49 = arith.constant 0 : index
    %c0_50 = arith.constant 0 : index
    %149 = vector.load %arg9[%c0_48, %c0_49, %c0_50] : memref<1x1x96xf32, #tpu.memory_space<vmem>>, vector<1x1x96xf32>
    %150 = vector.shape_cast %149 : vector<1x1x96xf32> to vector<1x96xf32>
    %151 = arith.truncf %146 : vector<16x32xf32> to vector<16x32xbf16>
    %152 = vector.extract_strided_slice %148 {offsets = [0, 0], sizes = [32, 32], strides = [1, 1]} : vector<32x96xbf16> to vector<32x32xbf16>
    %cst_51 = arith.constant dense<0.000000e+00> : vector<16x32xf32>
    %153 = tpu.matmul %151, %152, %cst_51 {dimension_numbers = #tpu.dot_dimension_numbers<[1], [0], [0], [1], [0, 0, 1, 1], [], []>} : vector<16x32xbf16>, vector<32x32xbf16>, vector<16x32xf32> -> vector<16x32xf32>
    %154 = vector.extract_strided_slice %150 {offsets = [0, 0], sizes = [1, 32], strides = [1, 1]} : vector<1x96xf32> to vector<1x32xf32>
    %155 = vector.broadcast %154 : vector<1x32xf32> to vector<16x32xf32>
    %156 = arith.addf %153, %155 : vector<16x32xf32>
    %157 = arith.truncf %4 : vector<32x32xf32> to vector<32x32xbf16>
    %158 = vector.extract_strided_slice %148 {offsets = [0, 32], sizes = [32, 64], strides = [1, 1]} : vector<32x96xbf16> to vector<32x64xbf16>
    %cst_52 = arith.constant dense<0.000000e+00> : vector<32x64xf32>
    %159 = tpu.matmul %157, %158, %cst_52 {dimension_numbers = #tpu.dot_dimension_numbers<[1], [0], [0], [1], [0, 0, 1, 1], [], []>} : vector<32x32xbf16>, vector<32x64xbf16>, vector<32x64xf32> -> vector<32x64xf32>
    %160 = vector.extract_strided_slice %150 {offsets = [0, 32], sizes = [1, 64], strides = [1, 1]} : vector<1x96xf32> to vector<1x64xf32>
    %161 = vector.broadcast %160 : vector<1x64xf32> to vector<32x64xf32>
    %162 = arith.addf %159, %161 : vector<32x64xf32>
    %163 = vector.extract_strided_slice %162 {offsets = [0, 0], sizes = [32, 32], strides = [1, 1]} : vector<32x64xf32> to vector<32x32xf32>
    %164 = vector.extract_strided_slice %162 {offsets = [0, 32], sizes = [32, 32], strides = [1, 1]} : vector<32x64xf32> to vector<32x32xf32>
    %165 = vector.shape_cast %156 : vector<16x32xf32> to vector<2x8x32xf32>
    %166 = arith.truncf %165 : vector<2x8x32xf32> to vector<2x8x32xbf16>
    %167 = vector.shape_cast %163 : vector<32x32xf32> to vector<2x16x32xf32>
    %168 = arith.truncf %167 : vector<2x16x32xf32> to vector<2x16x32xbf16>
    %169 = vector.shape_cast %164 : vector<32x32xf32> to vector<2x16x32xf32>
    %170 = arith.truncf %169 : vector<2x16x32xf32> to vector<2x16x32xbf16>
    %171 = vector.extract_strided_slice %166 {offsets = [0, 0, 0], sizes = [2, 8, 8], strides = [1, 1, 1]} : vector<2x8x32xbf16> to vector<2x8x8xbf16>
    %172 = vector.extract_strided_slice %168 {offsets = [0, 0, 0], sizes = [2, 16, 8], strides = [1, 1, 1]} : vector<2x16x32xbf16> to vector<2x16x8xbf16>
    "tpu.trace_start"() <{level = 10 : i32, message = "bqd,bkd->bqk"}> : () -> ()
    %cst_53 = arith.constant dense<0.000000e+00> : vector<2x8x16xf32>
    %173 = tpu.matmul %171, %172, %cst_53 {dimension_numbers = #tpu.dot_dimension_numbers<[2], [2], [1], [1], [0, 0, 0, 1, 1, 1], [0], [0]>} : vector<2x8x8xbf16>, vector<2x16x8xbf16>, vector<2x8x16xf32> -> vector<2x8x16xf32>
    "tpu.trace_stop"() : () -> ()
    %174 = vector.shape_cast %18 : vector<1x16xf32> to vector<1x1x16xf32>
    %175 = vector.broadcast %174 : vector<1x1x16xf32> to vector<2x8x16xf32>
    %176 = arith.addf %173, %175 : vector<2x8x16xf32>
    %cst_54 = arith.constant dense<0xFF800000> : vector<2x8xf32>
    %177 = vector.multi_reduction <maximumf>, %176, %cst_54 [2] : vector<2x8x16xf32> to vector<2x8xf32>
    %178 = vector.shape_cast %177 : vector<2x8xf32> to vector<2x8x1xf32>
    %179 = vector.broadcast %178 : vector<2x8x1xf32> to vector<2x8x16xf32>
    %180 = arith.subf %176, %179 : vector<2x8x16xf32>
    %181 = math.exp %180 : vector<2x8x16xf32>
    %cst_55 = arith.constant dense<0.000000e+00> : vector<2x8xf32>
    %182 = vector.multi_reduction <add>, %181, %cst_55 [2] : vector<2x8x16xf32> to vector<2x8xf32>
    %183 = vector.shape_cast %182 : vector<2x8xf32> to vector<2x8x1xf32>
    %184 = tpu.reciprocal %183 {approx = true} : vector<2x8x1xf32> -> vector<2x8x1xf32>
    %185 = vector.broadcast %184 : vector<2x8x1xf32> to vector<2x8x16xf32>
    %186 = arith.mulf %181, %185 : vector<2x8x16xf32>
    %187 = arith.truncf %186 : vector<2x8x16xf32> to vector<2x8x16xbf16>
    %188 = vector.extract_strided_slice %170 {offsets = [0, 0, 0], sizes = [2, 16, 8], strides = [1, 1, 1]} : vector<2x16x32xbf16> to vector<2x16x8xbf16>
    "tpu.trace_start"() <{level = 10 : i32, message = "bqk,bkd->bqd"}> : () -> ()
    %cst_56 = arith.constant dense<0.000000e+00> : vector<2x8x8xf32>
    %189 = tpu.matmul %187, %188, %cst_56 {dimension_numbers = #tpu.dot_dimension_numbers<[2], [1], [1], [2], [0, 0, 0, 1, 1, 2], [0], [0]>} : vector<2x8x16xbf16>, vector<2x16x8xbf16>, vector<2x8x8xf32> -> vector<2x8x8xf32>
    "tpu.trace_stop"() : () -> ()
    %190 = vector.extract_strided_slice %166 {offsets = [0, 0, 8], sizes = [2, 8, 8], strides = [1, 1, 1]} : vector<2x8x32xbf16> to vector<2x8x8xbf16>
    %191 = vector.extract_strided_slice %168 {offsets = [0, 0, 8], sizes = [2, 16, 8], strides = [1, 1, 1]} : vector<2x16x32xbf16> to vector<2x16x8xbf16>
    "tpu.trace_start"() <{level = 10 : i32, message = "bqd,bkd->bqk"}> : () -> ()
    %cst_57 = arith.constant dense<0.000000e+00> : vector<2x8x16xf32>
    %192 = tpu.matmul %190, %191, %cst_57 {dimension_numbers = #tpu.dot_dimension_numbers<[2], [2], [1], [1], [0, 0, 0, 1, 1, 1], [0], [0]>} : vector<2x8x8xbf16>, vector<2x16x8xbf16>, vector<2x8x16xf32> -> vector<2x8x16xf32>
    "tpu.trace_stop"() : () -> ()
    %193 = vector.shape_cast %18 : vector<1x16xf32> to vector<1x1x16xf32>
    %194 = vector.broadcast %193 : vector<1x1x16xf32> to vector<2x8x16xf32>
    %195 = arith.addf %192, %194 : vector<2x8x16xf32>
    %cst_58 = arith.constant dense<0xFF800000> : vector<2x8xf32>
    %196 = vector.multi_reduction <maximumf>, %195, %cst_58 [2] : vector<2x8x16xf32> to vector<2x8xf32>
    %197 = vector.shape_cast %196 : vector<2x8xf32> to vector<2x8x1xf32>
    %198 = vector.broadcast %197 : vector<2x8x1xf32> to vector<2x8x16xf32>
    %199 = arith.subf %195, %198 : vector<2x8x16xf32>
    %200 = math.exp %199 : vector<2x8x16xf32>
    %cst_59 = arith.constant dense<0.000000e+00> : vector<2x8xf32>
    %201 = vector.multi_reduction <add>, %200, %cst_59 [2] : vector<2x8x16xf32> to vector<2x8xf32>
    %202 = vector.shape_cast %201 : vector<2x8xf32> to vector<2x8x1xf32>
    %203 = tpu.reciprocal %202 {approx = true} : vector<2x8x1xf32> -> vector<2x8x1xf32>
    %204 = vector.broadcast %203 : vector<2x8x1xf32> to vector<2x8x16xf32>
    %205 = arith.mulf %200, %204 : vector<2x8x16xf32>
    %206 = arith.truncf %205 : vector<2x8x16xf32> to vector<2x8x16xbf16>
    %207 = vector.extract_strided_slice %170 {offsets = [0, 0, 8], sizes = [2, 16, 8], strides = [1, 1, 1]} : vector<2x16x32xbf16> to vector<2x16x8xbf16>
    "tpu.trace_start"() <{level = 10 : i32, message = "bqk,bkd->bqd"}> : () -> ()
    %cst_60 = arith.constant dense<0.000000e+00> : vector<2x8x8xf32>
    %208 = tpu.matmul %206, %207, %cst_60 {dimension_numbers = #tpu.dot_dimension_numbers<[2], [1], [1], [2], [0, 0, 0, 1, 1, 2], [0], [0]>} : vector<2x8x16xbf16>, vector<2x16x8xbf16>, vector<2x8x8xf32> -> vector<2x8x8xf32>
    "tpu.trace_stop"() : () -> ()
    %209 = vector.extract_strided_slice %166 {offsets = [0, 0, 16], sizes = [2, 8, 8], strides = [1, 1, 1]} : vector<2x8x32xbf16> to vector<2x8x8xbf16>
    %210 = vector.extract_strided_slice %168 {offsets = [0, 0, 16], sizes = [2, 16, 8], strides = [1, 1, 1]} : vector<2x16x32xbf16> to vector<2x16x8xbf16>
    "tpu.trace_start"() <{level = 10 : i32, message = "bqd,bkd->bqk"}> : () -> ()
    %cst_61 = arith.constant dense<0.000000e+00> : vector<2x8x16xf32>
    %211 = tpu.matmul %209, %210, %cst_61 {dimension_numbers = #tpu.dot_dimension_numbers<[2], [2], [1], [1], [0, 0, 0, 1, 1, 1], [0], [0]>} : vector<2x8x8xbf16>, vector<2x16x8xbf16>, vector<2x8x16xf32> -> vector<2x8x16xf32>
    "tpu.trace_stop"() : () -> ()
    %212 = vector.shape_cast %18 : vector<1x16xf32> to vector<1x1x16xf32>
    %213 = vector.broadcast %212 : vector<1x1x16xf32> to vector<2x8x16xf32>
    %214 = arith.addf %211, %213 : vector<2x8x16xf32>
    %cst_62 = arith.constant dense<0xFF800000> : vector<2x8xf32>
    %215 = vector.multi_reduction <maximumf>, %214, %cst_62 [2] : vector<2x8x16xf32> to vector<2x8xf32>
    %216 = vector.shape_cast %215 : vector<2x8xf32> to vector<2x8x1xf32>
    %217 = vector.broadcast %216 : vector<2x8x1xf32> to vector<2x8x16xf32>
    %218 = arith.subf %214, %217 : vector<2x8x16xf32>
    %219 = math.exp %218 : vector<2x8x16xf32>
    %cst_63 = arith.constant dense<0.000000e+00> : vector<2x8xf32>
    %220 = vector.multi_reduction <add>, %219, %cst_63 [2] : vector<2x8x16xf32> to vector<2x8xf32>
    %221 = vector.shape_cast %220 : vector<2x8xf32> to vector<2x8x1xf32>
    %222 = tpu.reciprocal %221 {approx = true} : vector<2x8x1xf32> -> vector<2x8x1xf32>
    %223 = vector.broadcast %222 : vector<2x8x1xf32> to vector<2x8x16xf32>
    %224 = arith.mulf %219, %223 : vector<2x8x16xf32>
    %225 = arith.truncf %224 : vector<2x8x16xf32> to vector<2x8x16xbf16>
    %226 = vector.extract_strided_slice %170 {offsets = [0, 0, 16], sizes = [2, 16, 8], strides = [1, 1, 1]} : vector<2x16x32xbf16> to vector<2x16x8xbf16>
    "tpu.trace_start"() <{level = 10 : i32, message = "bqk,bkd->bqd"}> : () -> ()
    %cst_64 = arith.constant dense<0.000000e+00> : vector<2x8x8xf32>
    %227 = tpu.matmul %225, %226, %cst_64 {dimension_numbers = #tpu.dot_dimension_numbers<[2], [1], [1], [2], [0, 0, 0, 1, 1, 2], [0], [0]>} : vector<2x8x16xbf16>, vector<2x16x8xbf16>, vector<2x8x8xf32> -> vector<2x8x8xf32>
    "tpu.trace_stop"() : () -> ()
    %228 = vector.extract_strided_slice %166 {offsets = [0, 0, 24], sizes = [2, 8, 8], strides = [1, 1, 1]} : vector<2x8x32xbf16> to vector<2x8x8xbf16>
    %229 = vector.extract_strided_slice %168 {offsets = [0, 0, 24], sizes = [2, 16, 8], strides = [1, 1, 1]} : vector<2x16x32xbf16> to vector<2x16x8xbf16>
    "tpu.trace_start"() <{level = 10 : i32, message = "bqd,bkd->bqk"}> : () -> ()
    %cst_65 = arith.constant dense<0.000000e+00> : vector<2x8x16xf32>
    %230 = tpu.matmul %228, %229, %cst_65 {dimension_numbers = #tpu.dot_dimension_numbers<[2], [2], [1], [1], [0, 0, 0, 1, 1, 1], [0], [0]>} : vector<2x8x8xbf16>, vector<2x16x8xbf16>, vector<2x8x16xf32> -> vector<2x8x16xf32>
    "tpu.trace_stop"() : () -> ()
    %231 = vector.shape_cast %18 : vector<1x16xf32> to vector<1x1x16xf32>
    %232 = vector.broadcast %231 : vector<1x1x16xf32> to vector<2x8x16xf32>
    %233 = arith.addf %230, %232 : vector<2x8x16xf32>
    %cst_66 = arith.constant dense<0xFF800000> : vector<2x8xf32>
    %234 = vector.multi_reduction <maximumf>, %233, %cst_66 [2] : vector<2x8x16xf32> to vector<2x8xf32>
    %235 = vector.shape_cast %234 : vector<2x8xf32> to vector<2x8x1xf32>
    %236 = vector.broadcast %235 : vector<2x8x1xf32> to vector<2x8x16xf32>
    %237 = arith.subf %233, %236 : vector<2x8x16xf32>
    %238 = math.exp %237 : vector<2x8x16xf32>
    %cst_67 = arith.constant dense<0.000000e+00> : vector<2x8xf32>
    %239 = vector.multi_reduction <add>, %238, %cst_67 [2] : vector<2x8x16xf32> to vector<2x8xf32>
    %240 = vector.shape_cast %239 : vector<2x8xf32> to vector<2x8x1xf32>
    %241 = tpu.reciprocal %240 {approx = true} : vector<2x8x1xf32> -> vector<2x8x1xf32>
    %242 = vector.broadcast %241 : vector<2x8x1xf32> to vector<2x8x16xf32>
    %243 = arith.mulf %238, %242 : vector<2x8x16xf32>
    %244 = arith.truncf %243 : vector<2x8x16xf32> to vector<2x8x16xbf16>
    %245 = vector.extract_strided_slice %170 {offsets = [0, 0, 24], sizes = [2, 16, 8], strides = [1, 1, 1]} : vector<2x16x32xbf16> to vector<2x16x8xbf16>
    "tpu.trace_start"() <{level = 10 : i32, message = "bqk,bkd->bqd"}> : () -> ()
    %cst_68 = arith.constant dense<0.000000e+00> : vector<2x8x8xf32>
    %246 = tpu.matmul %244, %245, %cst_68 {dimension_numbers = #tpu.dot_dimension_numbers<[2], [1], [1], [2], [0, 0, 0, 1, 1, 2], [0], [0]>} : vector<2x8x16xbf16>, vector<2x16x8xbf16>, vector<2x8x8xf32> -> vector<2x8x8xf32>
    "tpu.trace_stop"() : () -> ()
    %247 = tpu.concatenate %189, %208, %227, %246 in 2 : vector<2x8x8xf32>, vector<2x8x8xf32>, vector<2x8x8xf32>, vector<2x8x8xf32> -> vector<2x8x32xf32>
    %248 = vector.shape_cast %247 : vector<2x8x32xf32> to vector<16x32xf32>
    %249 = arith.truncf %248 : vector<16x32xf32> to vector<16x32xbf16>
    %c0_69 = arith.constant 0 : index
    %c0_70 = arith.constant 0 : index
    %c0_71 = arith.constant 0 : index
    %250 = vector.load %arg10[%c0_69, %c0_70, %c0_71] : memref<1x32x32xbf16, #tpu.memory_space<vmem>>, vector<1x32x32xbf16>
    %251 = vector.shape_cast %250 : vector<1x32x32xbf16> to vector<32x32xbf16>
    %cst_72 = arith.constant dense<0.000000e+00> : vector<16x32xf32>
    %252 = tpu.matmul %249, %251, %cst_72 {dimension_numbers = #tpu.dot_dimension_numbers<[1], [0], [0], [1], [0, 0, 1, 1], [], []>} : vector<16x32xbf16>, vector<32x32xbf16>, vector<16x32xf32> -> vector<16x32xf32>
    %c0_73 = arith.constant 0 : index
    %c0_74 = arith.constant 0 : index
    %c0_75 = arith.constant 0 : index
    %253 = vector.load %arg11[%c0_73, %c0_74, %c0_75] : memref<1x1x32xf32, #tpu.memory_space<vmem>>, vector<1x1x32xf32>
    %254 = vector.shape_cast %253 : vector<1x1x32xf32> to vector<1x32xf32>
    %255 = vector.broadcast %254 : vector<1x32xf32> to vector<16x32xf32>
    %256 = arith.addf %252, %255 : vector<16x32xf32>
    %257 = arith.addf %146, %256 : vector<16x32xf32>
    %258 = vector.extract_strided_slice %6 {offsets = [2, 0], sizes = [1, 32], strides = [1, 1]} : vector<4x32xf32> to vector<1x32xf32>
    %259 = vector.extract_strided_slice %6 {offsets = [3, 0], sizes = [1, 32], strides = [1, 1]} : vector<4x32xf32> to vector<1x32xf32>
    %cst_76 = arith.constant dense<0.000000e+00> : vector<16xf32>
    %260 = vector.multi_reduction <add>, %257, %cst_76 [1] : vector<16x32xf32> to vector<16xf32>
    %261 = vector.shape_cast %260 : vector<16xf32> to vector<16x1xf32>
    %cst_77 = arith.constant 3.200000e+01 : f32
    %262 = vector.broadcast %cst_77 : f32 to vector<16x1xf32>
    %263 = arith.divf %261, %262 : vector<16x1xf32>
    %264 = vector.broadcast %263 : vector<16x1xf32> to vector<16x32xf32>
    %265 = arith.subf %257, %264 : vector<16x32xf32>
    %266 = arith.mulf %265, %265 : vector<16x32xf32>
    %cst_78 = arith.constant dense<0.000000e+00> : vector<16xf32>
    %267 = vector.multi_reduction <add>, %266, %cst_78 [1] : vector<16x32xf32> to vector<16xf32>
    %268 = vector.shape_cast %267 : vector<16xf32> to vector<16x1xf32>
    %cst_79 = arith.constant 3.200000e+01 : f32
    %269 = vector.broadcast %cst_79 : f32 to vector<16x1xf32>
    %270 = arith.divf %268, %269 : vector<16x1xf32>
    %271 = vector.broadcast %263 : vector<16x1xf32> to vector<16x32xf32>
    %272 = arith.subf %257, %271 : vector<16x32xf32>
    %cst_80 = arith.constant 9.99999974E-6 : f32
    %273 = vector.broadcast %cst_80 : f32 to vector<16x1xf32>
    %274 = arith.addf %270, %273 : vector<16x1xf32>
    %275 = math.rsqrt %274 : vector<16x1xf32>
    %276 = vector.broadcast %275 : vector<16x1xf32> to vector<16x32xf32>
    %277 = arith.mulf %272, %276 : vector<16x32xf32>
    %278 = vector.broadcast %258 : vector<1x32xf32> to vector<16x32xf32>
    %279 = arith.mulf %277, %278 : vector<16x32xf32>
    %280 = vector.broadcast %259 : vector<1x32xf32> to vector<16x32xf32>
    %281 = arith.addf %279, %280 : vector<16x32xf32>
    %c0_81 = arith.constant 0 : index
    %c0_82 = arith.constant 0 : index
    %282 = vector.load %arg13[%c0_81, %c0_82] : memref<16x32xf32, #tpu.memory_space<vmem>>, vector<16x32xf32>
    tpu.vector_store %arg13[%c0_81, %c0_82], %281 {strides = array<i32>} : memref<16x32xf32, #tpu.memory_space<vmem>>, vector<16x32xf32>,
    return
  }
  func.func @transform_0(%arg0: i32, %arg1: i32) -> (i32, i32) {
    %c0_i32 = arith.constant 0 : i32
    %c0_i32_0 = arith.constant 0 : i32
    return %arg0, %c0_i32 : i32, i32
  }
  func.func @transform_1(%arg0: i32, %arg1: i32) -> (i32, i32) {
    %c0_i32 = arith.constant 0 : i32
    %c0_i32_0 = arith.constant 0 : i32
    return %arg0, %c0_i32 : i32, i32
  }
  func.func @transform_2(%arg0: i32, %arg1: i32) -> (i32, i32, i32) {
    %c0_i32 = arith.constant 0 : i32
    %c0_i32_0 = arith.constant 0 : i32
    %c0_i32_1 = arith.constant 0 : i32
    return %arg1, %c0_i32, %c0_i32_0 : i32, i32, i32
  }
  func.func @transform_3(%arg0: i32, %arg1: i32) -> (i32, i32, i32) {
    %c0_i32 = arith.constant 0 : i32
    %c0_i32_0 = arith.constant 0 : i32
    %c0_i32_1 = arith.constant 0 : i32
    return %arg1, %c0_i32, %c0_i32_0 : i32, i32, i32
  }
  func.func @transform_4(%arg0: i32, %arg1: i32) -> (i32, i32, i32) {
    %c0_i32 = arith.constant 0 : i32
    %c0_i32_0 = arith.constant 0 : i32
    %c0_i32_1 = arith.constant 0 : i32
    return %arg1, %c0_i32, %c0_i32_0 : i32, i32, i32
  }
  func.func @transform_5(%arg0: i32, %arg1: i32) -> (i32, i32, i32) {
    %c0_i32 = arith.constant 0 : i32
    %c0_i32_0 = arith.constant 0 : i32
    %c0_i32_1 = arith.constant 0 : i32
    return %arg1, %c0_i32, %c0_i32_0 : i32, i32, i32
  }
  func.func @transform_6(%arg0: i32, %arg1: i32) -> (i32, i32, i32) {
    %c0_i32 = arith.constant 0 : i32
    %c0_i32_0 = arith.constant 0 : i32
    %c0_i32_1 = arith.constant 0 : i32
    return %arg1, %c0_i32, %c0_i32_0 : i32, i32, i32
  }
  func.func @transform_7(%arg0: i32, %arg1: i32) -> (i32, i32, i32) {
    %c0_i32 = arith.constant 0 : i32
    %c0_i32_0 = arith.constant 0 : i32
    %c0_i32_1 = arith.constant 0 : i32
    return %arg1, %c0_i32, %c0_i32_0 : i32, i32, i32
  }
  func.func @transform_8(%arg0: i32, %arg1: i32) -> (i32, i32, i32) {
    %c0_i32 = arith.constant 0 : i32
    %c0_i32_0 = arith.constant 0 : i32
    %c0_i32_1 = arith.constant 0 : i32
    return %arg1, %c0_i32, %c0_i32_0 : i32, i32, i32
  }
  func.func @transform_9(%arg0: i32, %arg1: i32) -> (i32, i32, i32) {
    %c0_i32 = arith.constant 0 : i32
    %c0_i32_0 = arith.constant 0 : i32
    %c0_i32_1 = arith.constant 0 : i32
    return %arg1, %c0_i32, %c0_i32_0 : i32, i32, i32
  }
  func.func @transform_10(%arg0: i32, %arg1: i32) -> (i32, i32, i32) {
    %c0_i32 = arith.constant 0 : i32
    %c0_i32_0 = arith.constant 0 : i32
    %c0_i32_1 = arith.constant 0 : i32
    return %arg1, %c0_i32, %c0_i32_0 : i32, i32, i32
  }
  func.func @transform_11(%arg0: i32, %arg1: i32) -> (i32, i32) {
    %c0_i32 = arith.constant 0 : i32
    %c0_i32_0 = arith.constant 0 : i32
    return %arg0, %c0_i32 : i32, i32
  }
}

</mosaic_0001>

<llo_original>
// kernel: tpu_custom_call.1
$region0: #{tpu_custom_call.1}
  #allocation0 [shape = 'u32[]', space=smem, size = 0x4, offset = 0x4, fixed_abs, tag = 'smem constant byte address 0x4 - core index']
  #allocation1 [shape = 'u32[144,128]{1,0:T(1,128)}', space=vmem, size = 0x12000, scoped, tag = 'internal scratch']
  %s0 = inlined_call_operand.hbm [shape: f32[16,32], index: 0, kind: input, shape index: {}]
  %s1 = inlined_call_operand.hbm [shape: f32[32,32], index: 1, kind: input, shape index: {}]
  %s2 = inlined_call_operand.hbm [shape: bf16[2,32,96], index: 2, kind: input, shape index: {}]
  %s3 = inlined_call_operand.vmem [shape: f32[2,1,96], index: 3, kind: input, shape index: {}]
  %s4 = inlined_call_operand.hbm [shape: bf16[2,32,32], index: 4, kind: input, shape index: {}]
  %s5 = inlined_call_operand.vmem [shape: f32[2,1,32], index: 5, kind: input, shape index: {}]
  %s6 = inlined_call_operand.hbm [shape: bf16[2,32,96], index: 6, kind: input, shape index: {}]
  %s7 = inlined_call_operand.vmem [shape: f32[2,1,96], index: 7, kind: input, shape index: {}]
  %s8 = inlined_call_operand.hbm [shape: bf16[2,32,32], index: 8, kind: input, shape index: {}]
  %s9 = inlined_call_operand.vmem [shape: f32[2,1,32], index: 9, kind: input, shape index: {}]
  %s10 = inlined_call_operand.vmem [shape: f32[2,4,32], index: 10, kind: input, shape index: {}]
  %s11 = inlined_call_operand.hbm [shape: f32[16,32], index: 11, kind: output, shape index: {}]
  %s12 = sld [smem:[#allocation0]]
  $region105: #{tpu_custom_call.1} parent=0
    _
  %s14 = ssub.s32 1, %s12
  %s15 = scalar_select 0, %s14, %s12
  $region1: #{tpu_custom_call.1} parent=0
    #allocation2 [shape = 'u8[8192]{0}', space=vmem, size = 0x2000, scoped, tag = 'input window, operand 0, single buffered']
    #allocation3 [shape = 's32[2]{0}', space=sflag, size = 0x8, scoped, tag = 'scoped memory for tpu_custom_call.1']
    #allocation4 [shape = 's32[2]{0}', space=sflag, size = 0x8, scoped, tag = 'scoped memory for tpu_custom_call.1']
    #allocation5 [shape = 'u8[16384]{0}', space=vmem, size = 0x4000, scoped, tag = 'input window, operand 1, single buffered']
    #allocation6 [shape = 's32[1]{0}', space=sflag, size = 0x4, scoped, tag = 'scoped memory for tpu_custom_call.1']
    #allocation7 [shape = 'u8[16384]{0}', space=vmem, size = 0x4000, scoped, tag = 'input window, operand 2']
    #allocation8 [shape = 'u8[16384]{0}', space=vmem, size = 0x4000, scoped, tag = 'input window, operand 4']
    #allocation9 [shape = 'u8[16384]{0}', space=vmem, size = 0x4000, scoped, tag = 'input window, operand 6']
    #allocation10 [shape = 'u8[16384]{0}', space=vmem, size = 0x4000, scoped, tag = 'input window, operand 8']
    #allocation11 [shape = 'u8[8192]{0}', space=vmem, size = 0x2000, scoped, tag = 'output window, operand 0, single buffered']
    %16 = vsyncpa [#allocation3], 0
    %17 = vsyncpa [#allocation6], 0
    %18 = vsyncpa [#allocation4], 0
    loop: start=0, step=1, limit=4
    $region2: #{tpu_custom_call.1} parent=1 // loop_pre_header
      _
    $region3: #{tpu_custom_call.1} parent=1 // loop_header
      %s20 = sphi 0, %s24
      %p21 = scmp.ge.s32.totalorder %s20, 4
      %s27 = sphi 0, %s39
      %s28 = sphi 0, %s35
      %s29 = sphi 0, %s27
      %s30 = sphi 0, %s28
      %s31 = sphi 0, %s29
      %s32 = sphi 0, %s30
      %s42 = sphi 0, %s44
      %s45 = sphi 0, %s42
      %s46 = sphi 0, %s45
      %s62 = sphi 0, %s46
      %s68 = sphi 0, %s70
      %s71 = sphi 0, %s68
      %s72 = sphi 0, %s71
      %s88 = sphi 0, %s72
      %s94 = sphi 0, %s96
      %s97 = sphi 0, %s94
      %s98 = sphi 0, %s97
      %s114 = sphi 0, %s98
      %s120 = sphi 0, %s122
      %s123 = sphi 0, %s120
      %s124 = sphi 0, %s123
      %s140 = sphi 0, %s124
      %s146 = sphi 0, %s148
      %s149 = sphi 0, %s146
      %s150 = sphi 0, %s149
      %s166 = sphi 0, %s150
      %s172 = sphi 0, %s174
      %s175 = sphi 0, %s172
      %s176 = sphi 0, %s175
      %s192 = sphi 0, %s176
      %s198 = sphi 0, %s200
      %s201 = sphi 0, %s198
      %s202 = sphi 0, %s201
      %s218 = sphi 0, %s202
      %s224 = sphi 0, %s226
      %s227 = sphi 0, %s224
      %s228 = sphi 0, %s227
      %s244 = sphi 0, %s228
      %s250 = sphi 0, %s252
      %s253 = sphi 0, %s250
      %s254 = sphi 0, %s253
      %s270 = sphi 0, %s254
      %s276 = sphi 0, %s278
      %s279 = sphi 0, %s276
      %s280 = sphi 0, %s279
      %s296 = sphi 0, %s280
      %s302 = sphi 0, %s304
      %s305 = sphi 0, %s302
      %s306 = sphi 0, %s305
      %s322 = sphi 0, %s306
      %s328 = sphi 0, %s330
      %s331 = sphi 0, %s328
      %s332 = sphi 0, %s331
      %s348 = sphi 0, %s332
    $region4: #{tpu_custom_call.1} parent=1 // loop_header_branch
      %23 = sbr.rel (%p21) target = $region8
    $region5: #{tpu_custom_call.1} parent=1 // loop_body
      %s25 = ssub.s32 %s20, 1
      %s26 = ssub.s32 %s20, 2
      %s33 = sadd.s32 1, %s28
      %p34 = scmp.ge.s32.totalorder %s33, 2
      %s35 = scalar_select %p34, 0, %s33
      %s36 = sadd.s32 1, %s27
      %s37 = scalar_select %p34, %s36, %s27
      %p38 = scmp.ge.s32.totalorder %s37, 1
      %s39 = scalar_select %p38, 0, %s37
      %s40 = ssub.s32 %s27, %s39
      %p41 = scmp.eq.s32.totalorder %s40, 0
      %s43 = sadd.s32 %s42, 1
      %s44 = scalar_select %p41, %s42, %s43
      %p47 = pneg %p41
      %p48 = scmp.eq.s32.totalorder %s20, 1
      %p49 = por %p47, %p48
      %p50 = scmp.ne.s32.totalorder %s42, %s45
      %p51 = scmp.eq.s32.totalorder %s20, 0
      %p52 = por %p50, %p51
      %p53 = scmp.ne.s32.totalorder %s42, %s45
      %p54 = scmp.eq.s32.totalorder %s25, 1
      %p55 = por %p53, %p54
      %p56 = scmp.ne.s32.totalorder %s45, %s46
      %p57 = scmp.eq.s32.totalorder %s25, 0
      %p58 = por %p56, %p57
      %p59 = scmp.ne.s32.totalorder %s45, %s46
      %p60 = scmp.eq.s32.totalorder %s26, 1
      %p61 = por %p59, %p60
      %p63 = scmp.ne.s32.totalorder %s46, %s62
      %p64 = scmp.eq.s32.totalorder %s26, 0
      %p65 = por %p63, %p64
      %s66 = ssub.s32 %s27, %s39
      %p67 = scmp.eq.s32.totalorder %s66, 0
      %s69 = sadd.s32 %s68, 1
      %s70 = scalar_select %p67, %s68, %s69
      %p73 = pneg %p67
      %p74 = scmp.eq.s32.totalorder %s20, 1
      %p75 = por %p73, %p74
      %p76 = scmp.ne.s32.totalorder %s68, %s71
      %p77 = scmp.eq.s32.totalorder %s20, 0
      %p78 = por %p76, %p77
      %p79 = scmp.ne.s32.totalorder %s68, %s71
      %p80 = scmp.eq.s32.totalorder %s25, 1
      %p81 = por %p79, %p80
      %p82 = scmp.ne.s32.totalorder %s71, %s72
      %p83 = scmp.eq.s32.totalorder %s25, 0
      %p84 = por %p82, %p83
      %p85 = scmp.ne.s32.totalorder %s71, %s72
      %p86 = scmp.eq.s32.totalorder %s26, 1
      %p87 = por %p85, %p86
      %p89 = scmp.ne.s32.totalorder %s72, %s88
      %p90 = scmp.eq.s32.totalorder %s26, 0
      %p91 = por %p89, %p90
      %s92 = ssub.s32 %s28, %s35
      %p93 = scmp.eq.s32.totalorder %s92, 0
      %s95 = sadd.s32 %s94, 1
      %s96 = scalar_select %p93, %s94, %s95
      %p99 = pneg %p93
      %p100 = scmp.eq.s32.totalorder %s20, 1
      %p101 = por %p99, %p100
      %p102 = scmp.ne.s32.totalorder %s94, %s97
      %p103 = scmp.eq.s32.totalorder %s20, 0
      %p104 = por %p102, %p103
      %p105 = scmp.ne.s32.totalorder %s94, %s97
      %p106 = scmp.eq.s32.totalorder %s25, 1
      %p107 = por %p105, %p106
      %p108 = scmp.ne.s32.totalorder %s97, %s98
      %p109 = scmp.eq.s32.totalorder %s25, 0
      %p110 = por %p108, %p109
      %p111 = scmp.ne.s32.totalorder %s97, %s98
      %p112 = scmp.eq.s32.totalorder %s26, 1
      %p113 = por %p111, %p112
      %p115 = scmp.ne.s32.totalorder %s98, %s114
      %p116 = scmp.eq.s32.totalorder %s26, 0
      %p117 = por %p115, %p116
      %s118 = ssub.s32 %s28, %s35
      %p119 = scmp.eq.s32.totalorder %s118, 0
      %s121 = sadd.s32 %s120, 1
      %s122 = scalar_select %p119, %s120, %s121
      %p125 = pneg %p119
      %p126 = scmp.eq.s32.totalorder %s20, 1
      %p127 = por %p125, %p126
      %p128 = scmp.ne.s32.totalorder %s120, %s123
      %p129 = scmp.eq.s32.totalorder %s20, 0
      %p130 = por %p128, %p129
      %p131 = scmp.ne.s32.totalorder %s120, %s123
      %p132 = scmp.eq.s32.totalorder %s25, 1
      %p133 = por %p131, %p132
      %p134 = scmp.ne.s32.totalorder %s123, %s124
      %p135 = scmp.eq.s32.totalorder %s25, 0
      %p136 = por %p134, %p135
      %p137 = scmp.ne.s32.totalorder %s123, %s124
      %p138 = scmp.eq.s32.totalorder %s26, 1
      %p139 = por %p137, %p138
      %p141 = scmp.ne.s32.totalorder %s124, %s140
      %p142 = scmp.eq.s32.totalorder %s26, 0
      %p143 = por %p141, %p142
      %s144 = ssub.s32 %s28, %s35
      %p145 = scmp.eq.s32.totalorder %s144, 0
      %s147 = sadd.s32 %s146, 1
      %s148 = scalar_select %p145, %s146, %s147
      %p151 = pneg %p145
      %p152 = scmp.eq.s32.totalorder %s20, 1
      %p153 = por %p151, %p152
      %p154 = scmp.ne.s32.totalorder %s146, %s149
      %p155 = scmp.eq.s32.totalorder %s20, 0
      %p156 = por %p154, %p155
      %p157 = scmp.ne.s32.totalorder %s146, %s149
      %p158 = scmp.eq.s32.totalorder %s25, 1
      %p159 = por %p157, %p158
      %p160 = scmp.ne.s32.totalorder %s149, %s150
      %p161 = scmp.eq.s32.totalorder %s25, 0
      %p162 = por %p160, %p161
      %p163 = scmp.ne.s32.totalorder %s149, %s150
      %p164 = scmp.eq.s32.totalorder %s26, 1
      %p165 = por %p163, %p164
      %p167 = scmp.ne.s32.totalorder %s150, %s166
      %p168 = scmp.eq.s32.totalorder %s26, 0
      %p169 = por %p167, %p168
      %s170 = ssub.s32 %s28, %s35
      %p171 = scmp.eq.s32.totalorder %s170, 0
      %s173 = sadd.s32 %s172, 1
      %s174 = scalar_select %p171, %s172, %s173
      %p177 = pneg %p171
      %p178 = scmp.eq.s32.totalorder %s20, 1
      %p179 = por %p177, %p178
      %p180 = scmp.ne.s32.totalorder %s172, %s175
      %p181 = scmp.eq.s32.totalorder %s20, 0
      %p182 = por %p180, %p181
      %p183 = scmp.ne.s32.totalorder %s172, %s175
      %p184 = scmp.eq.s32.totalorder %s25, 1
      %p185 = por %p183, %p184
      %p186 = scmp.ne.s32.totalorder %s175, %s176
      %p187 = scmp.eq.s32.totalorder %s25, 0
      %p188 = por %p186, %p187
      %p189 = scmp.ne.s32.totalorder %s175, %s176
      %p190 = scmp.eq.s32.totalorder %s26, 1
      %p191 = por %p189, %p190
      %p193 = scmp.ne.s32.totalorder %s176, %s192
      %p194 = scmp.eq.s32.totalorder %s26, 0
      %p195 = por %p193, %p194
      %s196 = ssub.s32 %s28, %s35
      %p197 = scmp.eq.s32.totalorder %s196, 0
      %s199 = sadd.s32 %s198, 1
      %s200 = scalar_select %p197, %s198, %s199
      %p203 = pneg %p197
      %p204 = scmp.eq.s32.totalorder %s20, 1
      %p205 = por %p203, %p204
      %p206 = scmp.ne.s32.totalorder %s198, %s201
      %p207 = scmp.eq.s32.totalorder %s20, 0
      %p208 = por %p206, %p207
      %p209 = scmp.ne.s32.totalorder %s198, %s201
      %p210 = scmp.eq.s32.totalorder %s25, 1
      %p211 = por %p209, %p210
      %p212 = scmp.ne.s32.totalorder %s201, %s202
      %p213 = scmp.eq.s32.totalorder %s25, 0
      %p214 = por %p212, %p213
      %p215 = scmp.ne.s32.totalorder %s201, %s202
      %p216 = scmp.eq.s32.totalorder %s26, 1
      %p217 = por %p215, %p216
      %p219 = scmp.ne.s32.totalorder %s202, %s218
      %p220 = scmp.eq.s32.totalorder %s26, 0
      %p221 = por %p219, %p220
      %s222 = ssub.s32 %s28, %s35
      %p223 = scmp.eq.s32.totalorder %s222, 0
      %s225 = sadd.s32 %s224, 1
      %s226 = scalar_select %p223, %s224, %s225
      %p229 = pneg %p223
      %p230 = scmp.eq.s32.totalorder %s20, 1
      %p231 = por %p229, %p230
      %p232 = scmp.ne.s32.totalorder %s224, %s227
      %p233 = scmp.eq.s32.totalorder %s20, 0
      %p234 = por %p232, %p233
      %p235 = scmp.ne.s32.totalorder %s224, %s227
      %p236 = scmp.eq.s32.totalorder %s25, 1
      %p237 = por %p235, %p236
      %p238 = scmp.ne.s32.totalorder %s227, %s228
      %p239 = scmp.eq.s32.totalorder %s25, 0
      %p240 = por %p238, %p239
      %p241 = scmp.ne.s32.totalorder %s227, %s228
      %p242 = scmp.eq.s32.totalorder %s26, 1
      %p243 = por %p241, %p242
      %p245 = scmp.ne.s32.totalorder %s228, %s244
      %p246 = scmp.eq.s32.totalorder %s26, 0
      %p247 = por %p245, %p246
      %s248 = ssub.s32 %s28, %s35
      %p249 = scmp.eq.s32.totalorder %s248, 0
      %s251 = sadd.s32 %s250, 1
      %s252 = scalar_select %p249, %s250, %s251
      %p255 = pneg %p249
      %p256 = scmp.eq.s32.totalorder %s20, 1
      %p257 = por %p255, %p256
      %p258 = scmp.ne.s32.totalorder %s250, %s253
      %p259 = scmp.eq.s32.totalorder %s20, 0
      %p260 = por %p258, %p259
      %p261 = scmp.ne.s32.totalorder %s250, %s253
      %p262 = scmp.eq.s32.totalorder %s25, 1
      %p263 = por %p261, %p262
      %p264 = scmp.ne.s32.totalorder %s253, %s254
      %p265 = scmp.eq.s32.totalorder %s25, 0
      %p266 = por %p264, %p265
      %p267 = scmp.ne.s32.totalorder %s253, %s254
      %p268 = scmp.eq.s32.totalorder %s26, 1
      %p269 = por %p267, %p268
      %p271 = scmp.ne.s32.totalorder %s254, %s270
      %p272 = scmp.eq.s32.totalorder %s26, 0
      %p273 = por %p271, %p272
      %s274 = ssub.s32 %s28, %s35
      %p275 = scmp.eq.s32.totalorder %s274, 0
      %s277 = sadd.s32 %s276, 1
      %s278 = scalar_select %p275, %s276, %s277
      %p281 = pneg %p275
      %p282 = scmp.eq.s32.totalorder %s20, 1
      %p283 = por %p281, %p282
      %p284 = scmp.ne.s32.totalorder %s276, %s279
      %p285 = scmp.eq.s32.totalorder %s20, 0
      %p286 = por %p284, %p285
      %p287 = scmp.ne.s32.totalorder %s276, %s279
      %p288 = scmp.eq.s32.totalorder %s25, 1
      %p289 = por %p287, %p288
      %p290 = scmp.ne.s32.totalorder %s279, %s280
      %p291 = scmp.eq.s32.totalorder %s25, 0
      %p292 = por %p290, %p291
      %p293 = scmp.ne.s32.totalorder %s279, %s280
      %p294 = scmp.eq.s32.totalorder %s26, 1
      %p295 = por %p293, %p294
      %p297 = scmp.ne.s32.totalorder %s280, %s296
      %p298 = scmp.eq.s32.totalorder %s26, 0
      %p299 = por %p297, %p298
      %s300 = ssub.s32 %s28, %s35
      %p301 = scmp.eq.s32.totalorder %s300, 0
      %s303 = sadd.s32 %s302, 1
      %s304 = scalar_select %p301, %s302, %s303
      %p307 = pneg %p301
      %p308 = scmp.eq.s32.totalorder %s20, 1
      %p309 = por %p307, %p308
      %p310 = scmp.ne.s32.totalorder %s302, %s305
      %p311 = scmp.eq.s32.totalorder %s20, 0
      %p312 = por %p310, %p311
      %p313 = scmp.ne.s32.totalorder %s302, %s305
      %p314 = scmp.eq.s32.totalorder %s25, 1
      %p315 = por %p313, %p314
      %p316 = scmp.ne.s32.totalorder %s305, %s306
      %p317 = scmp.eq.s32.totalorder %s25, 0
      %p318 = por %p316, %p317
      %p319 = scmp.ne.s32.totalorder %s305, %s306
      %p320 = scmp.eq.s32.totalorder %s26, 1
      %p321 = por %p319, %p320
      %p323 = scmp.ne.s32.totalorder %s306, %s322
      %p324 = scmp.eq.s32.totalorder %s26, 0
      %p325 = por %p323, %p324
      %s326 = ssub.s32 %s27, %s39
      %p327 = scmp.eq.s32.totalorder %s326, 0
      %s329 = sadd.s32 %s328, 1
      %s330 = scalar_select %p327, %s328, %s329
      %p333 = pneg %p327
      %p334 = scmp.eq.s32.totalorder %s20, 1
      %p335 = por %p333, %p334
      %p336 = scmp.ne.s32.totalorder %s328, %s331
      %p337 = scmp.eq.s32.totalorder %s20, 0
      %p338 = por %p336, %p337
      %p339 = scmp.ne.s32.totalorder %s328, %s331
      %p340 = scmp.eq.s32.totalorder %s25, 1
      %p341 = por %p339, %p340
      %p342 = scmp.ne.s32.totalorder %s331, %s332
      %p343 = scmp.eq.s32.totalorder %s25, 0
      %p344 = por %p342, %p343
      %p345 = scmp.ne.s32.totalorder %s331, %s332
      %p346 = scmp.eq.s32.totalorder %s26, 1
      %p347 = por %p345, %p346
      %p349 = scmp.ne.s32.totalorder %s332, %s348
      %p350 = scmp.eq.s32.totalorder %s26, 0
      %p351 = por %p349, %p350
      %p352 = scmp.le.s32.totalorder 1, %s20
      %p353 = scmp.lt.s32.totalorder %s20, 3
      %p354 = pnand %p352, %p353
      %p355 = pneg %p354
      // Predicated region
      $region9: #{tpu_custom_call.1} parent=5 // pred_check
        _
      $region10: #{tpu_custom_call.1} parent=5 // pred_check_branch
        %357 = sbr.rel (%p354) target = $region12
      $region11: #{tpu_custom_call.1} parent=5 // pred_region
        %s358 = ssub.s32 %s20, 1
        // Predicated region
        $region13: #{tpu_custom_call.1} parent=11 // pred_check
          %p359 = pneg %p58
        $region14: #{tpu_custom_call.1} parent=11 // pred_check_branch
          %361 = sbr.rel (%p359) target = $region16
        $region15: #{tpu_custom_call.1} parent=11 // pred_region
          %s362 = smul.u32 2, %s29
          %s364 = ssub.s32 256, 256
          %365 = vsyncadd [#allocation3], %s364
          %s366 = smul.addr %s362, 128
          %s367 = scalar_lea.hbm %s0, %s366
          %s368 = sshll.u32 [#allocation2], 4
          %s369 = int_to_ptr.vmem [resolvable:$true] %s368
          %374 = dma.hbm_to_vmem [thread:$0]  %s367, 256, %s369, [#allocation3], 128, 128, 8
        $region16: #{tpu_custom_call.1} parent=11 // pred_fallthru
          _
        // Predicated region
        $region17: #{tpu_custom_call.1} parent=11 // pred_check
          %p375 = pneg %p84
        $region18: #{tpu_custom_call.1} parent=11 // pred_check_branch
          %377 = sbr.rel (%p375) target = $region20
        $region19: #{tpu_custom_call.1} parent=11 // pred_region
          %s378 = smul.u32 4, %s29
          %s380 = ssub.s32 512, 512
          %381 = vsyncadd [#allocation6], %s380
          %s382 = smul.addr %s378, 128
          %s383 = scalar_lea.hbm %s1, %s382
          %s384 = sshll.u32 [#allocation5], 4
          %s385 = int_to_ptr.vmem [resolvable:$true] %s384
          %390 = dma.hbm_to_vmem [thread:$0]  %s383, 512, %s385, [#allocation6], 128, 128, 8
        $region20: #{tpu_custom_call.1} parent=11 // pred_fallthru
          _
      $region12: #{tpu_custom_call.1} parent=5 // pred_fallthru
        _
      %p391 = scmp.lt.s32.totalorder %s20, 2
      // Predicated region
      $region21: #{tpu_custom_call.1} parent=5 // pred_check
        %p392 = pneg %p391
      $region22: #{tpu_custom_call.1} parent=5 // pred_check_branch
        %394 = sbr.rel (%p392) target = $region24
      $region23: #{tpu_custom_call.1} parent=5 // pred_region
        // Predicated region
        $region25: #{tpu_custom_call.1} parent=23 // pred_check
          %p395 = pneg %p104
        $region26: #{tpu_custom_call.1} parent=23 // pred_check_branch
          %397 = sbr.rel (%p395) target = $region28
        $region27: #{tpu_custom_call.1} parent=23 // pred_region
          %s398 = sand.u32 %s20, 1
          %s399 = scalar_lea.sflag [#allocation3], %s398
          %s400 = sand.u32 %s94, 1
          %s401 = smul.addr %s400, 16
          %s402 = scalar_lea.vmem [#allocation7], %s401
          %s404 = ssub.s32 256, 256
          %405 = vsyncadd %s399, %s404
          %s406 = smul.addr %s28, 4
          %s407 = smul.addr %s406, 64
          %s408 = scalar_lea.hbm %s2, %s407
          %s409 = sshll.u32 %s402, 4
          %s410 = int_to_ptr.vmem [resolvable:$true] %s409
          %415 = dma.hbm_to_vmem [thread:$0]  %s408, 256, %s410, %s399, 64, 64, 4
        $region28: #{tpu_custom_call.1} parent=23 // pred_fallthru
          _
        // Predicated region
        $region29: #{tpu_custom_call.1} parent=23 // pred_check
          %p416 = pneg %p130
        $region30: #{tpu_custom_call.1} parent=23 // pred_check_branch
          %418 = sbr.rel (%p416) target = $region32
        $region31: #{tpu_custom_call.1} parent=23 // pred_region
          %p419 = scmp.lt.s32.totalorder %s28, 1
          %s420 = scalar_select %p419, %s28, 1
          %s421 = scalar_lea.vmem %s3, %s420
        $region32: #{tpu_custom_call.1} parent=23 // pred_fallthru
          _
        // Predicated region
        $region33: #{tpu_custom_call.1} parent=23 // pred_check
          %p422 = pneg %p156
        $region34: #{tpu_custom_call.1} parent=23 // pred_check_branch
          %424 = sbr.rel (%p422) target = $region36
        $region35: #{tpu_custom_call.1} parent=23 // pred_region
          %s425 = sand.u32 %s20, 1
          %s426 = scalar_lea.sflag [#allocation3], %s425
          %s427 = sand.u32 %s146, 1
          %s428 = smul.addr %s427, 16
          %s429 = scalar_lea.vmem [#allocation8], %s428
          %s431 = ssub.s32 256, 256
          %432 = vsyncadd %s426, %s431
          %s433 = smul.addr %s28, 4
          %s434 = smul.addr %s433, 64
          %s435 = scalar_lea.hbm %s4, %s434
          %s436 = sshll.u32 %s429, 4
          %s437 = int_to_ptr.vmem [resolvable:$true] %s436
          %442 = dma.hbm_to_vmem [thread:$0]  %s435, 256, %s437, %s426, 64, 64, 4
        $region36: #{tpu_custom_call.1} parent=23 // pred_fallthru
          _
        // Predicated region
        $region37: #{tpu_custom_call.1} parent=23 // pred_check
          %p443 = pneg %p182
        $region38: #{tpu_custom_call.1} parent=23 // pred_check_branch
          %445 = sbr.rel (%p443) target = $region40
        $region39: #{tpu_custom_call.1} parent=23 // pred_region
          %p446 = scmp.lt.s32.totalorder %s28, 1
          %s447 = scalar_select %p446, %s28, 1
          %s448 = scalar_lea.vmem %s5, %s447
        $region40: #{tpu_custom_call.1} parent=23 // pred_fallthru
          _
        // Predicated region
        $region41: #{tpu_custom_call.1} parent=23 // pred_check
          %p449 = pneg %p208
        $region42: #{tpu_custom_call.1} parent=23 // pred_check_branch
          %451 = sbr.rel (%p449) target = $region44
        $region43: #{tpu_custom_call.1} parent=23 // pred_region
          %s452 = sand.u32 %s20, 1
          %s453 = scalar_lea.sflag [#allocation3], %s452
          %s454 = sand.u32 %s198, 1
          %s455 = smul.addr %s454, 16
          %s456 = scalar_lea.vmem [#allocation9], %s455
          %s458 = ssub.s32 256, 256
          %459 = vsyncadd %s453, %s458
          %s460 = smul.addr %s28, 4
          %s461 = smul.addr %s460, 64
          %s462 = scalar_lea.hbm %s6, %s461
          %s463 = sshll.u32 %s456, 4
          %s464 = int_to_ptr.vmem [resolvable:$true] %s463
          %469 = dma.hbm_to_vmem [thread:$0]  %s462, 256, %s464, %s453, 64, 64, 4
        $region44: #{tpu_custom_call.1} parent=23 // pred_fallthru
          _
        // Predicated region
        $region45: #{tpu_custom_call.1} parent=23 // pred_check
          %p470 = pneg %p234
        $region46: #{tpu_custom_call.1} parent=23 // pred_check_branch
          %472 = sbr.rel (%p470) target = $region48
        $region47: #{tpu_custom_call.1} parent=23 // pred_region
          %p473 = scmp.lt.s32.totalorder %s28, 1
          %s474 = scalar_select %p473, %s28, 1
          %s475 = scalar_lea.vmem %s7, %s474
        $region48: #{tpu_custom_call.1} parent=23 // pred_fallthru
          _
        // Predicated region
        $region49: #{tpu_custom_call.1} parent=23 // pred_check
          %p476 = pneg %p260
        $region50: #{tpu_custom_call.1} parent=23 // pred_check_branch
          %478 = sbr.rel (%p476) target = $region52
        $region51: #{tpu_custom_call.1} parent=23 // pred_region
          %s479 = sand.u32 %s20, 1
          %s480 = scalar_lea.sflag [#allocation3], %s479
          %s481 = sand.u32 %s250, 1
          %s482 = smul.addr %s481, 16
          %s483 = scalar_lea.vmem [#allocation10], %s482
          %s485 = ssub.s32 256, 256
          %486 = vsyncadd %s480, %s485
          %s487 = smul.addr %s28, 4
          %s488 = smul.addr %s487, 64
          %s489 = scalar_lea.hbm %s8, %s488
          %s490 = sshll.u32 %s483, 4
          %s491 = int_to_ptr.vmem [resolvable:$true] %s490
          %496 = dma.hbm_to_vmem [thread:$0]  %s489, 256, %s491, %s480, 64, 64, 4
        $region52: #{tpu_custom_call.1} parent=23 // pred_fallthru
          _
        // Predicated region
        $region53: #{tpu_custom_call.1} parent=23 // pred_check
          %p497 = pneg %p286
        $region54: #{tpu_custom_call.1} parent=23 // pred_check_branch
          %499 = sbr.rel (%p497) target = $region56
        $region55: #{tpu_custom_call.1} parent=23 // pred_region
          %p500 = scmp.lt.s32.totalorder %s28, 1
          %s501 = scalar_select %p500, %s28, 1
          %s502 = scalar_lea.vmem %s9, %s501
        $region56: #{tpu_custom_call.1} parent=23 // pred_fallthru
          _
        // Predicated region
        $region57: #{tpu_custom_call.1} parent=23 // pred_check
          %p503 = pneg %p312
        $region58: #{tpu_custom_call.1} parent=23 // pred_check_branch
          %505 = sbr.rel (%p503) target = $region60
        $region59: #{tpu_custom_call.1} parent=23 // pred_region
          %p506 = scmp.lt.s32.totalorder %s28, 1
          %s507 = scalar_select %p506, %s28, 1
          %s508 = smul.addr %s507, 4
          %s509 = scalar_lea.vmem %s10, %s508
        $region60: #{tpu_custom_call.1} parent=23 // pred_fallthru
          _
      $region24: #{tpu_custom_call.1} parent=5 // pred_fallthru
        _
      %p510 = scmp.le.s32.totalorder 1, %s20
      %p511 = scmp.lt.s32.totalorder %s20, 3
      %p512 = pnand %p510, %p511
      %p513 = pneg %p512
      // Predicated region
      $region61: #{tpu_custom_call.1} parent=5 // pred_check
        _
      $region62: #{tpu_custom_call.1} parent=5 // pred_check_branch
        %515 = sbr.rel (%p512) target = $region64
      $region63: #{tpu_custom_call.1} parent=5 // pred_region
        %s516 = ssub.s32 %s20, 1
        // Predicated region
        $region65: #{tpu_custom_call.1} parent=63 // pred_check
          %p517 = pneg %p58
        $region66: #{tpu_custom_call.1} parent=63 // pred_check_branch
          %519 = sbr.rel (%p517) target = $region68
        $region67: #{tpu_custom_call.1} parent=63 // pred_region
          %520 = dma.done [#allocation3], 256
        $region68: #{tpu_custom_call.1} parent=63 // pred_fallthru
          _
        // Predicated region
        $region69: #{tpu_custom_call.1} parent=63 // pred_check
          %p521 = pneg %p84
        $region70: #{tpu_custom_call.1} parent=63 // pred_check_branch
          %523 = sbr.rel (%p521) target = $region72
        $region71: #{tpu_custom_call.1} parent=63 // pred_region
          %524 = dma.done [#allocation6], 512
        $region72: #{tpu_custom_call.1} parent=63 // pred_fallthru
          _
        %s525 = sand.u32 %s25, 1
        %s526 = scalar_lea.sflag [#allocation3], %s525
        %s527 = sand.u32 %s97, 1
        %s528 = smul.addr %s527, 16
        %s529 = scalar_lea.vmem [#allocation7], %s528
        // Predicated region
        $region73: #{tpu_custom_call.1} parent=63 // pred_check
          %p530 = pneg %p110
        $region74: #{tpu_custom_call.1} parent=63 // pred_check_branch
          %532 = sbr.rel (%p530) target = $region76
        $region75: #{tpu_custom_call.1} parent=63 // pred_region
          %533 = dma.done %s526, 256
        $region76: #{tpu_custom_call.1} parent=63 // pred_fallthru
          _
        %s534 = sand.u32 %s25, 1
        %s535 = scalar_lea.sflag [#allocation3], %s534
        %s536 = sand.u32 %s149, 1
        %s537 = smul.addr %s536, 16
        %s538 = scalar_lea.vmem [#allocation8], %s537
        // Predicated region
        $region77: #{tpu_custom_call.1} parent=63 // pred_check
          %p539 = pneg %p162
        $region78: #{tpu_custom_call.1} parent=63 // pred_check_branch
          %541 = sbr.rel (%p539) target = $region80
        $region79: #{tpu_custom_call.1} parent=63 // pred_region
          %542 = dma.done %s535, 256
        $region80: #{tpu_custom_call.1} parent=63 // pred_fallthru
          _
        %s543 = sand.u32 %s25, 1
        %s544 = scalar_lea.sflag [#allocation3], %s543
        %s545 = sand.u32 %s201, 1
        %s546 = smul.addr %s545, 16
        %s547 = scalar_lea.vmem [#allocation9], %s546
        // Predicated region
        $region81: #{tpu_custom_call.1} parent=63 // pred_check
          %p548 = pneg %p214
        $region82: #{tpu_custom_call.1} parent=63 // pred_check_branch
          %550 = sbr.rel (%p548) target = $region84
        $region83: #{tpu_custom_call.1} parent=63 // pred_region
          %551 = dma.done %s544, 256
        $region84: #{tpu_custom_call.1} parent=63 // pred_fallthru
          _
        %s552 = sand.u32 %s25, 1
        %s553 = scalar_lea.sflag [#allocation3], %s552
        %s554 = sand.u32 %s253, 1
        %s555 = smul.addr %s554, 16
        %s556 = scalar_lea.vmem [#allocation10], %s555
        // Predicated region
        $region85: #{tpu_custom_call.1} parent=63 // pred_check
          %p557 = pneg %p266
        $region86: #{tpu_custom_call.1} parent=63 // pred_check_branch
          %559 = sbr.rel (%p557) target = $region88
        $region87: #{tpu_custom_call.1} parent=63 // pred_region
          %560 = dma.done %s553, 256
        $region88: #{tpu_custom_call.1} parent=63 // pred_fallthru
          _
        %p561 = pneg %p58
        %p562 = pneg %p55
        %p563 = pneg %p84
        %p564 = pneg %p81
        %s565 = sand.u32 %s25, 1
        %s566 = scalar_lea.sflag [#allocation3], %s565
        %s567 = sand.u32 %s97, 1
        %s568 = smul.addr %s567, 16
        %s569 = scalar_lea.vmem [#allocation7], %s568
        %p570 = pneg %p110
        %p571 = pneg %p107
        %p572 = scmp.lt.s32.totalorder %s30, 1
        %s573 = scalar_select %p572, %s30, 1
        %s574 = scalar_lea.vmem %s3, %s573
        %p575 = pneg %p136
        %p576 = pneg %p133
        %s577 = sand.u32 %s25, 1
        %s578 = scalar_lea.sflag [#allocation3], %s577
        %s579 = sand.u32 %s149, 1
        %s580 = smul.addr %s579, 16
        %s581 = scalar_lea.vmem [#allocation8], %s580
        %p582 = pneg %p162
        %p583 = pneg %p159
        %p584 = scmp.lt.s32.totalorder %s30, 1
        %s585 = scalar_select %p584, %s30, 1
        %s586 = scalar_lea.vmem %s5, %s585
        %p587 = pneg %p188
        %p588 = pneg %p185
        %s589 = sand.u32 %s25, 1
        %s590 = scalar_lea.sflag [#allocation3], %s589
        %s591 = sand.u32 %s201, 1
        %s592 = smul.addr %s591, 16
        %s593 = scalar_lea.vmem [#allocation9], %s592
        %p594 = pneg %p214
        %p595 = pneg %p211
        %p596 = scmp.lt.s32.totalorder %s30, 1
        %s597 = scalar_select %p596, %s30, 1
        %s598 = scalar_lea.vmem %s7, %s597
        %p599 = pneg %p240
        %p600 = pneg %p237
        %s601 = sand.u32 %s25, 1
        %s602 = scalar_lea.sflag [#allocation3], %s601
        %s603 = sand.u32 %s253, 1
        %s604 = smul.addr %s603, 16
        %s605 = scalar_lea.vmem [#allocation10], %s604
        %p606 = pneg %p266
        %p607 = pneg %p263
        %p608 = scmp.lt.s32.totalorder %s30, 1
        %s609 = scalar_select %p608, %s30, 1
        %s610 = scalar_lea.vmem %s9, %s609
        %p611 = pneg %p292
        %p612 = pneg %p289
        %p613 = scmp.lt.s32.totalorder %s30, 1
        %s614 = scalar_select %p613, %s30, 1
        %s615 = smul.addr %s614, 4
        %s616 = scalar_lea.vmem %s10, %s615
        %p617 = pneg %p318
        %p618 = pneg %p315
        %p619 = pneg %p344
        %p620 = pneg %p341
        %s621 = smul.u32 2, %s29
        %s622 = smul.u32 4, %s29
        %p623 = scmp.lt.s32.totalorder %s30, 1
        %s624 = scalar_select %p623, %s30, 1
        %s625 = scalar_lea.vmem %s3, %s624
        %p626 = scmp.lt.s32.totalorder %s30, 1
        %s627 = scalar_select %p626, %s30, 1
        %s628 = scalar_lea.vmem %s5, %s627
        %p629 = scmp.lt.s32.totalorder %s30, 1
        %s630 = scalar_select %p629, %s30, 1
        %s631 = scalar_lea.vmem %s7, %s630
        %p632 = scmp.lt.s32.totalorder %s30, 1
        %s633 = scalar_select %p632, %s30, 1
        %s634 = scalar_lea.vmem %s9, %s633
        %p635 = scmp.lt.s32.totalorder %s30, 1
        %s636 = scalar_select %p635, %s30, 1
        %s637 = smul.addr %s636, 4
        %s638 = scalar_lea.vmem %s10, %s637
        %s639 = smul.u32 2, %s29
        %p641 = scmp.eq.s32.totalorder %s30, 0
        // Predicated region
        $region89: #{tpu_custom_call.1} parent=63 // pred_check
          %p642 = pneg %p641
        $region90: #{tpu_custom_call.1} parent=63 // pred_check_branch
          %644 = sbr.rel (%p642) target = $region92
        $region91: #{tpu_custom_call.1} parent=63 // pred_region
          %v645 = vld [vmem:[#allocation2] sm:$0xff]
          %v646 = vld [vmem:[#allocation2 + $0x8] sm:$0xff]
          %vm647 = vcmask 261120
          %648 = vst.msk [vmem:[#allocation11] sm:$0xff] %vm647, %v645
          %649 = vst.msk [vmem:[#allocation11 + $0x8] sm:$0xff] %vm647, %v646
        $region92: #{tpu_custom_call.1} parent=63 // pred_fallthru
          _
        %v650 = vld [vmem:[#allocation11] sm:$0xff]
        %v651 = vld [vmem:[#allocation11 + $0x8] sm:$0xff]
        %v652 = vld [vmem:[#allocation5] sm:$0xff]
        %v653 = vld [vmem:[#allocation5 + $0x8] sm:$0xff]
        %v654 = vld [vmem:[#allocation5 + $0x10] sm:$0xff]
        %v655 = vld [vmem:[#allocation5 + $0x18] sm:$0xff]
        %v656 = vld [vmem:[%s638] sm:$0xf]
        %v657 = vlaneseq
        %v658 = vshrl.u32 %v657, 7
        %v659 = vlaneseq
        %v660 = vand.u32 %v659, 127
        %vm661 = vcmp.le.s32.totalorder %v660, %v658
        %v662 = vsel %vm661, 0.0, -1e+30
        %vm663 = vcmp.lt.s32.totalorder %v660, 10
        %v664 = vsel %vm663, 0.0, -1e+30
        %v665 = vpack.c.bf16 %v651, %v650
        %v666 = vld [vmem:[%s529] sm:$0xf]
        %v667 = vld [vmem:[%s529 + $0x4] sm:$0xf]
        %v668 = vld [vmem:[%s529 + $0x8] sm:$0xf]
        %v669 = vld [vmem:[%s529 + $0xc] sm:$0xf]
        %v670 = vld [vmem:[%s625] sm:$0x1]
        %v672 = vlaneseq
        %v673 = vshrl.u32 %v672, 7
        %v674 = vsub.s32 0, %v673
        %v675 = vrot.slane %v670, %v674
        %v681 = vunpack.c.l.b16 %v666
        %v682 = vunpack.c.l.b16 %v667
        %v683 = vunpack.c.l.b16 %v668
        %v684 = vunpack.c.l.b16 %v669
        %v685 = vpack.c.b16 %v682, %v681
        %v686 = vpack.c.b16 %v684, %v683
        %vm689 = vcmask 261120
        %v691 = vsel %vm689, %v665, 0
        %693 = vmatprep.subr.bf16.mxu0 0
        %694 = vmatpush1.bf16.msra.mxu0 0
        %695 = vmatprep.subr.bf16.mxu0 0
        %696 = vmatpush1.bf16.msra.mxu0 0
        %697 = vmatprep.subr.bf16.mxu0 0
        %698 = vmatpush1.bf16.msra.mxu0 0
        %699 = vmatprep.subr.bf16.mxu0 0
        %700 = vmatpush1.bf16.msra.mxu0 0
        %701 = vmatprep.subr.bf16.mxu0 0
        %702 = vmatpush1.bf16.msra.mxu0 0
        %703 = vmatprep.subr.bf16.mxu0 0
        %704 = vmatpush1.bf16.msra.mxu0 0
        %705 = vmatprep.subr.bf16.mxu0 0
        %706 = vmatpush1.bf16.msra.mxu0 %v686
        %707 = vmatprep.subr.bf16.mxu0 0
        %708 = vmatpush1.bf16.msra.mxu0 %v685
        %709 = vmatprep.subr.bf16.mxu0 0
        %710 = vmatpush2.bf16.msra.mxu0 0
        %711 = vmatprep.subr.bf16.mxu0 0
        %712 = vmatpush2.bf16.msra.mxu0 0
        %713 = vmatprep.subr.bf16.mxu0 0
        %714 = vmatpush2.bf16.msra.mxu0 0
        %715 = vmatprep.subr.bf16.mxu0 0
        %716 = vmatpush2.bf16.msra.mxu0 0
        %717 = vmatprep.subr.bf16.mxu0 0
        %718 = vmatpush2.bf16.msra.mxu0 0
        %719 = vmatprep.subr.bf16.mxu0 0
        %720 = vmatpush2.bf16.msra.mxu0 0
        %721 = vmatprep.subr.bf16.mxu0 0
        %722 = vmatpush2.bf16.msra.mxu0 0
        %723 = vmatprep.subr.bf16.mxu0 0
        %724 = vmatpush2.bf16.msra.mxu0 0
        %725 = vmatprep.mubr.bf16.mxu0 0
        %726 = vmatmul.mubr.bf16.gmra.mxu0 %v691
        %v727 = vpop.f32.mrf.mxu0
        %v728 = vadd.f32 %v675, %v727
        %v729 = vpop.f32.mrf.mxu0
        %v730 = vpop.f32.mrf.mxu0
        %v731 = vadd.f32 %v675, %v730
        %v732 = vpop.f32.mrf.mxu0
        %733 = vdwg.mxu0
        %v734 = vpack.c.bf16 %v728, %v728
        %v735 = vpack.c.bf16 %v731, %v731
        %737 = vrot.lane.b32.xlu0 %v734, 96
        %v738 = vpop.permute.xlu0 %737
        %vm739 = vcmask 64512
        %v741 = vsel %vm739, %v734, 0
        %v744 = vsel %vm739, %v738, 0
        %746 = vmatprep.subr.bf16.mxu0 0
        %747 = vmatpush1.bf16.xpose.msra.mxu0 0
        %748 = vmatprep.subr.bf16.mxu0 0
        %749 = vmatpush1.bf16.xpose.msra.mxu0 0
        %750 = vmatprep.subr.bf16.mxu0 0
        %751 = vmatpush1.bf16.xpose.msra.mxu0 0
        %752 = vmatprep.subr.bf16.mxu0 0
        %753 = vmatpush1.bf16.xpose.msra.mxu0 0
        %754 = vmatprep.subr.bf16.mxu0 0
        %755 = vmatpush1.bf16.xpose.msra.mxu0 0
        %756 = vmatprep.subr.bf16.mxu0 0
        %757 = vmatpush1.bf16.xpose.msra.mxu0 0
        %758 = vmatprep.subr.bf16.mxu0 0
        %759 = vmatpush1.bf16.xpose.msra.mxu0 0
        %760 = vmatprep.subr.bf16.mxu0 0
        %761 = vmatpush1.bf16.xpose.msra.mxu0 %v744
        %762 = vmatprep.subr.bf16.mxu0 0
        %763 = vmatpush2.bf16.xpose.msra.mxu0 0
        %764 = vmatprep.subr.bf16.mxu0 0
        %765 = vmatpush2.bf16.xpose.msra.mxu0 0
        %766 = vmatprep.subr.bf16.mxu0 0
        %767 = vmatpush2.bf16.xpose.msra.mxu0 0
        %768 = vmatprep.subr.bf16.mxu0 0
        %769 = vmatpush2.bf16.xpose.msra.mxu0 0
        %770 = vmatprep.subr.bf16.mxu0 0
        %771 = vmatpush2.bf16.xpose.msra.mxu0 0
        %772 = vmatprep.subr.bf16.mxu0 0
        %773 = vmatpush2.bf16.xpose.msra.mxu0 0
        %774 = vmatprep.subr.bf16.mxu0 0
        %775 = vmatpush2.bf16.xpose.msra.mxu0 0
        %776 = vmatprep.subr.bf16.mxu0 0
        %777 = vmatpush2.bf16.xpose.msra.mxu0 0
        %778 = vmatprep.mubr.bf16.mxu0 0
        %779 = vmatmul.mubr.bf16.gmra.mxu0 %v741
        %v780 = vpop.f32.mrf.mxu0
        %v781 = vadd.f32 %v662, %v780
        %v782 = vpop.f32.mrf.mxu0
        %v783 = vpop.f32.mrf.mxu0
        %v784 = vpop.f32.mrf.mxu0
        %785 = vdwg.mxu0
        %787 = vrot.lane.b32.xlu0 %v735, 96
        %v788 = vpop.permute.xlu0 %787
        %v790 = vsel %vm739, %v735, 0
        %v793 = vsel %vm739, %v788, 0
        %795 = vmatprep.subr.bf16.mxu0 0
        %796 = vmatpush1.bf16.xpose.msra.mxu0 0
        %797 = vmatprep.subr.bf16.mxu0 0
        %798 = vmatpush1.bf16.xpose.msra.mxu0 0
        %799 = vmatprep.subr.bf16.mxu0 0
        %800 = vmatpush1.bf16.xpose.msra.mxu0 0
        %801 = vmatprep.subr.bf16.mxu0 0
        %802 = vmatpush1.bf16.xpose.msra.mxu0 0
        %803 = vmatprep.subr.bf16.mxu0 0
        %804 = vmatpush1.bf16.xpose.msra.mxu0 0
        %805 = vmatprep.subr.bf16.mxu0 0
        %806 = vmatpush1.bf16.xpose.msra.mxu0 0
        %807 = vmatprep.subr.bf16.mxu0 0
        %808 = vmatpush1.bf16.xpose.msra.mxu0 0
        %809 = vmatprep.subr.bf16.mxu0 0
        %810 = vmatpush1.bf16.xpose.msra.mxu0 %v793
        %811 = vmatprep.subr.bf16.mxu0 0
        %812 = vmatpush2.bf16.xpose.msra.mxu0 0
        %813 = vmatprep.subr.bf16.mxu0 0
        %814 = vmatpush2.bf16.xpose.msra.mxu0 0
        %815 = vmatprep.subr.bf16.mxu0 0
        %816 = vmatpush2.bf16.xpose.msra.mxu0 0
        %817 = vmatprep.subr.bf16.mxu0 0
        %818 = vmatpush2.bf16.xpose.msra.mxu0 0
        %819 = vmatprep.subr.bf16.mxu0 0
        %820 = vmatpush2.bf16.xpose.msra.mxu0 0
        %821 = vmatprep.subr.bf16.mxu0 0
        %822 = vmatpush2.bf16.xpose.msra.mxu0 0
        %823 = vmatprep.subr.bf16.mxu0 0
        %824 = vmatpush2.bf16.xpose.msra.mxu0 0
        %825 = vmatprep.subr.bf16.mxu0 0
        %826 = vmatpush2.bf16.xpose.msra.mxu0 0
        %827 = vmatprep.mubr.bf16.mxu0 0
        %828 = vmatmul.mubr.bf16.gmra.mxu0 %v790
        %v829 = vpop.f32.mrf.mxu0
        %v830 = vadd.f32 %v662, %v829
        %v831 = vpop.f32.mrf.mxu0
        %v832 = vpop.f32.mrf.mxu0
        %v833 = vpop.f32.mrf.mxu0
        %834 = vdwg.mxu0
        %v835 = vsel %vm739, %v781, -inf
        %836 = vmax.xlane.f32.xlu0 %v835
        %v837 = vpop.xlane.xlu0 %836
        %v838 = vsel %vm739, %v830, -inf
        %839 = vmax.xlane.f32.xlu0 %v838
        %v840 = vpop.xlane.xlu0 %839
        %v841 = vsub.f32 %v781, %v837
        %v842 = vsub.f32 %v830, %v840
        %v843 = vmul.f32 %v841, 1.442695
        %v844 = vpow.pop %v843
        %v845 = vmul.f32 %v842, 1.442695
        %v846 = vpow.pop %v845
        %v847 = vsel %vm739, %v844, 0.0
        %848 = vadd.xlane.f32.xlu0 %v847
        %v849 = vpop.xlane.xlu0 %848
        %v850 = vsel %vm739, %v846, 0.0
        %851 = vadd.xlane.f32.xlu0 %v850
        %v852 = vpop.xlane.xlu0 %851
        %v853 = vrcp.pop %v849
        %v854 = vrcp.pop %v852
        %v855 = vmul.f32 %v844, %v853
        %v856 = vmul.f32 %v846, %v854
        %v857 = vpack.c.bf16 %v855, %v855
        %v858 = vpack.c.bf16 %v856, %v856
        %859 = vrot.lane.b32.xlu0 %v734, 64
        %v860 = vpop.permute.xlu0 %859
        %v862 = vsel %vm739, %v857, 0
        %vm864 = vcmask 1043456
        %v866 = vsel %vm864, %v860, 0
        %868 = vmatprep.subr.bf16.mxu0 0
        %869 = vmatpush1.bf16.msra.mxu0 0
        %870 = vmatprep.subr.bf16.mxu0 0
        %871 = vmatpush1.bf16.msra.mxu0 0
        %872 = vmatprep.subr.bf16.mxu0 0
        %873 = vmatpush1.bf16.msra.mxu0 0
        %874 = vmatprep.subr.bf16.mxu0 0
        %875 = vmatpush1.bf16.msra.mxu0 0
        %876 = vmatprep.subr.bf16.mxu0 0
        %877 = vmatpush1.bf16.msra.mxu0 0
        %878 = vmatprep.subr.bf16.mxu0 0
        %879 = vmatpush1.bf16.msra.mxu0 0
        %880 = vmatprep.subr.bf16.mxu0 0
        %881 = vmatpush1.bf16.msra.mxu0 0
        %882 = vmatprep.subr.bf16.mxu0 0
        %883 = vmatpush1.bf16.msra.mxu0 %v866
        %884 = vmatprep.subr.bf16.mxu0 0
        %885 = vmatpush2.bf16.msra.mxu0 0
        %886 = vmatprep.subr.bf16.mxu0 0
        %887 = vmatpush2.bf16.msra.mxu0 0
        %888 = vmatprep.subr.bf16.mxu0 0
        %889 = vmatpush2.bf16.msra.mxu0 0
        %890 = vmatprep.subr.bf16.mxu0 0
        %891 = vmatpush2.bf16.msra.mxu0 0
        %892 = vmatprep.subr.bf16.mxu0 0
        %893 = vmatpush2.bf16.msra.mxu0 0
        %894 = vmatprep.subr.bf16.mxu0 0
        %895 = vmatpush2.bf16.msra.mxu0 0
        %896 = vmatprep.subr.bf16.mxu0 0
        %897 = vmatpush2.bf16.msra.mxu0 0
        %898 = vmatprep.subr.bf16.mxu0 0
        %899 = vmatpush2.bf16.msra.mxu0 0
        %900 = vmatprep.mubr.bf16.mxu0 0
        %901 = vmatmul.mubr.bf16.gmra.mxu0 %v862
        %v902 = vpop.f32.mrf.mxu0
        %v903 = vadd.f32 0.0, %v902
        %v904 = vpop.f32.mrf.mxu0
        %v905 = vpop.f32.mrf.mxu0
        %v906 = vpop.f32.mrf.mxu0
        %907 = vdwg.mxu0
        %908 = vrot.lane.b32.xlu0 %v735, 64
        %v909 = vpop.permute.xlu0 %908
        %v911 = vsel %vm739, %v858, 0
        %v914 = vsel %vm864, %v909, 0
        %916 = vmatprep.subr.bf16.mxu0 0
        %917 = vmatpush1.bf16.msra.mxu0 0
        %918 = vmatprep.subr.bf16.mxu0 0
        %919 = vmatpush1.bf16.msra.mxu0 0
        %920 = vmatprep.subr.bf16.mxu0 0
        %921 = vmatpush1.bf16.msra.mxu0 0
        %922 = vmatprep.subr.bf16.mxu0 0
        %923 = vmatpush1.bf16.msra.mxu0 0
        %924 = vmatprep.subr.bf16.mxu0 0
        %925 = vmatpush1.bf16.msra.mxu0 0
        %926 = vmatprep.subr.bf16.mxu0 0
        %927 = vmatpush1.bf16.msra.mxu0 0
        %928 = vmatprep.subr.bf16.mxu0 0
        %929 = vmatpush1.bf16.msra.mxu0 0
        %930 = vmatprep.subr.bf16.mxu0 0
        %931 = vmatpush1.bf16.msra.mxu0 %v914
        %932 = vmatprep.subr.bf16.mxu0 0
        %933 = vmatpush2.bf16.msra.mxu0 0
        %934 = vmatprep.subr.bf16.mxu0 0
        %935 = vmatpush2.bf16.msra.mxu0 0
        %936 = vmatprep.subr.bf16.mxu0 0
        %937 = vmatpush2.bf16.msra.mxu0 0
        %938 = vmatprep.subr.bf16.mxu0 0
        %939 = vmatpush2.bf16.msra.mxu0 0
        %940 = vmatprep.subr.bf16.mxu0 0
        %941 = vmatpush2.bf16.msra.mxu0 0
        %942 = vmatprep.subr.bf16.mxu0 0
        %943 = vmatpush2.bf16.msra.mxu0 0
        %944 = vmatprep.subr.bf16.mxu0 0
        %945 = vmatpush2.bf16.msra.mxu0 0
        %946 = vmatprep.subr.bf16.mxu0 0
        %947 = vmatpush2.bf16.msra.mxu0 0
        %948 = vmatprep.mubr.bf16.mxu0 0
        %949 = vmatmul.mubr.bf16.gmra.mxu0 %v911
        %v950 = vpop.f32.mrf.mxu0
        %v951 = vadd.f32 0.0, %v950
        %v952 = vpop.f32.mrf.mxu0
        %v953 = vpop.f32.mrf.mxu0
        %v954 = vpop.f32.mrf.mxu0
        %955 = vdwg.mxu0
        %956 = vrot.lane.b32.xlu0 %v734, 120
        %v957 = vpop.permute.xlu0 %956
        %958 = vrot.lane.b32.xlu0 %v734, 88
        %v959 = vpop.permute.xlu0 %958
        %v961 = vsel %vm739, %v957, 0
        %v964 = vsel %vm739, %v959, 0
        %966 = vmatprep.subr.bf16.mxu0 0
        %967 = vmatpush1.bf16.xpose.msra.mxu0 0
        %968 = vmatprep.subr.bf16.mxu0 0
        %969 = vmatpush1.bf16.xpose.msra.mxu0 0
        %970 = vmatprep.subr.bf16.mxu0 0
        %971 = vmatpush1.bf16.xpose.msra.mxu0 0
        %972 = vmatprep.subr.bf16.mxu0 0
        %973 = vmatpush1.bf16.xpose.msra.mxu0 0
        %974 = vmatprep.subr.bf16.mxu0 0
        %975 = vmatpush1.bf16.xpose.msra.mxu0 0
        %976 = vmatprep.subr.bf16.mxu0 0
        %977 = vmatpush1.bf16.xpose.msra.mxu0 0
        %978 = vmatprep.subr.bf16.mxu0 0
        %979 = vmatpush1.bf16.xpose.msra.mxu0 0
        %980 = vmatprep.subr.bf16.mxu0 0
        %981 = vmatpush1.bf16.xpose.msra.mxu0 %v964
        %982 = vmatprep.subr.bf16.mxu0 0
        %983 = vmatpush2.bf16.xpose.msra.mxu0 0
        %984 = vmatprep.subr.bf16.mxu0 0
        %985 = vmatpush2.bf16.xpose.msra.mxu0 0
        %986 = vmatprep.subr.bf16.mxu0 0
        %987 = vmatpush2.bf16.xpose.msra.mxu0 0
        %988 = vmatprep.subr.bf16.mxu0 0
        %989 = vmatpush2.bf16.xpose.msra.mxu0 0
        %990 = vmatprep.subr.bf16.mxu0 0
        %991 = vmatpush2.bf16.xpose.msra.mxu0 0
        %992 = vmatprep.subr.bf16.mxu0 0
        %993 = vmatpush2.bf16.xpose.msra.mxu0 0
        %994 = vmatprep.subr.bf16.mxu0 0
        %995 = vmatpush2.bf16.xpose.msra.mxu0 0
        %996 = vmatprep.subr.bf16.mxu0 0
        %997 = vmatpush2.bf16.xpose.msra.mxu0 0
        %998 = vmatprep.mubr.bf16.mxu0 0
        %999 = vmatmul.mubr.bf16.gmra.mxu0 %v961
        %v1000 = vpop.f32.mrf.mxu0
        %v1001 = vadd.f32 %v662, %v1000
        %v1002 = vpop.f32.mrf.mxu0
        %v1003 = vpop.f32.mrf.mxu0
        %v1004 = vpop.f32.mrf.mxu0
        %1005 = vdwg.mxu0
        %1006 = vrot.lane.b32.xlu0 %v735, 120
        %v1007 = vpop.permute.xlu0 %1006
        %1008 = vrot.lane.b32.xlu0 %v735, 88
        %v1009 = vpop.permute.xlu0 %1008
        %v1011 = vsel %vm739, %v1007, 0
        %v1014 = vsel %vm739, %v1009, 0
        %1016 = vmatprep.subr.bf16.mxu0 0
        %1017 = vmatpush1.bf16.xpose.msra.mxu0 0
        %1018 = vmatprep.subr.bf16.mxu0 0
        %1019 = vmatpush1.bf16.xpose.msra.mxu0 0
        %1020 = vmatprep.subr.bf16.mxu0 0
        %1021 = vmatpush1.bf16.xpose.msra.mxu0 0
        %1022 = vmatprep.subr.bf16.mxu0 0
        %1023 = vmatpush1.bf16.xpose.msra.mxu0 0
        %1024 = vmatprep.subr.bf16.mxu0 0
        %1025 = vmatpush1.bf16.xpose.msra.mxu0 0
        %1026 = vmatprep.subr.bf16.mxu0 0
        %1027 = vmatpush1.bf16.xpose.msra.mxu0 0
        %1028 = vmatprep.subr.bf16.mxu0 0
        %1029 = vmatpush1.bf16.xpose.msra.mxu0 0
        %1030 = vmatprep.subr.bf16.mxu0 0
        %1031 = vmatpush1.bf16.xpose.msra.mxu0 %v1014
        %1032 = vmatprep.subr.bf16.mxu0 0
        %1033 = vmatpush2.bf16.xpose.msra.mxu0 0
        %1034 = vmatprep.subr.bf16.mxu0 0
        %1035 = vmatpush2.bf16.xpose.msra.mxu0 0
        %1036 = vmatprep.subr.bf16.mxu0 0
        %1037 = vmatpush2.bf16.xpose.msra.mxu0 0
        %1038 = vmatprep.subr.bf16.mxu0 0
        %1039 = vmatpush2.bf16.xpose.msra.mxu0 0
        %1040 = vmatprep.subr.bf16.mxu0 0
        %1041 = vmatpush2.bf16.xpose.msra.mxu0 0
        %1042 = vmatprep.subr.bf16.mxu0 0
        %1043 = vmatpush2.bf16.xpose.msra.mxu0 0
        %1044 = vmatprep.subr.bf16.mxu0 0
        %1045 = vmatpush2.bf16.xpose.msra.mxu0 0
        %1046 = vmatprep.subr.bf16.mxu0 0
        %1047 = vmatpush2.bf16.xpose.msra.mxu0 0
        %1048 = vmatprep.mubr.bf16.mxu0 0
        %1049 = vmatmul.mubr.bf16.gmra.mxu0 %v1011
        %v1050 = vpop.f32.mrf.mxu0
        %v1051 = vadd.f32 %v662, %v1050
        %v1052 = vpop.f32.mrf.mxu0
        %v1053 = vpop.f32.mrf.mxu0
        %v1054 = vpop.f32.mrf.mxu0
        %1055 = vdwg.mxu0
        %v1056 = vsel %vm739, %v1001, -inf
        %1057 = vmax.xlane.f32.xlu0 %v1056
        %v1058 = vpop.xlane.xlu0 %1057
        %v1059 = vsel %vm739, %v1051, -inf
        %1060 = vmax.xlane.f32.xlu0 %v1059
        %v1061 = vpop.xlane.xlu0 %1060
        %v1062 = vsub.f32 %v1001, %v1058
        %v1063 = vsub.f32 %v1051, %v1061
        %v1064 = vmul.f32 %v1062, 1.442695
        %v1065 = vpow.pop %v1064
        %v1066 = vmul.f32 %v1063, 1.442695
        %v1067 = vpow.pop %v1066
        %v1068 = vsel %vm739, %v1065, 0.0
        %1069 = vadd.xlane.f32.xlu0 %v1068
        %v1070 = vpop.xlane.xlu0 %1069
        %v1071 = vsel %vm739, %v1067, 0.0
        %1072 = vadd.xlane.f32.xlu0 %v1071
        %v1073 = vpop.xlane.xlu0 %1072
        %v1074 = vrcp.pop %v1070
        %v1075 = vrcp.pop %v1073
        %v1076 = vmul.f32 %v1065, %v1074
        %v1077 = vmul.f32 %v1067, %v1075
        %v1078 = vpack.c.bf16 %v1076, %v1076
        %v1079 = vpack.c.bf16 %v1077, %v1077
        %1080 = vrot.lane.b32.xlu0 %v734, 56
        %v1081 = vpop.permute.xlu0 %1080
        %v1083 = vsel %vm739, %v1078, 0
        %v1086 = vsel %vm864, %v1081, 0
        %1088 = vmatprep.subr.bf16.mxu0 0
        %1089 = vmatpush1.bf16.msra.mxu0 0
        %1090 = vmatprep.subr.bf16.mxu0 0
        %1091 = vmatpush1.bf16.msra.mxu0 0
        %1092 = vmatprep.subr.bf16.mxu0 0
        %1093 = vmatpush1.bf16.msra.mxu0 0
        %1094 = vmatprep.subr.bf16.mxu0 0
        %1095 = vmatpush1.bf16.msra.mxu0 0
        %1096 = vmatprep.subr.bf16.mxu0 0
        %1097 = vmatpush1.bf16.msra.mxu0 0
        %1098 = vmatprep.subr.bf16.mxu0 0
        %1099 = vmatpush1.bf16.msra.mxu0 0
        %1100 = vmatprep.subr.bf16.mxu0 0
        %1101 = vmatpush1.bf16.msra.mxu0 0
        %1102 = vmatprep.subr.bf16.mxu0 0
        %1103 = vmatpush1.bf16.msra.mxu0 %v1086
        %1104 = vmatprep.subr.bf16.mxu0 0
        %1105 = vmatpush2.bf16.msra.mxu0 0
        %1106 = vmatprep.subr.bf16.mxu0 0
        %1107 = vmatpush2.bf16.msra.mxu0 0
        %1108 = vmatprep.subr.bf16.mxu0 0
        %1109 = vmatpush2.bf16.msra.mxu0 0
        %1110 = vmatprep.subr.bf16.mxu0 0
        %1111 = vmatpush2.bf16.msra.mxu0 0
        %1112 = vmatprep.subr.bf16.mxu0 0
        %1113 = vmatpush2.bf16.msra.mxu0 0
        %1114 = vmatprep.subr.bf16.mxu0 0
        %1115 = vmatpush2.bf16.msra.mxu0 0
        %1116 = vmatprep.subr.bf16.mxu0 0
        %1117 = vmatpush2.bf16.msra.mxu0 0
        %1118 = vmatprep.subr.bf16.mxu0 0
        %1119 = vmatpush2.bf16.msra.mxu0 0
        %1120 = vmatprep.mubr.bf16.mxu0 0
        %1121 = vmatmul.mubr.bf16.gmra.mxu0 %v1083
        %v1122 = vpop.f32.mrf.mxu0
        %v1123 = vadd.f32 0.0, %v1122
        %v1124 = vpop.f32.mrf.mxu0
        %v1125 = vpop.f32.mrf.mxu0
        %v1126 = vpop.f32.mrf.mxu0
        %1127 = vdwg.mxu0
        %1128 = vrot.lane.b32.xlu0 %v735, 56
        %v1129 = vpop.permute.xlu0 %1128
        %v1131 = vsel %vm739, %v1079, 0
        %v1134 = vsel %vm864, %v1129, 0
        %1136 = vmatprep.subr.bf16.mxu0 0
        %1137 = vmatpush1.bf16.msra.mxu0 0
        %1138 = vmatprep.subr.bf16.mxu0 0
        %1139 = vmatpush1.bf16.msra.mxu0 0
        %1140 = vmatprep.subr.bf16.mxu0 0
        %1141 = vmatpush1.bf16.msra.mxu0 0
        %1142 = vmatprep.subr.bf16.mxu0 0
        %1143 = vmatpush1.bf16.msra.mxu0 0
        %1144 = vmatprep.subr.bf16.mxu0 0
        %1145 = vmatpush1.bf16.msra.mxu0 0
        %1146 = vmatprep.subr.bf16.mxu0 0
        %1147 = vmatpush1.bf16.msra.mxu0 0
        %1148 = vmatprep.subr.bf16.mxu0 0
        %1149 = vmatpush1.bf16.msra.mxu0 0
        %1150 = vmatprep.subr.bf16.mxu0 0
        %1151 = vmatpush1.bf16.msra.mxu0 %v1134
        %1152 = vmatprep.subr.bf16.mxu0 0
        %1153 = vmatpush2.bf16.msra.mxu0 0
        %1154 = vmatprep.subr.bf16.mxu0 0
        %1155 = vmatpush2.bf16.msra.mxu0 0
        %1156 = vmatprep.subr.bf16.mxu0 0
        %1157 = vmatpush2.bf16.msra.mxu0 0
        %1158 = vmatprep.subr.bf16.mxu0 0
        %1159 = vmatpush2.bf16.msra.mxu0 0
        %1160 = vmatprep.subr.bf16.mxu0 0
        %1161 = vmatpush2.bf16.msra.mxu0 0
        %1162 = vmatprep.subr.bf16.mxu0 0
        %1163 = vmatpush2.bf16.msra.mxu0 0
        %1164 = vmatprep.subr.bf16.mxu0 0
        %1165 = vmatpush2.bf16.msra.mxu0 0
        %1166 = vmatprep.subr.bf16.mxu0 0
        %1167 = vmatpush2.bf16.msra.mxu0 0
        %1168 = vmatprep.mubr.bf16.mxu0 0
        %1169 = vmatmul.mubr.bf16.gmra.mxu0 %v1131
        %v1170 = vpop.f32.mrf.mxu0
        %v1171 = vadd.f32 0.0, %v1170
        %v1172 = vpop.f32.mrf.mxu0
        %v1173 = vpop.f32.mrf.mxu0
        %v1174 = vpop.f32.mrf.mxu0
        %1175 = vdwg.mxu0
        %1176 = vrot.lane.b32.xlu0 %v734, 112
        %v1177 = vpop.permute.xlu0 %1176
        %1178 = vrot.lane.b32.xlu0 %v734, 80
        %v1179 = vpop.permute.xlu0 %1178
        %v1181 = vsel %vm739, %v1177, 0
        %v1184 = vsel %vm739, %v1179, 0
        %1186 = vmatprep.subr.bf16.mxu0 0
        %1187 = vmatpush1.bf16.xpose.msra.mxu0 0
        %1188 = vmatprep.subr.bf16.mxu0 0
        %1189 = vmatpush1.bf16.xpose.msra.mxu0 0
        %1190 = vmatprep.subr.bf16.mxu0 0
        %1191 = vmatpush1.bf16.xpose.msra.mxu0 0
        %1192 = vmatprep.subr.bf16.mxu0 0
        %1193 = vmatpush1.bf16.xpose.msra.mxu0 0
        %1194 = vmatprep.subr.bf16.mxu0 0
        %1195 = vmatpush1.bf16.xpose.msra.mxu0 0
        %1196 = vmatprep.subr.bf16.mxu0 0
        %1197 = vmatpush1.bf16.xpose.msra.mxu0 0
        %1198 = vmatprep.subr.bf16.mxu0 0
        %1199 = vmatpush1.bf16.xpose.msra.mxu0 0
        %1200 = vmatprep.subr.bf16.mxu0 0
        %1201 = vmatpush1.bf16.xpose.msra.mxu0 %v1184
        %1202 = vmatprep.subr.bf16.mxu0 0
        %1203 = vmatpush2.bf16.xpose.msra.mxu0 0
        %1204 = vmatprep.subr.bf16.mxu0 0
        %1205 = vmatpush2.bf16.xpose.msra.mxu0 0
        %1206 = vmatprep.subr.bf16.mxu0 0
        %1207 = vmatpush2.bf16.xpose.msra.mxu0 0
        %1208 = vmatprep.subr.bf16.mxu0 0
        %1209 = vmatpush2.bf16.xpose.msra.mxu0 0
        %1210 = vmatprep.subr.bf16.mxu0 0
        %1211 = vmatpush2.bf16.xpose.msra.mxu0 0
        %1212 = vmatprep.subr.bf16.mxu0 0
        %1213 = vmatpush2.bf16.xpose.msra.mxu0 0
        %1214 = vmatprep.subr.bf16.mxu0 0
        %1215 = vmatpush2.bf16.xpose.msra.mxu0 0
        %1216 = vmatprep.subr.bf16.mxu0 0
        %1217 = vmatpush2.bf16.xpose.msra.mxu0 0
        %1218 = vmatprep.mubr.bf16.mxu0 0
        %1219 = vmatmul.mubr.bf16.gmra.mxu0 %v1181
        %v1220 = vpop.f32.mrf.mxu0
        %v1221 = vadd.f32 %v662, %v1220
        %v1222 = vpop.f32.mrf.mxu0
        %v1223 = vpop.f32.mrf.mxu0
        %v1224 = vpop.f32.mrf.mxu0
        %1225 = vdwg.mxu0
        %1226 = vrot.lane.b32.xlu0 %v735, 112
        %v1227 = vpop.permute.xlu0 %1226
        %1228 = vrot.lane.b32.xlu0 %v735, 80
        %v1229 = vpop.permute.xlu0 %1228
        %v1231 = vsel %vm739, %v1227, 0
        %v1234 = vsel %vm739, %v1229, 0
        %1236 = vmatprep.subr.bf16.mxu0 0
        %1237 = vmatpush1.bf16.xpose.msra.mxu0 0
        %1238 = vmatprep.subr.bf16.mxu0 0
        %1239 = vmatpush1.bf16.xpose.msra.mxu0 0
        %1240 = vmatprep.subr.bf16.mxu0 0
        %1241 = vmatpush1.bf16.xpose.msra.mxu0 0
        %1242 = vmatprep.subr.bf16.mxu0 0
        %1243 = vmatpush1.bf16.xpose.msra.mxu0 0
        %1244 = vmatprep.subr.bf16.mxu0 0
        %1245 = vmatpush1.bf16.xpose.msra.mxu0 0
        %1246 = vmatprep.subr.bf16.mxu0 0
        %1247 = vmatpush1.bf16.xpose.msra.mxu0 0
        %1248 = vmatprep.subr.bf16.mxu0 0
        %1249 = vmatpush1.bf16.xpose.msra.mxu0 0
        %1250 = vmatprep.subr.bf16.mxu0 0
        %1251 = vmatpush1.bf16.xpose.msra.mxu0 %v1234
        %1252 = vmatprep.subr.bf16.mxu0 0
        %1253 = vmatpush2.bf16.xpose.msra.mxu0 0
        %1254 = vmatprep.subr.bf16.mxu0 0
        %1255 = vmatpush2.bf16.xpose.msra.mxu0 0
        %1256 = vmatprep.subr.bf16.mxu0 0
        %1257 = vmatpush2.bf16.xpose.msra.mxu0 0
        %1258 = vmatprep.subr.bf16.mxu0 0
        %1259 = vmatpush2.bf16.xpose.msra.mxu0 0
        %1260 = vmatprep.subr.bf16.mxu0 0
        %1261 = vmatpush2.bf16.xpose.msra.mxu0 0
        %1262 = vmatprep.subr.bf16.mxu0 0
        %1263 = vmatpush2.bf16.xpose.msra.mxu0 0
        %1264 = vmatprep.subr.bf16.mxu0 0
        %1265 = vmatpush2.bf16.xpose.msra.mxu0 0
        %1266 = vmatprep.subr.bf16.mxu0 0
        %1267 = vmatpush2.bf16.xpose.msra.mxu0 0
        %1268 = vmatprep.mubr.bf16.mxu0 0
        %1269 = vmatmul.mubr.bf16.gmra.mxu0 %v1231
        %v1270 = vpop.f32.mrf.mxu0
        %v1271 = vadd.f32 %v662, %v1270
        %v1272 = vpop.f32.mrf.mxu0
        %v1273 = vpop.f32.mrf.mxu0
        %v1274 = vpop.f32.mrf.mxu0
        %1275 = vdwg.mxu0
        %v1276 = vsel %vm739, %v1221, -inf
        %1277 = vmax.xlane.f32.xlu0 %v1276
        %v1278 = vpop.xlane.xlu0 %1277
        %v1279 = vsel %vm739, %v1271, -inf
        %1280 = vmax.xlane.f32.xlu0 %v1279
        %v1281 = vpop.xlane.xlu0 %1280
        %v1282 = vsub.f32 %v1221, %v1278
        %v1283 = vsub.f32 %v1271, %v1281
        %v1284 = vmul.f32 %v1282, 1.442695
        %v1285 = vpow.pop %v1284
        %v1286 = vmul.f32 %v1283, 1.442695
        %v1287 = vpow.pop %v1286
        %v1288 = vsel %vm739, %v1285, 0.0
        %1289 = vadd.xlane.f32.xlu0 %v1288
        %v1290 = vpop.xlane.xlu0 %1289
        %v1291 = vsel %vm739, %v1287, 0.0
        %1292 = vadd.xlane.f32.xlu0 %v1291
        %v1293 = vpop.xlane.xlu0 %1292
        %v1294 = vrcp.pop %v1290
        %v1295 = vrcp.pop %v1293
        %v1296 = vmul.f32 %v1285, %v1294
        %v1297 = vmul.f32 %v1287, %v1295
        %v1298 = vpack.c.bf16 %v1296, %v1296
        %v1299 = vpack.c.bf16 %v1297, %v1297
        %1300 = vrot.lane.b32.xlu0 %v734, 48
        %v1301 = vpop.permute.xlu0 %1300
        %v1303 = vsel %vm739, %v1298, 0
        %v1306 = vsel %vm864, %v1301, 0
        %1308 = vmatprep.subr.bf16.mxu0 0
        %1309 = vmatpush1.bf16.msra.mxu0 0
        %1310 = vmatprep.subr.bf16.mxu0 0
        %1311 = vmatpush1.bf16.msra.mxu0 0
        %1312 = vmatprep.subr.bf16.mxu0 0
        %1313 = vmatpush1.bf16.msra.mxu0 0
        %1314 = vmatprep.subr.bf16.mxu0 0
        %1315 = vmatpush1.bf16.msra.mxu0 0
        %1316 = vmatprep.subr.bf16.mxu0 0
        %1317 = vmatpush1.bf16.msra.mxu0 0
        %1318 = vmatprep.subr.bf16.mxu0 0
        %1319 = vmatpush1.bf16.msra.mxu0 0
        %1320 = vmatprep.subr.bf16.mxu0 0
        %1321 = vmatpush1.bf16.msra.mxu0 0
        %1322 = vmatprep.subr.bf16.mxu0 0
        %1323 = vmatpush1.bf16.msra.mxu0 %v1306
        %1324 = vmatprep.subr.bf16.mxu0 0
        %1325 = vmatpush2.bf16.msra.mxu0 0
        %1326 = vmatprep.subr.bf16.mxu0 0
        %1327 = vmatpush2.bf16.msra.mxu0 0
        %1328 = vmatprep.subr.bf16.mxu0 0
        %1329 = vmatpush2.bf16.msra.mxu0 0
        %1330 = vmatprep.subr.bf16.mxu0 0
        %1331 = vmatpush2.bf16.msra.mxu0 0
        %1332 = vmatprep.subr.bf16.mxu0 0
        %1333 = vmatpush2.bf16.msra.mxu0 0
        %1334 = vmatprep.subr.bf16.mxu0 0
        %1335 = vmatpush2.bf16.msra.mxu0 0
        %1336 = vmatprep.subr.bf16.mxu0 0
        %1337 = vmatpush2.bf16.msra.mxu0 0
        %1338 = vmatprep.subr.bf16.mxu0 0
        %1339 = vmatpush2.bf16.msra.mxu0 0
        %1340 = vmatprep.mubr.bf16.mxu0 0
        %1341 = vmatmul.mubr.bf16.gmra.mxu0 %v1303
        %v1342 = vpop.f32.mrf.mxu0
        %v1343 = vadd.f32 0.0, %v1342
        %v1344 = vpop.f32.mrf.mxu0
        %v1345 = vpop.f32.mrf.mxu0
        %v1346 = vpop.f32.mrf.mxu0
        %1347 = vdwg.mxu0
        %1348 = vrot.lane.b32.xlu0 %v735, 48
        %v1349 = vpop.permute.xlu0 %1348
        %v1351 = vsel %vm739, %v1299, 0
        %v1354 = vsel %vm864, %v1349, 0
        %1356 = vmatprep.subr.bf16.mxu0 0
        %1357 = vmatpush1.bf16.msra.mxu0 0
        %1358 = vmatprep.subr.bf16.mxu0 0
        %1359 = vmatpush1.bf16.msra.mxu0 0
        %1360 = vmatprep.subr.bf16.mxu0 0
        %1361 = vmatpush1.bf16.msra.mxu0 0
        %1362 = vmatprep.subr.bf16.mxu0 0
        %1363 = vmatpush1.bf16.msra.mxu0 0
        %1364 = vmatprep.subr.bf16.mxu0 0
        %1365 = vmatpush1.bf16.msra.mxu0 0
        %1366 = vmatprep.subr.bf16.mxu0 0
        %1367 = vmatpush1.bf16.msra.mxu0 0
        %1368 = vmatprep.subr.bf16.mxu0 0
        %1369 = vmatpush1.bf16.msra.mxu0 0
        %1370 = vmatprep.subr.bf16.mxu0 0
        %1371 = vmatpush1.bf16.msra.mxu0 %v1354
        %1372 = vmatprep.subr.bf16.mxu0 0
        %1373 = vmatpush2.bf16.msra.mxu0 0
        %1374 = vmatprep.subr.bf16.mxu0 0
        %1375 = vmatpush2.bf16.msra.mxu0 0
        %1376 = vmatprep.subr.bf16.mxu0 0
        %1377 = vmatpush2.bf16.msra.mxu0 0
        %1378 = vmatprep.subr.bf16.mxu0 0
        %1379 = vmatpush2.bf16.msra.mxu0 0
        %1380 = vmatprep.subr.bf16.mxu0 0
        %1381 = vmatpush2.bf16.msra.mxu0 0
        %1382 = vmatprep.subr.bf16.mxu0 0
        %1383 = vmatpush2.bf16.msra.mxu0 0
        %1384 = vmatprep.subr.bf16.mxu0 0
        %1385 = vmatpush2.bf16.msra.mxu0 0
        %1386 = vmatprep.subr.bf16.mxu0 0
        %1387 = vmatpush2.bf16.msra.mxu0 0
        %1388 = vmatprep.mubr.bf16.mxu0 0
        %1389 = vmatmul.mubr.bf16.gmra.mxu0 %v1351
        %v1390 = vpop.f32.mrf.mxu0
        %v1391 = vadd.f32 0.0, %v1390
        %v1392 = vpop.f32.mrf.mxu0
        %v1393 = vpop.f32.mrf.mxu0
        %v1394 = vpop.f32.mrf.mxu0
        %1395 = vdwg.mxu0
        %1396 = vrot.lane.b32.xlu0 %v734, 104
        %v1397 = vpop.permute.xlu0 %1396
        %1398 = vrot.lane.b32.xlu0 %v734, 72
        %v1399 = vpop.permute.xlu0 %1398
        %v1401 = vsel %vm739, %v1397, 0
        %v1404 = vsel %vm739, %v1399, 0
        %1406 = vmatprep.subr.bf16.mxu0 0
        %1407 = vmatpush1.bf16.xpose.msra.mxu0 0
        %1408 = vmatprep.subr.bf16.mxu0 0
        %1409 = vmatpush1.bf16.xpose.msra.mxu0 0
        %1410 = vmatprep.subr.bf16.mxu0 0
        %1411 = vmatpush1.bf16.xpose.msra.mxu0 0
        %1412 = vmatprep.subr.bf16.mxu0 0
        %1413 = vmatpush1.bf16.xpose.msra.mxu0 0
        %1414 = vmatprep.subr.bf16.mxu0 0
        %1415 = vmatpush1.bf16.xpose.msra.mxu0 0
        %1416 = vmatprep.subr.bf16.mxu0 0
        %1417 = vmatpush1.bf16.xpose.msra.mxu0 0
        %1418 = vmatprep.subr.bf16.mxu0 0
        %1419 = vmatpush1.bf16.xpose.msra.mxu0 0
        %1420 = vmatprep.subr.bf16.mxu0 0
        %1421 = vmatpush1.bf16.xpose.msra.mxu0 %v1404
        %1422 = vmatprep.subr.bf16.mxu0 0
        %1423 = vmatpush2.bf16.xpose.msra.mxu0 0
        %1424 = vmatprep.subr.bf16.mxu0 0
        %1425 = vmatpush2.bf16.xpose.msra.mxu0 0
        %1426 = vmatprep.subr.bf16.mxu0 0
        %1427 = vmatpush2.bf16.xpose.msra.mxu0 0
        %1428 = vmatprep.subr.bf16.mxu0 0
        %1429 = vmatpush2.bf16.xpose.msra.mxu0 0
        %1430 = vmatprep.subr.bf16.mxu0 0
        %1431 = vmatpush2.bf16.xpose.msra.mxu0 0
        %1432 = vmatprep.subr.bf16.mxu0 0
        %1433 = vmatpush2.bf16.xpose.msra.mxu0 0
        %1434 = vmatprep.subr.bf16.mxu0 0
        %1435 = vmatpush2.bf16.xpose.msra.mxu0 0
        %1436 = vmatprep.subr.bf16.mxu0 0
        %1437 = vmatpush2.bf16.xpose.msra.mxu0 0
        %1438 = vmatprep.mubr.bf16.mxu0 0
        %1439 = vmatmul.mubr.bf16.gmra.mxu0 %v1401
        %v1440 = vpop.f32.mrf.mxu0
        %v1441 = vadd.f32 %v662, %v1440
        %v1442 = vpop.f32.mrf.mxu0
        %v1443 = vpop.f32.mrf.mxu0
        %v1444 = vpop.f32.mrf.mxu0
        %1445 = vdwg.mxu0
        %1446 = vrot.lane.b32.xlu0 %v735, 104
        %v1447 = vpop.permute.xlu0 %1446
        %1448 = vrot.lane.b32.xlu0 %v735, 72
        %v1449 = vpop.permute.xlu0 %1448
        %v1451 = vsel %vm739, %v1447, 0
        %v1454 = vsel %vm739, %v1449, 0
        %1456 = vmatprep.subr.bf16.mxu0 0
        %1457 = vmatpush1.bf16.xpose.msra.mxu0 0
        %1458 = vmatprep.subr.bf16.mxu0 0
        %1459 = vmatpush1.bf16.xpose.msra.mxu0 0
        %1460 = vmatprep.subr.bf16.mxu0 0
        %1461 = vmatpush1.bf16.xpose.msra.mxu0 0
        %1462 = vmatprep.subr.bf16.mxu0 0
        %1463 = vmatpush1.bf16.xpose.msra.mxu0 0
        %1464 = vmatprep.subr.bf16.mxu0 0
        %1465 = vmatpush1.bf16.xpose.msra.mxu0 0
        %1466 = vmatprep.subr.bf16.mxu0 0
        %1467 = vmatpush1.bf16.xpose.msra.mxu0 0
        %1468 = vmatprep.subr.bf16.mxu0 0
        %1469 = vmatpush1.bf16.xpose.msra.mxu0 0
        %1470 = vmatprep.subr.bf16.mxu0 0
        %1471 = vmatpush1.bf16.xpose.msra.mxu0 %v1454
        %1472 = vmatprep.subr.bf16.mxu0 0
        %1473 = vmatpush2.bf16.xpose.msra.mxu0 0
        %1474 = vmatprep.subr.bf16.mxu0 0
        %1475 = vmatpush2.bf16.xpose.msra.mxu0 0
        %1476 = vmatprep.subr.bf16.mxu0 0
        %1477 = vmatpush2.bf16.xpose.msra.mxu0 0
        %1478 = vmatprep.subr.bf16.mxu0 0
        %1479 = vmatpush2.bf16.xpose.msra.mxu0 0
        %1480 = vmatprep.subr.bf16.mxu0 0
        %1481 = vmatpush2.bf16.xpose.msra.mxu0 0
        %1482 = vmatprep.subr.bf16.mxu0 0
        %1483 = vmatpush2.bf16.xpose.msra.mxu0 0
        %1484 = vmatprep.subr.bf16.mxu0 0
        %1485 = vmatpush2.bf16.xpose.msra.mxu0 0
        %1486 = vmatprep.subr.bf16.mxu0 0
        %1487 = vmatpush2.bf16.xpose.msra.mxu0 0
        %1488 = vmatprep.mubr.bf16.mxu0 0
        %1489 = vmatmul.mubr.bf16.gmra.mxu0 %v1451
        %v1490 = vpop.f32.mrf.mxu0
        %v1491 = vadd.f32 %v662, %v1490
        %v1492 = vpop.f32.mrf.mxu0
        %v1493 = vpop.f32.mrf.mxu0
        %v1494 = vpop.f32.mrf.mxu0
        %1495 = vdwg.mxu0
        %v1496 = vsel %vm739, %v1441, -inf
        %1497 = vmax.xlane.f32.xlu0 %v1496
        %v1498 = vpop.xlane.xlu0 %1497
        %v1499 = vsel %vm739, %v1491, -inf
        %1500 = vmax.xlane.f32.xlu0 %v1499
        %v1501 = vpop.xlane.xlu0 %1500
        %v1502 = vsub.f32 %v1441, %v1498
        %v1503 = vsub.f32 %v1491, %v1501
        %v1504 = vmul.f32 %v1502, 1.442695
        %v1505 = vpow.pop %v1504
        %v1506 = vmul.f32 %v1503, 1.442695
        %v1507 = vpow.pop %v1506
        %v1508 = vsel %vm739, %v1505, 0.0
        %1509 = vadd.xlane.f32.xlu0 %v1508
        %v1510 = vpop.xlane.xlu0 %1509
        %v1511 = vsel %vm739, %v1507, 0.0
        %1512 = vadd.xlane.f32.xlu0 %v1511
        %v1513 = vpop.xlane.xlu0 %1512
        %v1514 = vrcp.pop %v1510
        %v1515 = vrcp.pop %v1513
        %v1516 = vmul.f32 %v1505, %v1514
        %v1517 = vmul.f32 %v1507, %v1515
        %v1518 = vpack.c.bf16 %v1516, %v1516
        %v1519 = vpack.c.bf16 %v1517, %v1517
        %1520 = vrot.lane.b32.xlu0 %v734, 40
        %v1521 = vpop.permute.xlu0 %1520
        %v1523 = vsel %vm739, %v1518, 0
        %v1526 = vsel %vm864, %v1521, 0
        %1528 = vmatprep.subr.bf16.mxu0 0
        %1529 = vmatpush1.bf16.msra.mxu0 0
        %1530 = vmatprep.subr.bf16.mxu0 0
        %1531 = vmatpush1.bf16.msra.mxu0 0
        %1532 = vmatprep.subr.bf16.mxu0 0
        %1533 = vmatpush1.bf16.msra.mxu0 0
        %1534 = vmatprep.subr.bf16.mxu0 0
        %1535 = vmatpush1.bf16.msra.mxu0 0
        %1536 = vmatprep.subr.bf16.mxu0 0
        %1537 = vmatpush1.bf16.msra.mxu0 0
        %1538 = vmatprep.subr.bf16.mxu0 0
        %1539 = vmatpush1.bf16.msra.mxu0 0
        %1540 = vmatprep.subr.bf16.mxu0 0
        %1541 = vmatpush1.bf16.msra.mxu0 0
        %1542 = vmatprep.subr.bf16.mxu0 0
        %1543 = vmatpush1.bf16.msra.mxu0 %v1526
        %1544 = vmatprep.subr.bf16.mxu0 0
        %1545 = vmatpush2.bf16.msra.mxu0 0
        %1546 = vmatprep.subr.bf16.mxu0 0
        %1547 = vmatpush2.bf16.msra.mxu0 0
        %1548 = vmatprep.subr.bf16.mxu0 0
        %1549 = vmatpush2.bf16.msra.mxu0 0
        %1550 = vmatprep.subr.bf16.mxu0 0
        %1551 = vmatpush2.bf16.msra.mxu0 0
        %1552 = vmatprep.subr.bf16.mxu0 0
        %1553 = vmatpush2.bf16.msra.mxu0 0
        %1554 = vmatprep.subr.bf16.mxu0 0
        %1555 = vmatpush2.bf16.msra.mxu0 0
        %1556 = vmatprep.subr.bf16.mxu0 0
        %1557 = vmatpush2.bf16.msra.mxu0 0
        %1558 = vmatprep.subr.bf16.mxu0 0
        %1559 = vmatpush2.bf16.msra.mxu0 0
        %1560 = vmatprep.mubr.bf16.mxu0 0
        %1561 = vmatmul.mubr.bf16.gmra.mxu0 %v1523
        %v1562 = vpop.f32.mrf.mxu0
        %v1563 = vadd.f32 0.0, %v1562
        %v1564 = vpop.f32.mrf.mxu0
        %v1565 = vpop.f32.mrf.mxu0
        %v1566 = vpop.f32.mrf.mxu0
        %1567 = vdwg.mxu0
        %1568 = vrot.lane.b32.xlu0 %v735, 40
        %v1569 = vpop.permute.xlu0 %1568
        %v1571 = vsel %vm739, %v1519, 0
        %v1574 = vsel %vm864, %v1569, 0
        %1576 = vmatprep.subr.bf16.mxu0 0
        %1577 = vmatpush1.bf16.msra.mxu0 0
        %1578 = vmatprep.subr.bf16.mxu0 0
        %1579 = vmatpush1.bf16.msra.mxu0 0
        %1580 = vmatprep.subr.bf16.mxu0 0
        %1581 = vmatpush1.bf16.msra.mxu0 0
        %1582 = vmatprep.subr.bf16.mxu0 0
        %1583 = vmatpush1.bf16.msra.mxu0 0
        %1584 = vmatprep.subr.bf16.mxu0 0
        %1585 = vmatpush1.bf16.msra.mxu0 0
        %1586 = vmatprep.subr.bf16.mxu0 0
        %1587 = vmatpush1.bf16.msra.mxu0 0
        %1588 = vmatprep.subr.bf16.mxu0 0
        %1589 = vmatpush1.bf16.msra.mxu0 0
        %1590 = vmatprep.subr.bf16.mxu0 0
        %1591 = vmatpush1.bf16.msra.mxu0 %v1574
        %1592 = vmatprep.subr.bf16.mxu0 0
        %1593 = vmatpush2.bf16.msra.mxu0 0
        %1594 = vmatprep.subr.bf16.mxu0 0
        %1595 = vmatpush2.bf16.msra.mxu0 0
        %1596 = vmatprep.subr.bf16.mxu0 0
        %1597 = vmatpush2.bf16.msra.mxu0 0
        %1598 = vmatprep.subr.bf16.mxu0 0
        %1599 = vmatpush2.bf16.msra.mxu0 0
        %1600 = vmatprep.subr.bf16.mxu0 0
        %1601 = vmatpush2.bf16.msra.mxu0 0
        %1602 = vmatprep.subr.bf16.mxu0 0
        %1603 = vmatpush2.bf16.msra.mxu0 0
        %1604 = vmatprep.subr.bf16.mxu0 0
        %1605 = vmatpush2.bf16.msra.mxu0 0
        %1606 = vmatprep.subr.bf16.mxu0 0
        %1607 = vmatpush2.bf16.msra.mxu0 0
        %1608 = vmatprep.mubr.bf16.mxu0 0
        %1609 = vmatmul.mubr.bf16.gmra.mxu0 %v1571
        %v1610 = vpop.f32.mrf.mxu0
        %v1611 = vadd.f32 0.0, %v1610
        %v1612 = vpop.f32.mrf.mxu0
        %v1613 = vpop.f32.mrf.mxu0
        %v1614 = vpop.f32.mrf.mxu0
        %1615 = vdwg.mxu0
        %1618 = vrot.lane.b32.xlu0 %v1123, 8
        %v1619 = vpop.permute.xlu0 %1618
        %1620 = vrot.lane.b32.xlu0 %v1171, 8
        %v1621 = vpop.permute.xlu0 %1620
        %1626 = vrot.lane.b32.xlu0 %v1343, 16
        %v1627 = vpop.permute.xlu0 %1626
        %1628 = vrot.lane.b32.xlu0 %v1391, 16
        %v1629 = vpop.permute.xlu0 %1628
        %1634 = vrot.lane.b32.xlu0 %v1563, 24
        %v1635 = vpop.permute.xlu0 %1634
        %1636 = vrot.lane.b32.xlu0 %v1611, 24
        %v1637 = vpop.permute.xlu0 %1636
        %v1640 = vsel %vm739, %v903, %v1619
        %v1641 = vsel %vm739, %v951, %v1621
        %vm1642 = vcmask 130048
        %v1643 = vsel %vm1642, %v1640, %v1627
        %v1644 = vsel %vm1642, %v1641, %v1629
        %vm1645 = vcmask 195584
        %v1646 = vsel %vm1645, %v1643, %v1635
        %v1647 = vsel %vm1645, %v1644, %v1637
        %v1648 = vpack.c.bf16 %v1647, %v1646
        %v1649 = vld [vmem:[%s538] sm:$0xf]
        %v1650 = vld [vmem:[%s538 + $0x4] sm:$0xf]
        %v1651 = vld [vmem:[%s538 + $0x8] sm:$0xf]
        %v1652 = vld [vmem:[%s538 + $0xc] sm:$0xf]
        %v1653 = vld [vmem:[%s628] sm:$0x1]
        %v1655 = vlaneseq
        %v1656 = vshrl.u32 %v1655, 7
        %v1657 = vsub.s32 0, %v1656
        %v1658 = vrot.slane %v1653, %v1657
        %v1664 = vunpack.c.l.b16 %v1649
        %v1665 = vunpack.c.l.b16 %v1650
        %v1666 = vunpack.c.l.b16 %v1651
        %v1667 = vunpack.c.l.b16 %v1652
        %v1668 = vpack.c.b16 %v1665, %v1664
        %v1669 = vpack.c.b16 %v1667, %v1666
        %v1673 = vsel %vm689, %v1648, 0
        %1675 = vmatprep.subr.bf16.mxu0 0
        %1676 = vmatpush1.bf16.msra.mxu0 0
        %1677 = vmatprep.subr.bf16.mxu0 0
        %1678 = vmatpush1.bf16.msra.mxu0 0
        %1679 = vmatprep.subr.bf16.mxu0 0
        %1680 = vmatpush1.bf16.msra.mxu0 0
        %1681 = vmatprep.subr.bf16.mxu0 0
        %1682 = vmatpush1.bf16.msra.mxu0 0
        %1683 = vmatprep.subr.bf16.mxu0 0
        %1684 = vmatpush1.bf16.msra.mxu0 0
        %1685 = vmatprep.subr.bf16.mxu0 0
        %1686 = vmatpush1.bf16.msra.mxu0 0
        %1687 = vmatprep.subr.bf16.mxu0 0
        %1688 = vmatpush1.bf16.msra.mxu0 %v1669
        %1689 = vmatprep.subr.bf16.mxu0 0
        %1690 = vmatpush1.bf16.msra.mxu0 %v1668
        %1691 = vmatprep.subr.bf16.mxu0 0
        %1692 = vmatpush2.bf16.msra.mxu0 0
        %1693 = vmatprep.subr.bf16.mxu0 0
        %1694 = vmatpush2.bf16.msra.mxu0 0
        %1695 = vmatprep.subr.bf16.mxu0 0
        %1696 = vmatpush2.bf16.msra.mxu0 0
        %1697 = vmatprep.subr.bf16.mxu0 0
        %1698 = vmatpush2.bf16.msra.mxu0 0
        %1699 = vmatprep.subr.bf16.mxu0 0
        %1700 = vmatpush2.bf16.msra.mxu0 0
        %1701 = vmatprep.subr.bf16.mxu0 0
        %1702 = vmatpush2.bf16.msra.mxu0 0
        %1703 = vmatprep.subr.bf16.mxu0 0
        %1704 = vmatpush2.bf16.msra.mxu0 0
        %1705 = vmatprep.subr.bf16.mxu0 0
        %1706 = vmatpush2.bf16.msra.mxu0 0
        %1707 = vmatprep.mubr.bf16.mxu0 0
        %1708 = vmatmul.mubr.bf16.gmra.mxu0 %v1673
        %v1709 = vpop.f32.mrf.mxu0
        %v1710 = vadd.f32 %v1658, %v1709
        %v1711 = vpop.f32.mrf.mxu0
        %v1712 = vpop.f32.mrf.mxu0
        %v1713 = vadd.f32 %v1658, %v1712
        %v1714 = vpop.f32.mrf.mxu0
        %1715 = vdwg.mxu0
        %v1716 = vadd.f32 %v650, %v1710
        %v1717 = vadd.f32 %v651, %v1713
        %v1718 = vsel %vm689, %v1716, 0.0
        %1719 = vadd.xlane.f32.xlu0 %v1718
        %v1720 = vpop.xlane.xlu0 %1719
        %v1721 = vsel %vm689, %v1717, 0.0
        %1722 = vadd.xlane.f32.xlu0 %v1721
        %v1723 = vpop.xlane.xlu0 %1722
        %v1724 = vrcp.pop 32.0
        %v1725 = vmul.f32 %v1720, %v1724
        %v1726 = vmul.f32 %v1723, %v1724
        %v1727 = vsub.f32 %v1716, %v1725
        %v1728 = vsub.f32 %v1717, %v1726
        %v1729 = vmul.f32 %v1727, %v1727
        %v1730 = vmul.f32 %v1728, %v1728
        %v1731 = vsel %vm689, %v1729, 0.0
        %1732 = vadd.xlane.f32.xlu0 %v1731
        %v1733 = vpop.xlane.xlu0 %1732
        %v1734 = vsel %vm689, %v1730, 0.0
        %1735 = vadd.xlane.f32.xlu0 %v1734
        %v1736 = vpop.xlane.xlu0 %1735
        %v1737 = vmul.f32 %v1733, %v1724
        %v1738 = vmul.f32 %v1736, %v1724
        %v1739 = vadd.f32 %v1737, 1e-05
        %v1740 = vadd.f32 %v1738, 1e-05
        %v1741 = vrsqrt.pop %v1739
        %v1742 = vrsqrt.pop %v1740
        %v1743 = vmul.f32 %v1727, %v1741
        %v1744 = vmul.f32 %v1728, %v1742
        %v1745 = vlaneseq
        %v1746 = vshrl.u32 %v1745, 7
        %v1747 = vsub.s32 0, %v1746
        %v1748 = vrot.slane %v656, %v1747
        %v1749 = vmul.f32 %v1743, %v1748
        %v1750 = vmul.f32 %v1744, %v1748
        %v1751 = vlaneseq
        %v1752 = vshrl.u32 %v1751, 7
        %v1753 = vsub.s32 1, %v1752
        %v1754 = vrot.slane %v656, %v1753
        %v1755 = vadd.f32 %v1749, %v1754
        %v1756 = vadd.f32 %v1750, %v1754
        %v1757 = vld [vmem:[%s547] sm:$0xf]
        %v1758 = vld [vmem:[%s547 + $0x4] sm:$0xf]
        %v1759 = vld [vmem:[%s547 + $0x8] sm:$0xf]
        %v1760 = vld [vmem:[%s547 + $0xc] sm:$0xf]
        %v1761 = vld [vmem:[%s631] sm:$0x1]
        %v1762 = vpack.c.bf16 %v1756, %v1755
        %v1764 = vlaneseq
        %v1765 = vshrl.u32 %v1764, 7
        %v1766 = vsub.s32 0, %v1765
        %v1767 = vrot.slane %v1761, %v1766
        %v1773 = vunpack.c.l.b16 %v1757
        %v1774 = vunpack.c.l.b16 %v1758
        %v1775 = vunpack.c.l.b16 %v1759
        %v1776 = vunpack.c.l.b16 %v1760
        %v1777 = vpack.c.b16 %v1774, %v1773
        %v1778 = vpack.c.b16 %v1776, %v1775
        %v1782 = vsel %vm689, %v1762, 0
        %1784 = vmatprep.subr.bf16.mxu0 0
        %1785 = vmatpush1.bf16.msra.mxu0 0
        %1786 = vmatprep.subr.bf16.mxu0 0
        %1787 = vmatpush1.bf16.msra.mxu0 0
        %1788 = vmatprep.subr.bf16.mxu0 0
        %1789 = vmatpush1.bf16.msra.mxu0 0
        %1790 = vmatprep.subr.bf16.mxu0 0
        %1791 = vmatpush1.bf16.msra.mxu0 0
        %1792 = vmatprep.subr.bf16.mxu0 0
        %1793 = vmatpush1.bf16.msra.mxu0 0
        %1794 = vmatprep.subr.bf16.mxu0 0
        %1795 = vmatpush1.bf16.msra.mxu0 0
        %1796 = vmatprep.subr.bf16.mxu0 0
        %1797 = vmatpush1.bf16.msra.mxu0 %v1778
        %1798 = vmatprep.subr.bf16.mxu0 0
        %1799 = vmatpush1.bf16.msra.mxu0 %v1777
        %1800 = vmatprep.subr.bf16.mxu0 0
        %1801 = vmatpush2.bf16.msra.mxu0 0
        %1802 = vmatprep.subr.bf16.mxu0 0
        %1803 = vmatpush2.bf16.msra.mxu0 0
        %1804 = vmatprep.subr.bf16.mxu0 0
        %1805 = vmatpush2.bf16.msra.mxu0 0
        %1806 = vmatprep.subr.bf16.mxu0 0
        %1807 = vmatpush2.bf16.msra.mxu0 0
        %1808 = vmatprep.subr.bf16.mxu0 0
        %1809 = vmatpush2.bf16.msra.mxu0 0
        %1810 = vmatprep.subr.bf16.mxu0 0
        %1811 = vmatpush2.bf16.msra.mxu0 0
        %1812 = vmatprep.subr.bf16.mxu0 0
        %1813 = vmatpush2.bf16.msra.mxu0 0
        %1814 = vmatprep.subr.bf16.mxu0 0
        %1815 = vmatpush2.bf16.msra.mxu0 0
        %1816 = vmatprep.mubr.bf16.mxu0 0
        %1817 = vmatmul.mubr.bf16.gmra.mxu0 %v1782
        %v1818 = vpop.f32.mrf.mxu0
        %v1819 = vadd.f32 %v1767, %v1818
        %v1820 = vpop.f32.mrf.mxu0
        %v1821 = vpop.f32.mrf.mxu0
        %v1822 = vadd.f32 %v1767, %v1821
        %v1823 = vpop.f32.mrf.mxu0
        %1824 = vdwg.mxu0
        %v1825 = vpack.c.bf16 %v653, %v652
        %v1826 = vpack.c.bf16 %v655, %v654
        %1827 = vrot.lane.b32.xlu0 %v1777, 96
        %v1828 = vpop.permute.xlu0 %1827
        %1829 = vrot.lane.b32.xlu0 %v1778, 96
        %v1830 = vpop.permute.xlu0 %1829
        %1833 = vrot.lane.b32.xlu0 %v1767, 96
        %v1834 = vpop.permute.xlu0 %1833
        %v1837 = vsel %vm689, %v1825, 0
        %v1840 = vsel %vm689, %v1826, 0
        %1842 = vmatprep.subr.bf16.mxu0 0
        %1843 = vmatpush1.bf16.msra.mxu0 0
        %1844 = vmatprep.subr.bf16.mxu0 0
        %1845 = vmatpush1.bf16.msra.mxu0 0
        %1846 = vmatprep.subr.bf16.mxu0 0
        %1847 = vmatpush1.bf16.msra.mxu0 0
        %1848 = vmatprep.subr.bf16.mxu0 0
        %1849 = vmatpush1.bf16.msra.mxu0 0
        %1850 = vmatprep.subr.bf16.mxu0 0
        %1851 = vmatpush1.bf16.msra.mxu0 0
        %1852 = vmatprep.subr.bf16.mxu0 0
        %1853 = vmatpush1.bf16.msra.mxu0 0
        %1854 = vmatprep.subr.bf16.mxu0 0
        %1855 = vmatpush1.bf16.msra.mxu0 %v1830
        %1856 = vmatprep.subr.bf16.mxu0 0
        %1857 = vmatpush1.bf16.msra.mxu0 %v1828
        %1858 = vmatprep.subr.bf16.mxu0 0
        %1859 = vmatpush2.bf16.msra.mxu0 0
        %1860 = vmatprep.subr.bf16.mxu0 0
        %1861 = vmatpush2.bf16.msra.mxu0 0
        %1862 = vmatprep.subr.bf16.mxu0 0
        %1863 = vmatpush2.bf16.msra.mxu0 0
        %1864 = vmatprep.subr.bf16.mxu0 0
        %1865 = vmatpush2.bf16.msra.mxu0 0
        %1866 = vmatprep.subr.bf16.mxu0 0
        %1867 = vmatpush2.bf16.msra.mxu0 0
        %1868 = vmatprep.subr.bf16.mxu0 0
        %1869 = vmatpush2.bf16.msra.mxu0 0
        %1870 = vmatprep.subr.bf16.mxu0 0
        %1871 = vmatpush2.bf16.msra.mxu0 0
        %1872 = vmatprep.subr.bf16.mxu0 0
        %1873 = vmatpush2.bf16.msra.mxu0 0
        %1874 = vmatprep.mubr.bf16.mxu0 0
        %1875 = vmatmul.mubr.bf16.gmra.mxu0 %v1837
        %v1876 = vpop.f32.mrf.mxu0
        %v1877 = vadd.f32 %v1834, %v1876
        %v1878 = vpop.f32.mrf.mxu0
        %v1879 = vpop.f32.mrf.mxu0
        %v1880 = vadd.f32 %v1834, %v1879
        %v1881 = vpop.f32.mrf.mxu0
        %1882 = vmatprep.mubr.bf16.mxu0 0
        %1883 = vmatmul.mubr.bf16.gmra.mxu0 %v1840
        %v1884 = vpop.f32.mrf.mxu0
        %v1885 = vadd.f32 %v1834, %v1884
        %v1886 = vpop.f32.mrf.mxu0
        %v1887 = vpop.f32.mrf.mxu0
        %v1888 = vadd.f32 %v1834, %v1887
        %v1889 = vpop.f32.mrf.mxu0
        %1890 = vdwg.mxu0
        %v1891 = vpack.c.bf16 %v1819, %v1819
        %v1892 = vpack.c.bf16 %v1822, %v1822
        %v1893 = vpack.c.bf16 %v1880, %v1877
        %v1894 = vpack.c.bf16 %v1888, %v1885
        %v1896 = vsel %vm739, %v1891, 0
        %v1899 = vsel %vm739, %v1893, 0
        %1901 = vmatprep.subr.bf16.mxu0 0
        %1902 = vmatpush1.bf16.xpose.msra.mxu0 0
        %1903 = vmatprep.subr.bf16.mxu0 0
        %1904 = vmatpush1.bf16.xpose.msra.mxu0 0
        %1905 = vmatprep.subr.bf16.mxu0 0
        %1906 = vmatpush1.bf16.xpose.msra.mxu0 0
        %1907 = vmatprep.subr.bf16.mxu0 0
        %1908 = vmatpush1.bf16.xpose.msra.mxu0 0
        %1909 = vmatprep.subr.bf16.mxu0 0
        %1910 = vmatpush1.bf16.xpose.msra.mxu0 0
        %1911 = vmatprep.subr.bf16.mxu0 0
        %1912 = vmatpush1.bf16.xpose.msra.mxu0 0
        %1913 = vmatprep.subr.bf16.mxu0 0
        %1914 = vmatpush1.bf16.xpose.msra.mxu0 0
        %1915 = vmatprep.subr.bf16.mxu0 0
        %1916 = vmatpush1.bf16.xpose.msra.mxu0 %v1899
        %1917 = vmatprep.subr.bf16.mxu0 0
        %1918 = vmatpush2.bf16.xpose.msra.mxu0 0
        %1919 = vmatprep.subr.bf16.mxu0 0
        %1920 = vmatpush2.bf16.xpose.msra.mxu0 0
        %1921 = vmatprep.subr.bf16.mxu0 0
        %1922 = vmatpush2.bf16.xpose.msra.mxu0 0
        %1923 = vmatprep.subr.bf16.mxu0 0
        %1924 = vmatpush2.bf16.xpose.msra.mxu0 0
        %1925 = vmatprep.subr.bf16.mxu0 0
        %1926 = vmatpush2.bf16.xpose.msra.mxu0 0
        %1927 = vmatprep.subr.bf16.mxu0 0
        %1928 = vmatpush2.bf16.xpose.msra.mxu0 0
        %1929 = vmatprep.subr.bf16.mxu0 0
        %1930 = vmatpush2.bf16.xpose.msra.mxu0 0
        %1931 = vmatprep.subr.bf16.mxu0 0
        %1932 = vmatpush2.bf16.xpose.msra.mxu0 0
        %1933 = vmatprep.mubr.bf16.mxu0 0
        %1934 = vmatmul.mubr.bf16.gmra.mxu0 %v1896
        %v1935 = vpop.f32.mrf.mxu0
        %v1936 = vadd.f32 %v664, %v1935
        %v1937 = vpop.f32.mrf.mxu0
        %v1938 = vpop.f32.mrf.mxu0
        %v1939 = vpop.f32.mrf.mxu0
        %1940 = vdwg.mxu0
        %v1942 = vsel %vm739, %v1892, 0
        %v1945 = vsel %vm739, %v1894, 0
        %1947 = vmatprep.subr.bf16.mxu0 0
        %1948 = vmatpush1.bf16.xpose.msra.mxu0 0
        %1949 = vmatprep.subr.bf16.mxu0 0
        %1950 = vmatpush1.bf16.xpose.msra.mxu0 0
        %1951 = vmatprep.subr.bf16.mxu0 0
        %1952 = vmatpush1.bf16.xpose.msra.mxu0 0
        %1953 = vmatprep.subr.bf16.mxu0 0
        %1954 = vmatpush1.bf16.xpose.msra.mxu0 0
        %1955 = vmatprep.subr.bf16.mxu0 0
        %1956 = vmatpush1.bf16.xpose.msra.mxu0 0
        %1957 = vmatprep.subr.bf16.mxu0 0
        %1958 = vmatpush1.bf16.xpose.msra.mxu0 0
        %1959 = vmatprep.subr.bf16.mxu0 0
        %1960 = vmatpush1.bf16.xpose.msra.mxu0 0
        %1961 = vmatprep.subr.bf16.mxu0 0
        %1962 = vmatpush1.bf16.xpose.msra.mxu0 %v1945
        %1963 = vmatprep.subr.bf16.mxu0 0
        %1964 = vmatpush2.bf16.xpose.msra.mxu0 0
        %1965 = vmatprep.subr.bf16.mxu0 0
        %1966 = vmatpush2.bf16.xpose.msra.mxu0 0
        %1967 = vmatprep.subr.bf16.mxu0 0
        %1968 = vmatpush2.bf16.xpose.msra.mxu0 0
        %1969 = vmatprep.subr.bf16.mxu0 0
        %1970 = vmatpush2.bf16.xpose.msra.mxu0 0
        %1971 = vmatprep.subr.bf16.mxu0 0
        %1972 = vmatpush2.bf16.xpose.msra.mxu0 0
        %1973 = vmatprep.subr.bf16.mxu0 0
        %1974 = vmatpush2.bf16.xpose.msra.mxu0 0
        %1975 = vmatprep.subr.bf16.mxu0 0
        %1976 = vmatpush2.bf16.xpose.msra.mxu0 0
        %1977 = vmatprep.subr.bf16.mxu0 0
        %1978 = vmatpush2.bf16.xpose.msra.mxu0 0
        %1979 = vmatprep.mubr.bf16.mxu0 0
        %1980 = vmatmul.mubr.bf16.gmra.mxu0 %v1942
        %v1981 = vpop.f32.mrf.mxu0
        %v1982 = vadd.f32 %v664, %v1981
        %v1983 = vpop.f32.mrf.mxu0
        %v1984 = vpop.f32.mrf.mxu0
        %v1985 = vpop.f32.mrf.mxu0
        %1986 = vdwg.mxu0
        %v1987 = vsel %vm1642, %v1936, -inf
        %1988 = vmax.xlane.f32.xlu0 %v1987
        %v1989 = vpop.xlane.xlu0 %1988
        %v1990 = vsel %vm1642, %v1982, -inf
        %1991 = vmax.xlane.f32.xlu0 %v1990
        %v1992 = vpop.xlane.xlu0 %1991
        %v1993 = vsub.f32 %v1936, %v1989
        %v1994 = vsub.f32 %v1982, %v1992
        %v1995 = vmul.f32 %v1993, 1.442695
        %v1996 = vpow.pop %v1995
        %v1997 = vmul.f32 %v1994, 1.442695
        %v1998 = vpow.pop %v1997
        %v1999 = vsel %vm1642, %v1996, 0.0
        %2000 = vadd.xlane.f32.xlu0 %v1999
        %v2001 = vpop.xlane.xlu0 %2000
        %v2002 = vsel %vm1642, %v1998, 0.0
        %2003 = vadd.xlane.f32.xlu0 %v2002
        %v2004 = vpop.xlane.xlu0 %2003
        %v2005 = vrcp.pop %v2001
        %v2006 = vrcp.pop %v2004
        %v2007 = vmul.f32 %v1996, %v2005
        %v2008 = vmul.f32 %v1998, %v2006
        %v2009 = vpack.c.bf16 %v2007, %v2007
        %v2010 = vpack.c.bf16 %v2008, %v2008
        %2012 = vrot.lane.b32.xlu0 %v1893, 96
        %v2013 = vpop.permute.xlu0 %2012
        %v2016 = vsel %vm1642, %v2009, 0
        %2018 = vmatprep.subr.bf16.mxu0 0
        %2019 = vmatpush1.bf16.msra.mxu0 0
        %2020 = vmatprep.subr.bf16.mxu0 0
        %2021 = vmatpush1.bf16.msra.mxu0 0
        %2022 = vmatprep.subr.bf16.mxu0 0
        %2023 = vmatpush1.bf16.msra.mxu0 0
        %2024 = vmatprep.subr.bf16.mxu0 0
        %2025 = vmatpush1.bf16.msra.mxu0 0
        %2026 = vmatprep.subr.bf16.mxu0 0
        %2027 = vmatpush1.bf16.msra.mxu0 0
        %2028 = vmatprep.subr.bf16.mxu0 0
        %2029 = vmatpush1.bf16.msra.mxu0 0
        %2030 = vmatprep.subr.bf16.mxu0 0
        %2031 = vmatpush1.bf16.msra.mxu0 0
        %2032 = vmatprep.subr.bf16.mxu0 0
        %2033 = vmatpush1.bf16.msra.mxu0 %v2013
        %2034 = vmatprep.subr.bf16.mxu0 0
        %2035 = vmatpush2.bf16.msra.mxu0 0
        %2036 = vmatprep.subr.bf16.mxu0 0
        %2037 = vmatpush2.bf16.msra.mxu0 0
        %2038 = vmatprep.subr.bf16.mxu0 0
        %2039 = vmatpush2.bf16.msra.mxu0 0
        %2040 = vmatprep.subr.bf16.mxu0 0
        %2041 = vmatpush2.bf16.msra.mxu0 0
        %2042 = vmatprep.subr.bf16.mxu0 0
        %2043 = vmatpush2.bf16.msra.mxu0 0
        %2044 = vmatprep.subr.bf16.mxu0 0
        %2045 = vmatpush2.bf16.msra.mxu0 0
        %2046 = vmatprep.subr.bf16.mxu0 0
        %2047 = vmatpush2.bf16.msra.mxu0 0
        %2048 = vmatprep.subr.bf16.mxu0 0
        %2049 = vmatpush2.bf16.msra.mxu0 0
        %2050 = vmatprep.mubr.bf16.mxu0 0
        %2051 = vmatmul.mubr.bf16.gmra.mxu0 %v2016
        %v2052 = vpop.f32.mrf.mxu0
        %v2053 = vadd.f32 0.0, %v2052
        %v2054 = vpop.f32.mrf.mxu0
        %v2055 = vpop.f32.mrf.mxu0
        %v2056 = vpop.f32.mrf.mxu0
        %2057 = vdwg.mxu0
        %2059 = vrot.lane.b32.xlu0 %v1894, 96
        %v2060 = vpop.permute.xlu0 %2059
        %v2063 = vsel %vm1642, %v2010, 0
        %2065 = vmatprep.subr.bf16.mxu0 0
        %2066 = vmatpush1.bf16.msra.mxu0 0
        %2067 = vmatprep.subr.bf16.mxu0 0
        %2068 = vmatpush1.bf16.msra.mxu0 0
        %2069 = vmatprep.subr.bf16.mxu0 0
        %2070 = vmatpush1.bf16.msra.mxu0 0
        %2071 = vmatprep.subr.bf16.mxu0 0
        %2072 = vmatpush1.bf16.msra.mxu0 0
        %2073 = vmatprep.subr.bf16.mxu0 0
        %2074 = vmatpush1.bf16.msra.mxu0 0
        %2075 = vmatprep.subr.bf16.mxu0 0
        %2076 = vmatpush1.bf16.msra.mxu0 0
        %2077 = vmatprep.subr.bf16.mxu0 0
        %2078 = vmatpush1.bf16.msra.mxu0 0
        %2079 = vmatprep.subr.bf16.mxu0 0
        %2080 = vmatpush1.bf16.msra.mxu0 %v2060
        %2081 = vmatprep.subr.bf16.mxu0 0
        %2082 = vmatpush2.bf16.msra.mxu0 0
        %2083 = vmatprep.subr.bf16.mxu0 0
        %2084 = vmatpush2.bf16.msra.mxu0 0
        %2085 = vmatprep.subr.bf16.mxu0 0
        %2086 = vmatpush2.bf16.msra.mxu0 0
        %2087 = vmatprep.subr.bf16.mxu0 0
        %2088 = vmatpush2.bf16.msra.mxu0 0
        %2089 = vmatprep.subr.bf16.mxu0 0
        %2090 = vmatpush2.bf16.msra.mxu0 0
        %2091 = vmatprep.subr.bf16.mxu0 0
        %2092 = vmatpush2.bf16.msra.mxu0 0
        %2093 = vmatprep.subr.bf16.mxu0 0
        %2094 = vmatpush2.bf16.msra.mxu0 0
        %2095 = vmatprep.subr.bf16.mxu0 0
        %2096 = vmatpush2.bf16.msra.mxu0 0
        %2097 = vmatprep.mubr.bf16.mxu0 0
        %2098 = vmatmul.mubr.bf16.gmra.mxu0 %v2063
        %v2099 = vpop.f32.mrf.mxu0
        %v2100 = vadd.f32 0.0, %v2099
        %v2101 = vpop.f32.mrf.mxu0
        %v2102 = vpop.f32.mrf.mxu0
        %v2103 = vpop.f32.mrf.mxu0
        %2104 = vdwg.mxu0
        %2106 = vrot.lane.b32.xlu0 %v1891, 120
        %v2107 = vpop.permute.xlu0 %2106
        %2108 = vrot.lane.b32.xlu0 %v1893, 120
        %v2109 = vpop.permute.xlu0 %2108
        %v2111 = vsel %vm739, %v2107, 0
        %v2114 = vsel %vm739, %v2109, 0
        %2116 = vmatprep.subr.bf16.mxu0 0
        %2117 = vmatpush1.bf16.xpose.msra.mxu0 0
        %2118 = vmatprep.subr.bf16.mxu0 0
        %2119 = vmatpush1.bf16.xpose.msra.mxu0 0
        %2120 = vmatprep.subr.bf16.mxu0 0
        %2121 = vmatpush1.bf16.xpose.msra.mxu0 0
        %2122 = vmatprep.subr.bf16.mxu0 0
        %2123 = vmatpush1.bf16.xpose.msra.mxu0 0
        %2124 = vmatprep.subr.bf16.mxu0 0
        %2125 = vmatpush1.bf16.xpose.msra.mxu0 0
        %2126 = vmatprep.subr.bf16.mxu0 0
        %2127 = vmatpush1.bf16.xpose.msra.mxu0 0
        %2128 = vmatprep.subr.bf16.mxu0 0
        %2129 = vmatpush1.bf16.xpose.msra.mxu0 0
        %2130 = vmatprep.subr.bf16.mxu0 0
        %2131 = vmatpush1.bf16.xpose.msra.mxu0 %v2114
        %2132 = vmatprep.subr.bf16.mxu0 0
        %2133 = vmatpush2.bf16.xpose.msra.mxu0 0
        %2134 = vmatprep.subr.bf16.mxu0 0
        %2135 = vmatpush2.bf16.xpose.msra.mxu0 0
        %2136 = vmatprep.subr.bf16.mxu0 0
        %2137 = vmatpush2.bf16.xpose.msra.mxu0 0
        %2138 = vmatprep.subr.bf16.mxu0 0
        %2139 = vmatpush2.bf16.xpose.msra.mxu0 0
        %2140 = vmatprep.subr.bf16.mxu0 0
        %2141 = vmatpush2.bf16.xpose.msra.mxu0 0
        %2142 = vmatprep.subr.bf16.mxu0 0
        %2143 = vmatpush2.bf16.xpose.msra.mxu0 0
        %2144 = vmatprep.subr.bf16.mxu0 0
        %2145 = vmatpush2.bf16.xpose.msra.mxu0 0
        %2146 = vmatprep.subr.bf16.mxu0 0
        %2147 = vmatpush2.bf16.xpose.msra.mxu0 0
        %2148 = vmatprep.mubr.bf16.mxu0 0
        %2149 = vmatmul.mubr.bf16.gmra.mxu0 %v2111
        %v2150 = vpop.f32.mrf.mxu0
        %v2151 = vadd.f32 %v664, %v2150
        %v2152 = vpop.f32.mrf.mxu0
        %v2153 = vpop.f32.mrf.mxu0
        %v2154 = vpop.f32.mrf.mxu0
        %2155 = vdwg.mxu0
        %2157 = vrot.lane.b32.xlu0 %v1892, 120
        %v2158 = vpop.permute.xlu0 %2157
        %2159 = vrot.lane.b32.xlu0 %v1894, 120
        %v2160 = vpop.permute.xlu0 %2159
        %v2162 = vsel %vm739, %v2158, 0
        %v2165 = vsel %vm739, %v2160, 0
        %2167 = vmatprep.subr.bf16.mxu0 0
        %2168 = vmatpush1.bf16.xpose.msra.mxu0 0
        %2169 = vmatprep.subr.bf16.mxu0 0
        %2170 = vmatpush1.bf16.xpose.msra.mxu0 0
        %2171 = vmatprep.subr.bf16.mxu0 0
        %2172 = vmatpush1.bf16.xpose.msra.mxu0 0
        %2173 = vmatprep.subr.bf16.mxu0 0
        %2174 = vmatpush1.bf16.xpose.msra.mxu0 0
        %2175 = vmatprep.subr.bf16.mxu0 0
        %2176 = vmatpush1.bf16.xpose.msra.mxu0 0
        %2177 = vmatprep.subr.bf16.mxu0 0
        %2178 = vmatpush1.bf16.xpose.msra.mxu0 0
        %2179 = vmatprep.subr.bf16.mxu0 0
        %2180 = vmatpush1.bf16.xpose.msra.mxu0 0
        %2181 = vmatprep.subr.bf16.mxu0 0
        %2182 = vmatpush1.bf16.xpose.msra.mxu0 %v2165
        %2183 = vmatprep.subr.bf16.mxu0 0
        %2184 = vmatpush2.bf16.xpose.msra.mxu0 0
        %2185 = vmatprep.subr.bf16.mxu0 0
        %2186 = vmatpush2.bf16.xpose.msra.mxu0 0
        %2187 = vmatprep.subr.bf16.mxu0 0
        %2188 = vmatpush2.bf16.xpose.msra.mxu0 0
        %2189 = vmatprep.subr.bf16.mxu0 0
        %2190 = vmatpush2.bf16.xpose.msra.mxu0 0
        %2191 = vmatprep.subr.bf16.mxu0 0
        %2192 = vmatpush2.bf16.xpose.msra.mxu0 0
        %2193 = vmatprep.subr.bf16.mxu0 0
        %2194 = vmatpush2.bf16.xpose.msra.mxu0 0
        %2195 = vmatprep.subr.bf16.mxu0 0
        %2196 = vmatpush2.bf16.xpose.msra.mxu0 0
        %2197 = vmatprep.subr.bf16.mxu0 0
        %2198 = vmatpush2.bf16.xpose.msra.mxu0 0
        %2199 = vmatprep.mubr.bf16.mxu0 0
        %2200 = vmatmul.mubr.bf16.gmra.mxu0 %v2162
        %v2201 = vpop.f32.mrf.mxu0
        %v2202 = vadd.f32 %v664, %v2201
        %v2203 = vpop.f32.mrf.mxu0
        %v2204 = vpop.f32.mrf.mxu0
        %v2205 = vpop.f32.mrf.mxu0
        %2206 = vdwg.mxu0
        %v2207 = vsel %vm1642, %v2151, -inf
        %2208 = vmax.xlane.f32.xlu0 %v2207
        %v2209 = vpop.xlane.xlu0 %2208
        %v2210 = vsel %vm1642, %v2202, -inf
        %2211 = vmax.xlane.f32.xlu0 %v2210
        %v2212 = vpop.xlane.xlu0 %2211
        %v2213 = vsub.f32 %v2151, %v2209
        %v2214 = vsub.f32 %v2202, %v2212
        %v2215 = vmul.f32 %v2213, 1.442695
        %v2216 = vpow.pop %v2215
        %v2217 = vmul.f32 %v2214, 1.442695
        %v2218 = vpow.pop %v2217
        %v2219 = vsel %vm1642, %v2216, 0.0
        %2220 = vadd.xlane.f32.xlu0 %v2219
        %v2221 = vpop.xlane.xlu0 %2220
        %v2222 = vsel %vm1642, %v2218, 0.0
        %2223 = vadd.xlane.f32.xlu0 %v2222
        %v2224 = vpop.xlane.xlu0 %2223
        %v2225 = vrcp.pop %v2221
        %v2226 = vrcp.pop %v2224
        %v2227 = vmul.f32 %v2216, %v2225
        %v2228 = vmul.f32 %v2218, %v2226
        %v2229 = vpack.c.bf16 %v2227, %v2227
        %v2230 = vpack.c.bf16 %v2228, %v2228
        %2231 = vrot.lane.b32.xlu0 %v1893, 88
        %v2232 = vpop.permute.xlu0 %2231
        %v2235 = vsel %vm1642, %v2229, 0
        %2237 = vmatprep.subr.bf16.mxu0 0
        %2238 = vmatpush1.bf16.msra.mxu0 0
        %2239 = vmatprep.subr.bf16.mxu0 0
        %2240 = vmatpush1.bf16.msra.mxu0 0
        %2241 = vmatprep.subr.bf16.mxu0 0
        %2242 = vmatpush1.bf16.msra.mxu0 0
        %2243 = vmatprep.subr.bf16.mxu0 0
        %2244 = vmatpush1.bf16.msra.mxu0 0
        %2245 = vmatprep.subr.bf16.mxu0 0
        %2246 = vmatpush1.bf16.msra.mxu0 0
        %2247 = vmatprep.subr.bf16.mxu0 0
        %2248 = vmatpush1.bf16.msra.mxu0 0
        %2249 = vmatprep.subr.bf16.mxu0 0
        %2250 = vmatpush1.bf16.msra.mxu0 0
        %2251 = vmatprep.subr.bf16.mxu0 0
        %2252 = vmatpush1.bf16.msra.mxu0 %v2232
        %2253 = vmatprep.subr.bf16.mxu0 0
        %2254 = vmatpush2.bf16.msra.mxu0 0
        %2255 = vmatprep.subr.bf16.mxu0 0
        %2256 = vmatpush2.bf16.msra.mxu0 0
        %2257 = vmatprep.subr.bf16.mxu0 0
        %2258 = vmatpush2.bf16.msra.mxu0 0
        %2259 = vmatprep.subr.bf16.mxu0 0
        %2260 = vmatpush2.bf16.msra.mxu0 0
        %2261 = vmatprep.subr.bf16.mxu0 0
        %2262 = vmatpush2.bf16.msra.mxu0 0
        %2263 = vmatprep.subr.bf16.mxu0 0
        %2264 = vmatpush2.bf16.msra.mxu0 0
        %2265 = vmatprep.subr.bf16.mxu0 0
        %2266 = vmatpush2.bf16.msra.mxu0 0
        %2267 = vmatprep.subr.bf16.mxu0 0
        %2268 = vmatpush2.bf16.msra.mxu0 0
        %2269 = vmatprep.mubr.bf16.mxu0 0
        %2270 = vmatmul.mubr.bf16.gmra.mxu0 %v2235
        %v2271 = vpop.f32.mrf.mxu0
        %v2272 = vadd.f32 0.0, %v2271
        %v2273 = vpop.f32.mrf.mxu0
        %v2274 = vpop.f32.mrf.mxu0
        %v2275 = vpop.f32.mrf.mxu0
        %2276 = vdwg.mxu0
        %2277 = vrot.lane.b32.xlu0 %v1894, 88
        %v2278 = vpop.permute.xlu0 %2277
        %v2281 = vsel %vm1642, %v2230, 0
        %2283 = vmatprep.subr.bf16.mxu0 0
        %2284 = vmatpush1.bf16.msra.mxu0 0
        %2285 = vmatprep.subr.bf16.mxu0 0
        %2286 = vmatpush1.bf16.msra.mxu0 0
        %2287 = vmatprep.subr.bf16.mxu0 0
        %2288 = vmatpush1.bf16.msra.mxu0 0
        %2289 = vmatprep.subr.bf16.mxu0 0
        %2290 = vmatpush1.bf16.msra.mxu0 0
        %2291 = vmatprep.subr.bf16.mxu0 0
        %2292 = vmatpush1.bf16.msra.mxu0 0
        %2293 = vmatprep.subr.bf16.mxu0 0
        %2294 = vmatpush1.bf16.msra.mxu0 0
        %2295 = vmatprep.subr.bf16.mxu0 0
        %2296 = vmatpush1.bf16.msra.mxu0 0
        %2297 = vmatprep.subr.bf16.mxu0 0
        %2298 = vmatpush1.bf16.msra.mxu0 %v2278
        %2299 = vmatprep.subr.bf16.mxu0 0
        %2300 = vmatpush2.bf16.msra.mxu0 0
        %2301 = vmatprep.subr.bf16.mxu0 0
        %2302 = vmatpush2.bf16.msra.mxu0 0
        %2303 = vmatprep.subr.bf16.mxu0 0
        %2304 = vmatpush2.bf16.msra.mxu0 0
        %2305 = vmatprep.subr.bf16.mxu0 0
        %2306 = vmatpush2.bf16.msra.mxu0 0
        %2307 = vmatprep.subr.bf16.mxu0 0
        %2308 = vmatpush2.bf16.msra.mxu0 0
        %2309 = vmatprep.subr.bf16.mxu0 0
        %2310 = vmatpush2.bf16.msra.mxu0 0
        %2311 = vmatprep.subr.bf16.mxu0 0
        %2312 = vmatpush2.bf16.msra.mxu0 0
        %2313 = vmatprep.subr.bf16.mxu0 0
        %2314 = vmatpush2.bf16.msra.mxu0 0
        %2315 = vmatprep.mubr.bf16.mxu0 0
        %2316 = vmatmul.mubr.bf16.gmra.mxu0 %v2281
        %v2317 = vpop.f32.mrf.mxu0
        %v2318 = vadd.f32 0.0, %v2317
        %v2319 = vpop.f32.mrf.mxu0
        %v2320 = vpop.f32.mrf.mxu0
        %v2321 = vpop.f32.mrf.mxu0
        %2322 = vdwg.mxu0
        %2323 = vrot.lane.b32.xlu0 %v1891, 112
        %v2324 = vpop.permute.xlu0 %2323
        %2325 = vrot.lane.b32.xlu0 %v1893, 112
        %v2326 = vpop.permute.xlu0 %2325
        %v2328 = vsel %vm739, %v2324, 0
        %v2331 = vsel %vm739, %v2326, 0
        %2333 = vmatprep.subr.bf16.mxu0 0
        %2334 = vmatpush1.bf16.xpose.msra.mxu0 0
        %2335 = vmatprep.subr.bf16.mxu0 0
        %2336 = vmatpush1.bf16.xpose.msra.mxu0 0
        %2337 = vmatprep.subr.bf16.mxu0 0
        %2338 = vmatpush1.bf16.xpose.msra.mxu0 0
        %2339 = vmatprep.subr.bf16.mxu0 0
        %2340 = vmatpush1.bf16.xpose.msra.mxu0 0
        %2341 = vmatprep.subr.bf16.mxu0 0
        %2342 = vmatpush1.bf16.xpose.msra.mxu0 0
        %2343 = vmatprep.subr.bf16.mxu0 0
        %2344 = vmatpush1.bf16.xpose.msra.mxu0 0
        %2345 = vmatprep.subr.bf16.mxu0 0
        %2346 = vmatpush1.bf16.xpose.msra.mxu0 0
        %2347 = vmatprep.subr.bf16.mxu0 0
        %2348 = vmatpush1.bf16.xpose.msra.mxu0 %v2331
        %2349 = vmatprep.subr.bf16.mxu0 0
        %2350 = vmatpush2.bf16.xpose.msra.mxu0 0
        %2351 = vmatprep.subr.bf16.mxu0 0
        %2352 = vmatpush2.bf16.xpose.msra.mxu0 0
        %2353 = vmatprep.subr.bf16.mxu0 0
        %2354 = vmatpush2.bf16.xpose.msra.mxu0 0
        %2355 = vmatprep.subr.bf16.mxu0 0
        %2356 = vmatpush2.bf16.xpose.msra.mxu0 0
        %2357 = vmatprep.subr.bf16.mxu0 0
        %2358 = vmatpush2.bf16.xpose.msra.mxu0 0
        %2359 = vmatprep.subr.bf16.mxu0 0
        %2360 = vmatpush2.bf16.xpose.msra.mxu0 0
        %2361 = vmatprep.subr.bf16.mxu0 0
        %2362 = vmatpush2.bf16.xpose.msra.mxu0 0
        %2363 = vmatprep.subr.bf16.mxu0 0
        %2364 = vmatpush2.bf16.xpose.msra.mxu0 0
        %2365 = vmatprep.mubr.bf16.mxu0 0
        %2366 = vmatmul.mubr.bf16.gmra.mxu0 %v2328
        %v2367 = vpop.f32.mrf.mxu0
        %v2368 = vadd.f32 %v664, %v2367
        %v2369 = vpop.f32.mrf.mxu0
        %v2370 = vpop.f32.mrf.mxu0
        %v2371 = vpop.f32.mrf.mxu0
        %2372 = vdwg.mxu0
        %2373 = vrot.lane.b32.xlu0 %v1892, 112
        %v2374 = vpop.permute.xlu0 %2373
        %2375 = vrot.lane.b32.xlu0 %v1894, 112
        %v2376 = vpop.permute.xlu0 %2375
        %v2378 = vsel %vm739, %v2374, 0
        %v2381 = vsel %vm739, %v2376, 0
        %2383 = vmatprep.subr.bf16.mxu0 0
        %2384 = vmatpush1.bf16.xpose.msra.mxu0 0
        %2385 = vmatprep.subr.bf16.mxu0 0
        %2386 = vmatpush1.bf16.xpose.msra.mxu0 0
        %2387 = vmatprep.subr.bf16.mxu0 0
        %2388 = vmatpush1.bf16.xpose.msra.mxu0 0
        %2389 = vmatprep.subr.bf16.mxu0 0
        %2390 = vmatpush1.bf16.xpose.msra.mxu0 0
        %2391 = vmatprep.subr.bf16.mxu0 0
        %2392 = vmatpush1.bf16.xpose.msra.mxu0 0
        %2393 = vmatprep.subr.bf16.mxu0 0
        %2394 = vmatpush1.bf16.xpose.msra.mxu0 0
        %2395 = vmatprep.subr.bf16.mxu0 0
        %2396 = vmatpush1.bf16.xpose.msra.mxu0 0
        %2397 = vmatprep.subr.bf16.mxu0 0
        %2398 = vmatpush1.bf16.xpose.msra.mxu0 %v2381
        %2399 = vmatprep.subr.bf16.mxu0 0
        %2400 = vmatpush2.bf16.xpose.msra.mxu0 0
        %2401 = vmatprep.subr.bf16.mxu0 0
        %2402 = vmatpush2.bf16.xpose.msra.mxu0 0
        %2403 = vmatprep.subr.bf16.mxu0 0
        %2404 = vmatpush2.bf16.xpose.msra.mxu0 0
        %2405 = vmatprep.subr.bf16.mxu0 0
        %2406 = vmatpush2.bf16.xpose.msra.mxu0 0
        %2407 = vmatprep.subr.bf16.mxu0 0
        %2408 = vmatpush2.bf16.xpose.msra.mxu0 0
        %2409 = vmatprep.subr.bf16.mxu0 0
        %2410 = vmatpush2.bf16.xpose.msra.mxu0 0
        %2411 = vmatprep.subr.bf16.mxu0 0
        %2412 = vmatpush2.bf16.xpose.msra.mxu0 0
        %2413 = vmatprep.subr.bf16.mxu0 0
        %2414 = vmatpush2.bf16.xpose.msra.mxu0 0
        %2415 = vmatprep.mubr.bf16.mxu0 0
        %2416 = vmatmul.mubr.bf16.gmra.mxu0 %v2378
        %v2417 = vpop.f32.mrf.mxu0
        %v2418 = vadd.f32 %v664, %v2417
        %v2419 = vpop.f32.mrf.mxu0
        %v2420 = vpop.f32.mrf.mxu0
        %v2421 = vpop.f32.mrf.mxu0
        %2422 = vdwg.mxu0
        %v2423 = vsel %vm1642, %v2368, -inf
        %2424 = vmax.xlane.f32.xlu0 %v2423
        %v2425 = vpop.xlane.xlu0 %2424
        %v2426 = vsel %vm1642, %v2418, -inf
        %2427 = vmax.xlane.f32.xlu0 %v2426
        %v2428 = vpop.xlane.xlu0 %2427
        %v2429 = vsub.f32 %v2368, %v2425
        %v2430 = vsub.f32 %v2418, %v2428
        %v2431 = vmul.f32 %v2429, 1.442695
        %v2432 = vpow.pop %v2431
        %v2433 = vmul.f32 %v2430, 1.442695
        %v2434 = vpow.pop %v2433
        %v2435 = vsel %vm1642, %v2432, 0.0
        %2436 = vadd.xlane.f32.xlu0 %v2435
        %v2437 = vpop.xlane.xlu0 %2436
        %v2438 = vsel %vm1642, %v2434, 0.0
        %2439 = vadd.xlane.f32.xlu0 %v2438
        %v2440 = vpop.xlane.xlu0 %2439
        %v2441 = vrcp.pop %v2437
        %v2442 = vrcp.pop %v2440
        %v2443 = vmul.f32 %v2432, %v2441
        %v2444 = vmul.f32 %v2434, %v2442
        %v2445 = vpack.c.bf16 %v2443, %v2443
        %v2446 = vpack.c.bf16 %v2444, %v2444
        %2447 = vrot.lane.b32.xlu0 %v1893, 80
        %v2448 = vpop.permute.xlu0 %2447
        %v2451 = vsel %vm1642, %v2445, 0
        %2453 = vmatprep.subr.bf16.mxu0 0
        %2454 = vmatpush1.bf16.msra.mxu0 0
        %2455 = vmatprep.subr.bf16.mxu0 0
        %2456 = vmatpush1.bf16.msra.mxu0 0
        %2457 = vmatprep.subr.bf16.mxu0 0
        %2458 = vmatpush1.bf16.msra.mxu0 0
        %2459 = vmatprep.subr.bf16.mxu0 0
        %2460 = vmatpush1.bf16.msra.mxu0 0
        %2461 = vmatprep.subr.bf16.mxu0 0
        %2462 = vmatpush1.bf16.msra.mxu0 0
        %2463 = vmatprep.subr.bf16.mxu0 0
        %2464 = vmatpush1.bf16.msra.mxu0 0
        %2465 = vmatprep.subr.bf16.mxu0 0
        %2466 = vmatpush1.bf16.msra.mxu0 0
        %2467 = vmatprep.subr.bf16.mxu0 0
        %2468 = vmatpush1.bf16.msra.mxu0 %v2448
        %2469 = vmatprep.subr.bf16.mxu0 0
        %2470 = vmatpush2.bf16.msra.mxu0 0
        %2471 = vmatprep.subr.bf16.mxu0 0
        %2472 = vmatpush2.bf16.msra.mxu0 0
        %2473 = vmatprep.subr.bf16.mxu0 0
        %2474 = vmatpush2.bf16.msra.mxu0 0
        %2475 = vmatprep.subr.bf16.mxu0 0
        %2476 = vmatpush2.bf16.msra.mxu0 0
        %2477 = vmatprep.subr.bf16.mxu0 0
        %2478 = vmatpush2.bf16.msra.mxu0 0
        %2479 = vmatprep.subr.bf16.mxu0 0
        %2480 = vmatpush2.bf16.msra.mxu0 0
        %2481 = vmatprep.subr.bf16.mxu0 0
        %2482 = vmatpush2.bf16.msra.mxu0 0
        %2483 = vmatprep.subr.bf16.mxu0 0
        %2484 = vmatpush2.bf16.msra.mxu0 0
        %2485 = vmatprep.mubr.bf16.mxu0 0
        %2486 = vmatmul.mubr.bf16.gmra.mxu0 %v2451
        %v2487 = vpop.f32.mrf.mxu0
        %v2488 = vadd.f32 0.0, %v2487
        %v2489 = vpop.f32.mrf.mxu0
        %v2490 = vpop.f32.mrf.mxu0
        %v2491 = vpop.f32.mrf.mxu0
        %2492 = vdwg.mxu0
        %2493 = vrot.lane.b32.xlu0 %v1894, 80
        %v2494 = vpop.permute.xlu0 %2493
        %v2497 = vsel %vm1642, %v2446, 0
        %2499 = vmatprep.subr.bf16.mxu0 0
        %2500 = vmatpush1.bf16.msra.mxu0 0
        %2501 = vmatprep.subr.bf16.mxu0 0
        %2502 = vmatpush1.bf16.msra.mxu0 0
        %2503 = vmatprep.subr.bf16.mxu0 0
        %2504 = vmatpush1.bf16.msra.mxu0 0
        %2505 = vmatprep.subr.bf16.mxu0 0
        %2506 = vmatpush1.bf16.msra.mxu0 0
        %2507 = vmatprep.subr.bf16.mxu0 0
        %2508 = vmatpush1.bf16.msra.mxu0 0
        %2509 = vmatprep.subr.bf16.mxu0 0
        %2510 = vmatpush1.bf16.msra.mxu0 0
        %2511 = vmatprep.subr.bf16.mxu0 0
        %2512 = vmatpush1.bf16.msra.mxu0 0
        %2513 = vmatprep.subr.bf16.mxu0 0
        %2514 = vmatpush1.bf16.msra.mxu0 %v2494
        %2515 = vmatprep.subr.bf16.mxu0 0
        %2516 = vmatpush2.bf16.msra.mxu0 0
        %2517 = vmatprep.subr.bf16.mxu0 0
        %2518 = vmatpush2.bf16.msra.mxu0 0
        %2519 = vmatprep.subr.bf16.mxu0 0
        %2520 = vmatpush2.bf16.msra.mxu0 0
        %2521 = vmatprep.subr.bf16.mxu0 0
        %2522 = vmatpush2.bf16.msra.mxu0 0
        %2523 = vmatprep.subr.bf16.mxu0 0
        %2524 = vmatpush2.bf16.msra.mxu0 0
        %2525 = vmatprep.subr.bf16.mxu0 0
        %2526 = vmatpush2.bf16.msra.mxu0 0
        %2527 = vmatprep.subr.bf16.mxu0 0
        %2528 = vmatpush2.bf16.msra.mxu0 0
        %2529 = vmatprep.subr.bf16.mxu0 0
        %2530 = vmatpush2.bf16.msra.mxu0 0
        %2531 = vmatprep.mubr.bf16.mxu0 0
        %2532 = vmatmul.mubr.bf16.gmra.mxu0 %v2497
        %v2533 = vpop.f32.mrf.mxu0
        %v2534 = vadd.f32 0.0, %v2533
        %v2535 = vpop.f32.mrf.mxu0
        %v2536 = vpop.f32.mrf.mxu0
        %v2537 = vpop.f32.mrf.mxu0
        %2538 = vdwg.mxu0
        %2539 = vrot.lane.b32.xlu0 %v1891, 104
        %v2540 = vpop.permute.xlu0 %2539
        %2541 = vrot.lane.b32.xlu0 %v1893, 104
        %v2542 = vpop.permute.xlu0 %2541
        %v2544 = vsel %vm739, %v2540, 0
        %v2547 = vsel %vm739, %v2542, 0
        %2549 = vmatprep.subr.bf16.mxu0 0
        %2550 = vmatpush1.bf16.xpose.msra.mxu0 0
        %2551 = vmatprep.subr.bf16.mxu0 0
        %2552 = vmatpush1.bf16.xpose.msra.mxu0 0
        %2553 = vmatprep.subr.bf16.mxu0 0
        %2554 = vmatpush1.bf16.xpose.msra.mxu0 0
        %2555 = vmatprep.subr.bf16.mxu0 0
        %2556 = vmatpush1.bf16.xpose.msra.mxu0 0
        %2557 = vmatprep.subr.bf16.mxu0 0
        %2558 = vmatpush1.bf16.xpose.msra.mxu0 0
        %2559 = vmatprep.subr.bf16.mxu0 0
        %2560 = vmatpush1.bf16.xpose.msra.mxu0 0
        %2561 = vmatprep.subr.bf16.mxu0 0
        %2562 = vmatpush1.bf16.xpose.msra.mxu0 0
        %2563 = vmatprep.subr.bf16.mxu0 0
        %2564 = vmatpush1.bf16.xpose.msra.mxu0 %v2547
        %2565 = vmatprep.subr.bf16.mxu0 0
        %2566 = vmatpush2.bf16.xpose.msra.mxu0 0
        %2567 = vmatprep.subr.bf16.mxu0 0
        %2568 = vmatpush2.bf16.xpose.msra.mxu0 0
        %2569 = vmatprep.subr.bf16.mxu0 0
        %2570 = vmatpush2.bf16.xpose.msra.mxu0 0
        %2571 = vmatprep.subr.bf16.mxu0 0
        %2572 = vmatpush2.bf16.xpose.msra.mxu0 0
        %2573 = vmatprep.subr.bf16.mxu0 0
        %2574 = vmatpush2.bf16.xpose.msra.mxu0 0
        %2575 = vmatprep.subr.bf16.mxu0 0
        %2576 = vmatpush2.bf16.xpose.msra.mxu0 0
        %2577 = vmatprep.subr.bf16.mxu0 0
        %2578 = vmatpush2.bf16.xpose.msra.mxu0 0
        %2579 = vmatprep.subr.bf16.mxu0 0
        %2580 = vmatpush2.bf16.xpose.msra.mxu0 0
        %2581 = vmatprep.mubr.bf16.mxu0 0
        %2582 = vmatmul.mubr.bf16.gmra.mxu0 %v2544
        %v2583 = vpop.f32.mrf.mxu0
        %v2584 = vadd.f32 %v664, %v2583
        %v2585 = vpop.f32.mrf.mxu0
        %v2586 = vpop.f32.mrf.mxu0
        %v2587 = vpop.f32.mrf.mxu0
        %2588 = vdwg.mxu0
        %2589 = vrot.lane.b32.xlu0 %v1892, 104
        %v2590 = vpop.permute.xlu0 %2589
        %2591 = vrot.lane.b32.xlu0 %v1894, 104
        %v2592 = vpop.permute.xlu0 %2591
        %v2594 = vsel %vm739, %v2590, 0
        %v2597 = vsel %vm739, %v2592, 0
        %2599 = vmatprep.subr.bf16.mxu0 0
        %2600 = vmatpush1.bf16.xpose.msra.mxu0 0
        %2601 = vmatprep.subr.bf16.mxu0 0
        %2602 = vmatpush1.bf16.xpose.msra.mxu0 0
        %2603 = vmatprep.subr.bf16.mxu0 0
        %2604 = vmatpush1.bf16.xpose.msra.mxu0 0
        %2605 = vmatprep.subr.bf16.mxu0 0
        %2606 = vmatpush1.bf16.xpose.msra.mxu0 0
        %2607 = vmatprep.subr.bf16.mxu0 0
        %2608 = vmatpush1.bf16.xpose.msra.mxu0 0
        %2609 = vmatprep.subr.bf16.mxu0 0
        %2610 = vmatpush1.bf16.xpose.msra.mxu0 0
        %2611 = vmatprep.subr.bf16.mxu0 0
        %2612 = vmatpush1.bf16.xpose.msra.mxu0 0
        %2613 = vmatprep.subr.bf16.mxu0 0
        %2614 = vmatpush1.bf16.xpose.msra.mxu0 %v2597
        %2615 = vmatprep.subr.bf16.mxu0 0
        %2616 = vmatpush2.bf16.xpose.msra.mxu0 0
        %2617 = vmatprep.subr.bf16.mxu0 0
        %2618 = vmatpush2.bf16.xpose.msra.mxu0 0
        %2619 = vmatprep.subr.bf16.mxu0 0
        %2620 = vmatpush2.bf16.xpose.msra.mxu0 0
        %2621 = vmatprep.subr.bf16.mxu0 0
        %2622 = vmatpush2.bf16.xpose.msra.mxu0 0
        %2623 = vmatprep.subr.bf16.mxu0 0
        %2624 = vmatpush2.bf16.xpose.msra.mxu0 0
        %2625 = vmatprep.subr.bf16.mxu0 0
        %2626 = vmatpush2.bf16.xpose.msra.mxu0 0
        %2627 = vmatprep.subr.bf16.mxu0 0
        %2628 = vmatpush2.bf16.xpose.msra.mxu0 0
        %2629 = vmatprep.subr.bf16.mxu0 0
        %2630 = vmatpush2.bf16.xpose.msra.mxu0 0
        %2631 = vmatprep.mubr.bf16.mxu0 0
        %2632 = vmatmul.mubr.bf16.gmra.mxu0 %v2594
        %v2633 = vpop.f32.mrf.mxu0
        %v2634 = vadd.f32 %v664, %v2633
        %v2635 = vpop.f32.mrf.mxu0
        %v2636 = vpop.f32.mrf.mxu0
        %v2637 = vpop.f32.mrf.mxu0
        %2638 = vdwg.mxu0
        %v2639 = vsel %vm1642, %v2584, -inf
        %2640 = vmax.xlane.f32.xlu0 %v2639
        %v2641 = vpop.xlane.xlu0 %2640
        %v2642 = vsel %vm1642, %v2634, -inf
        %2643 = vmax.xlane.f32.xlu0 %v2642
        %v2644 = vpop.xlane.xlu0 %2643
        %v2645 = vsub.f32 %v2584, %v2641
        %v2646 = vsub.f32 %v2634, %v2644
        %v2647 = vmul.f32 %v2645, 1.442695
        %v2648 = vpow.pop %v2647
        %v2649 = vmul.f32 %v2646, 1.442695
        %v2650 = vpow.pop %v2649
        %v2651 = vsel %vm1642, %v2648, 0.0
        %2652 = vadd.xlane.f32.xlu0 %v2651
        %v2653 = vpop.xlane.xlu0 %2652
        %v2654 = vsel %vm1642, %v2650, 0.0
        %2655 = vadd.xlane.f32.xlu0 %v2654
        %v2656 = vpop.xlane.xlu0 %2655
        %v2657 = vrcp.pop %v2653
        %v2658 = vrcp.pop %v2656
        %v2659 = vmul.f32 %v2648, %v2657
        %v2660 = vmul.f32 %v2650, %v2658
        %v2661 = vpack.c.bf16 %v2659, %v2659
        %v2662 = vpack.c.bf16 %v2660, %v2660
        %2663 = vrot.lane.b32.xlu0 %v1893, 72
        %v2664 = vpop.permute.xlu0 %2663
        %v2667 = vsel %vm1642, %v2661, 0
        %2669 = vmatprep.subr.bf16.mxu0 0
        %2670 = vmatpush1.bf16.msra.mxu0 0
        %2671 = vmatprep.subr.bf16.mxu0 0
        %2672 = vmatpush1.bf16.msra.mxu0 0
        %2673 = vmatprep.subr.bf16.mxu0 0
        %2674 = vmatpush1.bf16.msra.mxu0 0
        %2675 = vmatprep.subr.bf16.mxu0 0
        %2676 = vmatpush1.bf16.msra.mxu0 0
        %2677 = vmatprep.subr.bf16.mxu0 0
        %2678 = vmatpush1.bf16.msra.mxu0 0
        %2679 = vmatprep.subr.bf16.mxu0 0
        %2680 = vmatpush1.bf16.msra.mxu0 0
        %2681 = vmatprep.subr.bf16.mxu0 0
        %2682 = vmatpush1.bf16.msra.mxu0 0
        %2683 = vmatprep.subr.bf16.mxu0 0
        %2684 = vmatpush1.bf16.msra.mxu0 %v2664
        %2685 = vmatprep.subr.bf16.mxu0 0
        %2686 = vmatpush2.bf16.msra.mxu0 0
        %2687 = vmatprep.subr.bf16.mxu0 0
        %2688 = vmatpush2.bf16.msra.mxu0 0
        %2689 = vmatprep.subr.bf16.mxu0 0
        %2690 = vmatpush2.bf16.msra.mxu0 0
        %2691 = vmatprep.subr.bf16.mxu0 0
        %2692 = vmatpush2.bf16.msra.mxu0 0
        %2693 = vmatprep.subr.bf16.mxu0 0
        %2694 = vmatpush2.bf16.msra.mxu0 0
        %2695 = vmatprep.subr.bf16.mxu0 0
        %2696 = vmatpush2.bf16.msra.mxu0 0
        %2697 = vmatprep.subr.bf16.mxu0 0
        %2698 = vmatpush2.bf16.msra.mxu0 0
        %2699 = vmatprep.subr.bf16.mxu0 0
        %2700 = vmatpush2.bf16.msra.mxu0 0
        %2701 = vmatprep.mubr.bf16.mxu0 0
        %2702 = vmatmul.mubr.bf16.gmra.mxu0 %v2667
        %v2703 = vpop.f32.mrf.mxu0
        %v2704 = vadd.f32 0.0, %v2703
        %v2705 = vpop.f32.mrf.mxu0
        %v2706 = vpop.f32.mrf.mxu0
        %v2707 = vpop.f32.mrf.mxu0
        %2708 = vdwg.mxu0
        %2709 = vrot.lane.b32.xlu0 %v1894, 72
        %v2710 = vpop.permute.xlu0 %2709
        %v2713 = vsel %vm1642, %v2662, 0
        %2715 = vmatprep.subr.bf16.mxu0 0
        %2716 = vmatpush1.bf16.msra.mxu0 0
        %2717 = vmatprep.subr.bf16.mxu0 0
        %2718 = vmatpush1.bf16.msra.mxu0 0
        %2719 = vmatprep.subr.bf16.mxu0 0
        %2720 = vmatpush1.bf16.msra.mxu0 0
        %2721 = vmatprep.subr.bf16.mxu0 0
        %2722 = vmatpush1.bf16.msra.mxu0 0
        %2723 = vmatprep.subr.bf16.mxu0 0
        %2724 = vmatpush1.bf16.msra.mxu0 0
        %2725 = vmatprep.subr.bf16.mxu0 0
        %2726 = vmatpush1.bf16.msra.mxu0 0
        %2727 = vmatprep.subr.bf16.mxu0 0
        %2728 = vmatpush1.bf16.msra.mxu0 0
        %2729 = vmatprep.subr.bf16.mxu0 0
        %2730 = vmatpush1.bf16.msra.mxu0 %v2710
        %2731 = vmatprep.subr.bf16.mxu0 0
        %2732 = vmatpush2.bf16.msra.mxu0 0
        %2733 = vmatprep.subr.bf16.mxu0 0
        %2734 = vmatpush2.bf16.msra.mxu0 0
        %2735 = vmatprep.subr.bf16.mxu0 0
        %2736 = vmatpush2.bf16.msra.mxu0 0
        %2737 = vmatprep.subr.bf16.mxu0 0
        %2738 = vmatpush2.bf16.msra.mxu0 0
        %2739 = vmatprep.subr.bf16.mxu0 0
        %2740 = vmatpush2.bf16.msra.mxu0 0
        %2741 = vmatprep.subr.bf16.mxu0 0
        %2742 = vmatpush2.bf16.msra.mxu0 0
        %2743 = vmatprep.subr.bf16.mxu0 0
        %2744 = vmatpush2.bf16.msra.mxu0 0
        %2745 = vmatprep.subr.bf16.mxu0 0
        %2746 = vmatpush2.bf16.msra.mxu0 0
        %2747 = vmatprep.mubr.bf16.mxu0 0
        %2748 = vmatmul.mubr.bf16.gmra.mxu0 %v2713
        %v2749 = vpop.f32.mrf.mxu0
        %v2750 = vadd.f32 0.0, %v2749
        %v2751 = vpop.f32.mrf.mxu0
        %v2752 = vpop.f32.mrf.mxu0
        %v2753 = vpop.f32.mrf.mxu0
        %2754 = vdwg.mxu0
        %2757 = vrot.lane.b32.xlu0 %v2272, 8
        %v2758 = vpop.permute.xlu0 %2757
        %2759 = vrot.lane.b32.xlu0 %v2318, 8
        %v2760 = vpop.permute.xlu0 %2759
        %2765 = vrot.lane.b32.xlu0 %v2488, 16
        %v2766 = vpop.permute.xlu0 %2765
        %2767 = vrot.lane.b32.xlu0 %v2534, 16
        %v2768 = vpop.permute.xlu0 %2767
        %2773 = vrot.lane.b32.xlu0 %v2704, 24
        %v2774 = vpop.permute.xlu0 %2773
        %2775 = vrot.lane.b32.xlu0 %v2750, 24
        %v2776 = vpop.permute.xlu0 %2775
        %v2779 = vsel %vm739, %v2053, %v2758
        %v2780 = vsel %vm739, %v2100, %v2760
        %v2781 = vsel %vm1642, %v2779, %v2766
        %v2782 = vsel %vm1642, %v2780, %v2768
        %v2783 = vsel %vm1645, %v2781, %v2774
        %v2784 = vsel %vm1645, %v2782, %v2776
        %v2785 = vpack.c.bf16 %v2784, %v2783
        %v2786 = vld [vmem:[%s556] sm:$0xf]
        %v2787 = vld [vmem:[%s556 + $0x4] sm:$0xf]
        %v2788 = vld [vmem:[%s556 + $0x8] sm:$0xf]
        %v2789 = vld [vmem:[%s556 + $0xc] sm:$0xf]
        %v2790 = vld [vmem:[%s634] sm:$0x1]
        %v2792 = vlaneseq
        %v2793 = vshrl.u32 %v2792, 7
        %v2794 = vsub.s32 0, %v2793
        %v2795 = vrot.slane %v2790, %v2794
        %v2801 = vunpack.c.l.b16 %v2786
        %v2802 = vunpack.c.l.b16 %v2787
        %v2803 = vunpack.c.l.b16 %v2788
        %v2804 = vunpack.c.l.b16 %v2789
        %v2805 = vpack.c.b16 %v2802, %v2801
        %v2806 = vpack.c.b16 %v2804, %v2803
        %v2810 = vsel %vm689, %v2785, 0
        %2812 = vmatprep.subr.bf16.mxu0 0
        %2813 = vmatpush1.bf16.msra.mxu0 0
        %2814 = vmatprep.subr.bf16.mxu0 0
        %2815 = vmatpush1.bf16.msra.mxu0 0
        %2816 = vmatprep.subr.bf16.mxu0 0
        %2817 = vmatpush1.bf16.msra.mxu0 0
        %2818 = vmatprep.subr.bf16.mxu0 0
        %2819 = vmatpush1.bf16.msra.mxu0 0
        %2820 = vmatprep.subr.bf16.mxu0 0
        %2821 = vmatpush1.bf16.msra.mxu0 0
        %2822 = vmatprep.subr.bf16.mxu0 0
        %2823 = vmatpush1.bf16.msra.mxu0 0
        %2824 = vmatprep.subr.bf16.mxu0 0
        %2825 = vmatpush1.bf16.msra.mxu0 %v2806
        %2826 = vmatprep.subr.bf16.mxu0 0
        %2827 = vmatpush1.bf16.msra.mxu0 %v2805
        %2828 = vmatprep.subr.bf16.mxu0 0
        %2829 = vmatpush2.bf16.msra.mxu0 0
        %2830 = vmatprep.subr.bf16.mxu0 0
        %2831 = vmatpush2.bf16.msra.mxu0 0
        %2832 = vmatprep.subr.bf16.mxu0 0
        %2833 = vmatpush2.bf16.msra.mxu0 0
        %2834 = vmatprep.subr.bf16.mxu0 0
        %2835 = vmatpush2.bf16.msra.mxu0 0
        %2836 = vmatprep.subr.bf16.mxu0 0
        %2837 = vmatpush2.bf16.msra.mxu0 0
        %2838 = vmatprep.subr.bf16.mxu0 0
        %2839 = vmatpush2.bf16.msra.mxu0 0
        %2840 = vmatprep.subr.bf16.mxu0 0
        %2841 = vmatpush2.bf16.msra.mxu0 0
        %2842 = vmatprep.subr.bf16.mxu0 0
        %2843 = vmatpush2.bf16.msra.mxu0 0
        %2844 = vmatprep.mubr.bf16.mxu0 0
        %2845 = vmatmul.mubr.bf16.gmra.mxu0 %v2810
        %v2846 = vpop.f32.mrf.mxu0
        %v2847 = vadd.f32 %v2795, %v2846
        %v2848 = vpop.f32.mrf.mxu0
        %v2849 = vpop.f32.mrf.mxu0
        %v2850 = vadd.f32 %v2795, %v2849
        %v2851 = vpop.f32.mrf.mxu0
        %2852 = vdwg.mxu0
        %v2853 = vadd.f32 %v1755, %v2847
        %v2854 = vadd.f32 %v1756, %v2850
        %v2855 = vsel %vm689, %v2853, 0.0
        %2856 = vadd.xlane.f32.xlu0 %v2855
        %v2857 = vpop.xlane.xlu0 %2856
        %v2858 = vsel %vm689, %v2854, 0.0
        %2859 = vadd.xlane.f32.xlu0 %v2858
        %v2860 = vpop.xlane.xlu0 %2859
        %v2861 = vmul.f32 %v2857, %v1724
        %v2862 = vmul.f32 %v2860, %v1724
        %v2863 = vsub.f32 %v2853, %v2861
        %v2864 = vsub.f32 %v2854, %v2862
        %v2865 = vmul.f32 %v2863, %v2863
        %v2866 = vmul.f32 %v2864, %v2864
        %v2867 = vsel %vm689, %v2865, 0.0
        %2868 = vadd.xlane.f32.xlu0 %v2867
        %v2869 = vpop.xlane.xlu0 %2868
        %v2870 = vsel %vm689, %v2866, 0.0
        %2871 = vadd.xlane.f32.xlu0 %v2870
        %v2872 = vpop.xlane.xlu0 %2871
        %v2873 = vmul.f32 %v2869, %v1724
        %v2874 = vmul.f32 %v2872, %v1724
        %v2875 = vadd.f32 %v2873, 1e-05
        %v2876 = vadd.f32 %v2874, 1e-05
        %v2877 = vrsqrt.pop %v2875
        %v2878 = vrsqrt.pop %v2876
        %v2879 = vmul.f32 %v2863, %v2877
        %v2880 = vmul.f32 %v2864, %v2878
        %v2881 = vlaneseq
        %v2882 = vshrl.u32 %v2881, 7
        %v2883 = vsub.s32 2, %v2882
        %v2884 = vrot.slane %v656, %v2883
        %v2885 = vmul.f32 %v2879, %v2884
        %v2886 = vmul.f32 %v2880, %v2884
        %v2887 = vlaneseq
        %v2888 = vshrl.u32 %v2887, 7
        %v2889 = vsub.s32 3, %v2888
        %v2890 = vrot.slane %v656, %v2889
        %v2891 = vadd.f32 %v2885, %v2890
        %v2892 = vadd.f32 %v2886, %v2890
        %2893 = vst.msk [vmem:[#allocation11] sm:$0xff] %vm689, %v2891
        %2894 = vst.msk [vmem:[#allocation11 + $0x8] sm:$0xff] %vm689, %v2892
        // Predicated region
        $region93: #{tpu_custom_call.1} parent=63 // pred_check
          %p2895 = pneg %p341
        $region94: #{tpu_custom_call.1} parent=63 // pred_check_branch
          %2897 = sbr.rel (%p2895) target = $region96
        $region95: #{tpu_custom_call.1} parent=63 // pred_region
          %s2898 = smul.u32 2, %s29
          %s2900 = ssub.s32 256, 256
          %2901 = vsyncadd [#allocation4], %s2900
          %s2902 = smul.addr %s2898, 128
          %s2903 = scalar_lea.hbm %s11, %s2902
          %s2904 = sshll.u32 [#allocation11], 4
          %s2905 = int_to_ptr.vmem [resolvable:$true] %s2904
          %2910 = dma.vmem_to_hbm [thread:$0]  %s2905, 256, %s2903, [#allocation4], 128, 128, 8
        $region96: #{tpu_custom_call.1} parent=63 // pred_fallthru
          _
        // Predicated region
        $region97: #{tpu_custom_call.1} parent=63 // pred_check
          %p2911 = pneg %p341
        $region98: #{tpu_custom_call.1} parent=63 // pred_check_branch
          %2913 = sbr.rel (%p2911) target = $region100
        $region99: #{tpu_custom_call.1} parent=63 // pred_region
          %2914 = dma.done [#allocation4], 256
        $region100: #{tpu_custom_call.1} parent=63 // pred_fallthru
          _
      $region64: #{tpu_custom_call.1} parent=5 // pred_fallthru
        _
      %p2915 = scmp.le.s32.totalorder 2, %s20
      // Predicated region
      $region101: #{tpu_custom_call.1} parent=5 // pred_check
        %p2916 = pneg %p2915
      $region102: #{tpu_custom_call.1} parent=5 // pred_check_branch
        %2918 = sbr.rel (%p2916) target = $region104
      $region103: #{tpu_custom_call.1} parent=5 // pred_region
        %s2919 = ssub.s32 %s20, 2
      $region104: #{tpu_custom_call.1} parent=5 // pred_fallthru
        _
    $region6: #{tpu_custom_call.1} parent=1 // loop_footer
      %s24 = sadd.s32 1, %s20
    $region7: #{tpu_custom_call.1} parent=1 // loop_footer_branch
      %19 = sbr.rel target = $region3
    $region8: #{tpu_custom_call.1} parent=1 // loop_exit
      _
    %2920 = vsyncpa [#allocation3], 1
    %s2921 = scalar_lea.sflag [#allocation3], 1
    %2922 = vsyncpa %s2921, 1
    %2923 = vsyncpa [#allocation6], 1
    %2924 = vsyncpa [#allocation4], 1
    %s2925 = scalar_lea.sflag [#allocation4], 1
    %2926 = vsyncpa %s2925, 1

</llo_original>
